<compile_context>
chip_gen: v7x
topology: tpu7x:2x2x1
jax: 0.10.0
libtpu: 0.0.40
codegen_flags: <defaults>
</compile_context>

<pallas_src>
import functools

import numpy as np
import jax
import jax.numpy as jnp
from jax.experimental import pallas as pl
from jax.experimental.pallas import tpu as pltpu


# ----------------------------------------------------------------------------
# Parameter init (PyTorch-style shapes: OIHW conv weights, (out,in) FC weights)
# ----------------------------------------------------------------------------
def _uniform(key, shape, fan_in):
    bound = 1.0 / np.sqrt(float(fan_in))
    return jax.random.uniform(key, shape, jnp.float32, -bound, bound)


def _conv_out_hw(h, w):
    h = (h - 8) // 4 + 1; w = (w - 8) // 4 + 1
    h = (h - 4) // 2 + 1; w = (w - 4) // 2 + 1
    h = (h - 3) // 1 + 1; w = (w - 3) // 1 + 1
    return h, w


def init_dqn_params(key, input_shape, n_actions):
    C, H, W = input_shape
    keys = jax.random.split(key, 10)
    conv1_w = _uniform(keys[0], (32, C, 8, 8), C * 64)
    conv1_b = _uniform(keys[1], (32,), C * 64)
    conv2_w = _uniform(keys[2], (64, 32, 4, 4), 32 * 16)
    conv2_b = _uniform(keys[3], (64,), 32 * 16)
    conv3_w = _uniform(keys[4], (64, 64, 3, 3), 64 * 9)
    conv3_b = _uniform(keys[5], (64,), 64 * 9)
    oh, ow = _conv_out_hw(H, W)
    conv_out = 64 * oh * ow
    fc1_w = _uniform(keys[6], (512, conv_out), conv_out)
    fc1_b = _uniform(keys[7], (512,), conv_out)
    fc2_w = _uniform(keys[8], (n_actions, 512), 512)
    fc2_b = _uniform(keys[9], (n_actions,), 512)
    return dict(conv1_w=conv1_w, conv1_b=conv1_b, conv2_w=conv2_w, conv2_b=conv2_b,
                conv3_w=conv3_w, conv3_b=conv3_b, fc1_w=fc1_w, fc1_b=fc1_b,
                fc2_w=fc2_w, fc2_b=fc2_b)


# ----------------------------------------------------------------------------
# One-time weight repacking (all layout plumbing happens here, not per call).
# ----------------------------------------------------------------------------
def _expand_conv_weight(w_oihw, w_in, stride):
    """Fold the (W x C) part of the conv contraction into dense matrices.

    Returns M of shape (KH, W_in*Cin, OW*OC) such that for an input row laid
    out as (w-major, c-minor), `row @ M[kh]` yields the (ow-major, oc-minor)
    contribution of kernel-row offset kh.  Zeros encode the window/stride.
    """
    w = np.asarray(w_oihw, np.float32)
    oc, cin, khs, kws = w.shape
    ows = (w_in - kws) // stride + 1
    m = np.zeros((khs, w_in * cin, ows * oc), np.float32)
    for kh in range(khs):
        for ow in range(ows):
            for kw in range(kws):
                col = ow * stride + kw
                m[kh, col * cin:(col + 1) * cin, ow * oc:(ow + 1) * oc] = w[:, :, kh, kw].T
    return m


# ----------------------------------------------------------------------------
# Fused kernel body (runs once per sample via grid=(batch,)).
# ----------------------------------------------------------------------------
def _rowconv_relu(x2d, w_ref, b_ref, acc_ref, stride):
    """Conv layer as KH full-width MXU GEMMs + strided row gather of results.

    x2d: (H_in, W_in*Cin) value; w_ref: (KH, W_in*Cin, OW*OC); acc_ref:
    (OH, OW*OC) VMEM scratch used to assemble the 2-D output.  Returns
    ReLU(conv + bias) as an (OH, OW*OC) value (channel-last, lane-dense).
    """
    ksize = w_ref.shape[0]
    out_rows = acc_ref.shape[0]
    rows = [None] * out_rows
    for kh in range(ksize):
        p = jnp.dot(x2d, w_ref[kh], preferred_element_type=jnp.float32)
        for oh in range(out_rows):
            r = p[stride * oh + kh: stride * oh + kh + 1, :]
            rows[oh] = r if rows[oh] is None else rows[oh] + r
    for oh in range(out_rows):
        acc_ref[oh:oh + 1, :] = rows[oh]
    return jnp.maximum(acc_ref[...] + b_ref[...], 0.0)


def _dqn_fused_kernel(x_ref, w1, b1, w2, b2, w3, b3, wf1, bf1, wf2, bf2,
                      out_ref, acc1, acc2, acc3, *, strides):
    s1, s2, s3 = strides
    x2d = x_ref[0]                                   # (H, W*C) for this sample

    y1 = _rowconv_relu(x2d, w1, b1, acc1, s1)        # (OH1, OW1*32)
    y2 = _rowconv_relu(y1, w2, b2, acc2, s2)         # (OH2, OW2*64)
    y3 = _rowconv_relu(y2, w3, b3, acc3, s3)         # (OH3, OW3*64)

    # fc1 (+ReLU): PyTorch channel-major flatten folded into wf1's row blocks.
    h = None
    for r in range(wf1.shape[0]):
        t = jnp.dot(y3[r:r + 1, :], wf1[r], preferred_element_type=jnp.float32)
        h = t if h is None else h + t
    h = jnp.maximum(h + bf1[...], 0.0)               # (1, 512)

    # fc2 (no activation); weight already pre-transposed to (512, n_actions).
    o = jnp.dot(h, wf2[...], preferred_element_type=jnp.float32) + bf2[...]
    out_ref[0] = o.astype(out_ref.dtype)


# ----------------------------------------------------------------------------
# Builder: repack weights once, return a jitted forward(x_nchw) -> (N, A).
# ----------------------------------------------------------------------------
def build_dqn_forward(params, input_shape, n_actions):
    C, H, W = input_shape
    K1, S1, K2, S2, K3, S3 = 8, 4, 4, 2, 3, 1
    OC1, OC2, OC3 = 32, 64, 64
    OH1, OW1 = (H - K1) // S1 + 1, (W - K1) // S1 + 1
    OH2, OW2 = (OH1 - K2) // S2 + 1, (OW1 - K2) // S2 + 1
    OH3, OW3 = (OH2 - K3) // S3 + 1, (OW2 - K3) // S3 + 1
    cols0, cols1, cols2, cols3 = W * C, OW1 * OC1, OW2 * OC2, OW3 * OC3
    FC1, A = 512, n_actions

    # --- init-time repacking: conv weights expanded, FC weights pre-permuted ---
    w1 = _expand_conv_weight(params["conv1_w"], W, S1)      # (K1, cols0, cols1)
    w2 = _expand_conv_weight(params["conv2_w"], OW1, S2)    # (K2, cols1, cols2)
    w3 = _expand_conv_weight(params["conv3_w"], OW2, S3)    # (K3, cols2, cols3)
    b1 = np.tile(np.asarray(params["conv1_b"], np.float32), OW1)[None, :]
    b2 = np.tile(np.asarray(params["conv2_b"], np.float32), OW2)[None, :]
    b3 = np.tile(np.asarray(params["conv3_b"], np.float32), OW3)[None, :]
    f1 = np.asarray(params["fc1_w"], np.float32).reshape(FC1, OC3, OH3, OW3)
    f1 = f1.transpose(2, 3, 1, 0).reshape(OH3, cols3, FC1)  # rows=(oh3), cols=(ow3,oc3)
    bf1 = np.asarray(params["fc1_b"], np.float32)[None, :]
    f2 = np.asarray(params["fc2_w"], np.float32).T           # (512, A), pre-transposed
    bf2 = np.asarray(params["fc2_b"], np.float32)[None, :]

    ops = tuple(jnp.asarray(a, jnp.float32)
                for a in (w1, b1, w2, b2, w3, b3, f1, bf1, f2, bf2))
    weight_specs = [pl.BlockSpec(a.shape, (lambda i, nd=a.ndim: (0,) * nd))
                    for a in ops]

    kernel = functools.partial(_dqn_fused_kernel, strides=(S1, S2, S3))

    def fwd(x_nchw, ops_):
        n = x_nchw.shape[0]
        # Only per-call layout glue: NCHW -> (N, H, W*C), rows=H, cols=(w, c).
        x_rows = jnp.transpose(x_nchw, (0, 2, 3, 1)).reshape(n, H, cols0)
        out = pl.pallas_call(
            kernel,
            out_shape=jax.ShapeDtypeStruct((n, 1, A), jnp.float32),
            grid=(n,),
            in_specs=[pl.BlockSpec((1, H, cols0), lambda i: (i, 0, 0))] + weight_specs,
            out_specs=pl.BlockSpec((1, 1, A), lambda i: (i, 0, 0)),
            scratch_shapes=[pltpu.VMEM((OH1, cols1), jnp.float32),
                            pltpu.VMEM((OH2, cols2), jnp.float32),
                            pltpu.VMEM((OH3, cols3), jnp.float32)],
            compiler_params=pltpu.CompilerParams(
                dimension_semantics=("parallel",)),
        )(x_rows, *ops_)
        return out.reshape(n, A)

    jit_fwd = jax.jit(fwd)
    return lambda x: jit_fwd(x, ops)


# ----------------------------------------------------------------------------
# Pure-JAX reference (matches DQN.forward semantics) for a sanity check.
# ----------------------------------------------------------------------------
def dqn_forward_ref(params, x_nchw):
    def conv(x, w, b, s):
        y = jax.lax.conv_general_dilated(
            x, w, window_strides=(s, s), padding="VALID",
            dimension_numbers=("NCHW", "OIHW", "NCHW"))
        return jnp.maximum(y + b[None, :, None, None], 0.0)

    h = conv(x_nchw, params["conv1_w"], params["conv1_b"], 4)
    h = conv(h, params["conv2_w"], params["conv2_b"], 2)
    h = conv(h, params["conv3_w"], params["conv3_b"], 1)
    flat = h.reshape(h.shape[0], -1)
    h = jnp.maximum(flat @ params["fc1_w"].T + params["fc1_b"], 0.0)
    return h @ params["fc2_w"].T + params["fc2_b"]


if __name__ == "__main__":
    # Smallest valid DQN instance: 36 -> 8 -> 3 -> 1 spatial, conv_out = 64.
    input_shape = (4, 36, 36)
    n_actions = 6
    batch = 2

    key = jax.random.PRNGKey(0)
    k_params, k_x = jax.random.split(key)
    params = init_dqn_params(k_params, input_shape, n_actions)
    x = jax.random.normal(k_x, (batch,) + input_shape, dtype=jnp.float32)

    forward = build_dqn_forward(params, input_shape, n_actions)
    out = jax.block_until_ready(forward(x))

    ref = dqn_forward_ref(params, x)
    assert out.shape == (batch, n_actions), out.shape
    assert jnp.allclose(out, ref, rtol=1e-3, atol=1e-3), \
        float(jnp.max(jnp.abs(out - ref)))

    print("KERNEL_OK")
</pallas_src>

<mosaic_0001>
module attributes {stable_mosaic.version = 11 : i64} {
  func.func @_dqn_fused_kernel(%arg0: i32, %arg1: memref<1x36x144xf32, #tpu.memory_space<vmem>>, %arg2: memref<8x144x256xf32, #tpu.memory_space<vmem>>, %arg3: memref<1x256xf32, #tpu.memory_space<vmem>>, %arg4: memref<4x256x192xf32, #tpu.memory_space<vmem>>, %arg5: memref<1x192xf32, #tpu.memory_space<vmem>>, %arg6: memref<3x192x64xf32, #tpu.memory_space<vmem>>, %arg7: memref<1x64xf32, #tpu.memory_space<vmem>>, %arg8: memref<1x64x512xf32, #tpu.memory_space<vmem>>, %arg9: memref<1x512xf32, #tpu.memory_space<vmem>>, %arg10: memref<512x6xf32, #tpu.memory_space<vmem>>, %arg11: memref<1x6xf32, #tpu.memory_space<vmem>>, %arg12: memref<1x1x6xf32, #tpu.memory_space<vmem>>, %arg13: memref<8x256xf32, #tpu.memory_space<vmem>>, %arg14: memref<3x192xf32, #tpu.memory_space<vmem>>, %arg15: memref<1x64xf32, #tpu.memory_space<vmem>>) attributes {dimension_semantics = [#tpu.dimension_semantics<parallel>], iteration_bounds = array<i64: 2>, scalar_prefetch = 0 : i64, scratch_operands = 3 : i64, tpu.core_type = #tpu.core_type<tc>, window_params = [{transform_indices = @transform_0, window_bounds = array<i64: 1, 36, 144>}, {pipeline_mode = #tpu.pipeline_mode<synchronous>, transform_indices = @transform_1, window_bounds = array<i64: 8, 144, 256>}, {pipeline_mode = #tpu.pipeline_mode<synchronous>, transform_indices = @transform_2, window_bounds = array<i64: 1, 256>}, {pipeline_mode = #tpu.pipeline_mode<synchronous>, transform_indices = @transform_3, window_bounds = array<i64: 4, 256, 192>}, {pipeline_mode = #tpu.pipeline_mode<synchronous>, transform_indices = @transform_4, window_bounds = array<i64: 1, 192>}, {pipeline_mode = #tpu.pipeline_mode<synchronous>, transform_indices = @transform_5, window_bounds = array<i64: 3, 192, 64>}, {pipeline_mode = #tpu.pipeline_mode<synchronous>, transform_indices = @transform_6, window_bounds = array<i64: 1, 64>}, {pipeline_mode = #tpu.pipeline_mode<synchronous>, transform_indices = @transform_7, window_bounds = array<i64: 1, 64, 512>}, {pipeline_mode = #tpu.pipeline_mode<synchronous>, transform_indices = @transform_8, window_bounds = array<i64: 1, 512>}, {pipeline_mode = #tpu.pipeline_mode<synchronous>, transform_indices = @transform_9, window_bounds = array<i64: 512, 6>}, {pipeline_mode = #tpu.pipeline_mode<synchronous>, transform_indices = @transform_10, window_bounds = array<i64: 1, 6>}, {transform_indices = @transform_11, window_bounds = array<i64: 1, 1, 6>}]} {
    %c0 = arith.constant 0 : index
    %c0_0 = arith.constant 0 : index
    %c0_1 = arith.constant 0 : index
    %0 = vector.load %arg1[%c0, %c0_0, %c0_1] : memref<1x36x144xf32, #tpu.memory_space<vmem>>, vector<1x36x144xf32>
    %1 = vector.shape_cast %0 : vector<1x36x144xf32> to vector<36x144xf32>
    %c0_2 = arith.constant 0 : index
    %c0_3 = arith.constant 0 : index
    %c0_4 = arith.constant 0 : index
    %2 = vector.load %arg2[%c0_2, %c0_3, %c0_4] : memref<8x144x256xf32, #tpu.memory_space<vmem>>, vector<1x144x256xf32>
    %3 = vector.shape_cast %2 : vector<1x144x256xf32> to vector<144x256xf32>
    %cst = arith.constant dense<0.000000e+00> : vector<36x256xf32>
    %4 = tpu.matmul %1, %3, %cst {dimension_numbers = #tpu.dot_dimension_numbers<[1], [0], [0], [1], [0, 0, 1, 1], [], []>} : vector<36x144xf32>, vector<144x256xf32>, vector<36x256xf32> -> vector<36x256xf32>
    %5 = vector.extract_strided_slice %4 {offsets = [0, 0], sizes = [1, 256], strides = [1, 1]} : vector<36x256xf32> to vector<1x256xf32>
    %6 = vector.extract_strided_slice %4 {offsets = [4, 0], sizes = [1, 256], strides = [1, 1]} : vector<36x256xf32> to vector<1x256xf32>
    %7 = vector.extract_strided_slice %4 {offsets = [8, 0], sizes = [1, 256], strides = [1, 1]} : vector<36x256xf32> to vector<1x256xf32>
    %8 = vector.extract_strided_slice %4 {offsets = [12, 0], sizes = [1, 256], strides = [1, 1]} : vector<36x256xf32> to vector<1x256xf32>
    %9 = vector.extract_strided_slice %4 {offsets = [16, 0], sizes = [1, 256], strides = [1, 1]} : vector<36x256xf32> to vector<1x256xf32>
    %10 = vector.extract_strided_slice %4 {offsets = [20, 0], sizes = [1, 256], strides = [1, 1]} : vector<36x256xf32> to vector<1x256xf32>
    %11 = vector.extract_strided_slice %4 {offsets = [24, 0], sizes = [1, 256], strides = [1, 1]} : vector<36x256xf32> to vector<1x256xf32>
    %12 = vector.extract_strided_slice %4 {offsets = [28, 0], sizes = [1, 256], strides = [1, 1]} : vector<36x256xf32> to vector<1x256xf32>
    %c1 = arith.constant 1 : index
    %c0_5 = arith.constant 0 : index
    %c0_6 = arith.constant 0 : index
    %13 = vector.load %arg2[%c1, %c0_5, %c0_6] : memref<8x144x256xf32, #tpu.memory_space<vmem>>, vector<1x144x256xf32>
    %14 = vector.shape_cast %13 : vector<1x144x256xf32> to vector<144x256xf32>
    %cst_7 = arith.constant dense<0.000000e+00> : vector<36x256xf32>
    %15 = tpu.matmul %1, %14, %cst_7 {dimension_numbers = #tpu.dot_dimension_numbers<[1], [0], [0], [1], [0, 0, 1, 1], [], []>} : vector<36x144xf32>, vector<144x256xf32>, vector<36x256xf32> -> vector<36x256xf32>
    %16 = vector.extract_strided_slice %15 {offsets = [1, 0], sizes = [1, 256], strides = [1, 1]} : vector<36x256xf32> to vector<1x256xf32>
    %17 = arith.addf %5, %16 : vector<1x256xf32>
    %18 = vector.extract_strided_slice %15 {offsets = [5, 0], sizes = [1, 256], strides = [1, 1]} : vector<36x256xf32> to vector<1x256xf32>
    %19 = arith.addf %6, %18 : vector<1x256xf32>
    %20 = vector.extract_strided_slice %15 {offsets = [9, 0], sizes = [1, 256], strides = [1, 1]} : vector<36x256xf32> to vector<1x256xf32>
    %21 = arith.addf %7, %20 : vector<1x256xf32>
    %22 = vector.extract_strided_slice %15 {offsets = [13, 0], sizes = [1, 256], strides = [1, 1]} : vector<36x256xf32> to vector<1x256xf32>
    %23 = arith.addf %8, %22 : vector<1x256xf32>
    %24 = vector.extract_strided_slice %15 {offsets = [17, 0], sizes = [1, 256], strides = [1, 1]} : vector<36x256xf32> to vector<1x256xf32>
    %25 = arith.addf %9, %24 : vector<1x256xf32>
    %26 = vector.extract_strided_slice %15 {offsets = [21, 0], sizes = [1, 256], strides = [1, 1]} : vector<36x256xf32> to vector<1x256xf32>
    %27 = arith.addf %10, %26 : vector<1x256xf32>
    %28 = vector.extract_strided_slice %15 {offsets = [25, 0], sizes = [1, 256], strides = [1, 1]} : vector<36x256xf32> to vector<1x256xf32>
    %29 = arith.addf %11, %28 : vector<1x256xf32>
    %30 = vector.extract_strided_slice %15 {offsets = [29, 0], sizes = [1, 256], strides = [1, 1]} : vector<36x256xf32> to vector<1x256xf32>
    %31 = arith.addf %12, %30 : vector<1x256xf32>
    %c2 = arith.constant 2 : index
    %c0_8 = arith.constant 0 : index
    %c0_9 = arith.constant 0 : index
    %32 = vector.load %arg2[%c2, %c0_8, %c0_9] : memref<8x144x256xf32, #tpu.memory_space<vmem>>, vector<1x144x256xf32>
    %33 = vector.shape_cast %32 : vector<1x144x256xf32> to vector<144x256xf32>
    %cst_10 = arith.constant dense<0.000000e+00> : vector<36x256xf32>
    %34 = tpu.matmul %1, %33, %cst_10 {dimension_numbers = #tpu.dot_dimension_numbers<[1], [0], [0], [1], [0, 0, 1, 1], [], []>} : vector<36x144xf32>, vector<144x256xf32>, vector<36x256xf32> -> vector<36x256xf32>
    %35 = vector.extract_strided_slice %34 {offsets = [2, 0], sizes = [1, 256], strides = [1, 1]} : vector<36x256xf32> to vector<1x256xf32>
    %36 = arith.addf %17, %35 : vector<1x256xf32>
    %37 = vector.extract_strided_slice %34 {offsets = [6, 0], sizes = [1, 256], strides = [1, 1]} : vector<36x256xf32> to vector<1x256xf32>
    %38 = arith.addf %19, %37 : vector<1x256xf32>
    %39 = vector.extract_strided_slice %34 {offsets = [10, 0], sizes = [1, 256], strides = [1, 1]} : vector<36x256xf32> to vector<1x256xf32>
    %40 = arith.addf %21, %39 : vector<1x256xf32>
    %41 = vector.extract_strided_slice %34 {offsets = [14, 0], sizes = [1, 256], strides = [1, 1]} : vector<36x256xf32> to vector<1x256xf32>
    %42 = arith.addf %23, %41 : vector<1x256xf32>
    %43 = vector.extract_strided_slice %34 {offsets = [18, 0], sizes = [1, 256], strides = [1, 1]} : vector<36x256xf32> to vector<1x256xf32>
    %44 = arith.addf %25, %43 : vector<1x256xf32>
    %45 = vector.extract_strided_slice %34 {offsets = [22, 0], sizes = [1, 256], strides = [1, 1]} : vector<36x256xf32> to vector<1x256xf32>
    %46 = arith.addf %27, %45 : vector<1x256xf32>
    %47 = vector.extract_strided_slice %34 {offsets = [26, 0], sizes = [1, 256], strides = [1, 1]} : vector<36x256xf32> to vector<1x256xf32>
    %48 = arith.addf %29, %47 : vector<1x256xf32>
    %49 = vector.extract_strided_slice %34 {offsets = [30, 0], sizes = [1, 256], strides = [1, 1]} : vector<36x256xf32> to vector<1x256xf32>
    %50 = arith.addf %31, %49 : vector<1x256xf32>
    %c3 = arith.constant 3 : index
    %c0_11 = arith.constant 0 : index
    %c0_12 = arith.constant 0 : index
    %51 = vector.load %arg2[%c3, %c0_11, %c0_12] : memref<8x144x256xf32, #tpu.memory_space<vmem>>, vector<1x144x256xf32>
    %52 = vector.shape_cast %51 : vector<1x144x256xf32> to vector<144x256xf32>
    %cst_13 = arith.constant dense<0.000000e+00> : vector<36x256xf32>
    %53 = tpu.matmul %1, %52, %cst_13 {dimension_numbers = #tpu.dot_dimension_numbers<[1], [0], [0], [1], [0, 0, 1, 1], [], []>} : vector<36x144xf32>, vector<144x256xf32>, vector<36x256xf32> -> vector<36x256xf32>
    %54 = vector.extract_strided_slice %53 {offsets = [3, 0], sizes = [1, 256], strides = [1, 1]} : vector<36x256xf32> to vector<1x256xf32>
    %55 = arith.addf %36, %54 : vector<1x256xf32>
    %56 = vector.extract_strided_slice %53 {offsets = [7, 0], sizes = [1, 256], strides = [1, 1]} : vector<36x256xf32> to vector<1x256xf32>
    %57 = arith.addf %38, %56 : vector<1x256xf32>
    %58 = vector.extract_strided_slice %53 {offsets = [11, 0], sizes = [1, 256], strides = [1, 1]} : vector<36x256xf32> to vector<1x256xf32>
    %59 = arith.addf %40, %58 : vector<1x256xf32>
    %60 = vector.extract_strided_slice %53 {offsets = [15, 0], sizes = [1, 256], strides = [1, 1]} : vector<36x256xf32> to vector<1x256xf32>
    %61 = arith.addf %42, %60 : vector<1x256xf32>
    %62 = vector.extract_strided_slice %53 {offsets = [19, 0], sizes = [1, 256], strides = [1, 1]} : vector<36x256xf32> to vector<1x256xf32>
    %63 = arith.addf %44, %62 : vector<1x256xf32>
    %64 = vector.extract_strided_slice %53 {offsets = [23, 0], sizes = [1, 256], strides = [1, 1]} : vector<36x256xf32> to vector<1x256xf32>
    %65 = arith.addf %46, %64 : vector<1x256xf32>
    %66 = vector.extract_strided_slice %53 {offsets = [27, 0], sizes = [1, 256], strides = [1, 1]} : vector<36x256xf32> to vector<1x256xf32>
    %67 = arith.addf %48, %66 : vector<1x256xf32>
    %68 = vector.extract_strided_slice %53 {offsets = [31, 0], sizes = [1, 256], strides = [1, 1]} : vector<36x256xf32> to vector<1x256xf32>
    %69 = arith.addf %50, %68 : vector<1x256xf32>
    %c4 = arith.constant 4 : index
    %c0_14 = arith.constant 0 : index
    %c0_15 = arith.constant 0 : index
    %70 = vector.load %arg2[%c4, %c0_14, %c0_15] : memref<8x144x256xf32, #tpu.memory_space<vmem>>, vector<1x144x256xf32>
    %71 = vector.shape_cast %70 : vector<1x144x256xf32> to vector<144x256xf32>
    %cst_16 = arith.constant dense<0.000000e+00> : vector<36x256xf32>
    %72 = tpu.matmul %1, %71, %cst_16 {dimension_numbers = #tpu.dot_dimension_numbers<[1], [0], [0], [1], [0, 0, 1, 1], [], []>} : vector<36x144xf32>, vector<144x256xf32>, vector<36x256xf32> -> vector<36x256xf32>
    %73 = vector.extract_strided_slice %72 {offsets = [4, 0], sizes = [1, 256], strides = [1, 1]} : vector<36x256xf32> to vector<1x256xf32>
    %74 = arith.addf %55, %73 : vector<1x256xf32>
    %75 = vector.extract_strided_slice %72 {offsets = [8, 0], sizes = [1, 256], strides = [1, 1]} : vector<36x256xf32> to vector<1x256xf32>
    %76 = arith.addf %57, %75 : vector<1x256xf32>
    %77 = vector.extract_strided_slice %72 {offsets = [12, 0], sizes = [1, 256], strides = [1, 1]} : vector<36x256xf32> to vector<1x256xf32>
    %78 = arith.addf %59, %77 : vector<1x256xf32>
    %79 = vector.extract_strided_slice %72 {offsets = [16, 0], sizes = [1, 256], strides = [1, 1]} : vector<36x256xf32> to vector<1x256xf32>
    %80 = arith.addf %61, %79 : vector<1x256xf32>
    %81 = vector.extract_strided_slice %72 {offsets = [20, 0], sizes = [1, 256], strides = [1, 1]} : vector<36x256xf32> to vector<1x256xf32>
    %82 = arith.addf %63, %81 : vector<1x256xf32>
    %83 = vector.extract_strided_slice %72 {offsets = [24, 0], sizes = [1, 256], strides = [1, 1]} : vector<36x256xf32> to vector<1x256xf32>
    %84 = arith.addf %65, %83 : vector<1x256xf32>
    %85 = vector.extract_strided_slice %72 {offsets = [28, 0], sizes = [1, 256], strides = [1, 1]} : vector<36x256xf32> to vector<1x256xf32>
    %86 = arith.addf %67, %85 : vector<1x256xf32>
    %87 = vector.extract_strided_slice %72 {offsets = [32, 0], sizes = [1, 256], strides = [1, 1]} : vector<36x256xf32> to vector<1x256xf32>
    %88 = arith.addf %69, %87 : vector<1x256xf32>
    %c5 = arith.constant 5 : index
    %c0_17 = arith.constant 0 : index
    %c0_18 = arith.constant 0 : index
    %89 = vector.load %arg2[%c5, %c0_17, %c0_18] : memref<8x144x256xf32, #tpu.memory_space<vmem>>, vector<1x144x256xf32>
    %90 = vector.shape_cast %89 : vector<1x144x256xf32> to vector<144x256xf32>
    %cst_19 = arith.constant dense<0.000000e+00> : vector<36x256xf32>
    %91 = tpu.matmul %1, %90, %cst_19 {dimension_numbers = #tpu.dot_dimension_numbers<[1], [0], [0], [1], [0, 0, 1, 1], [], []>} : vector<36x144xf32>, vector<144x256xf32>, vector<36x256xf32> -> vector<36x256xf32>
    %92 = vector.extract_strided_slice %91 {offsets = [5, 0], sizes = [1, 256], strides = [1, 1]} : vector<36x256xf32> to vector<1x256xf32>
    %93 = arith.addf %74, %92 : vector<1x256xf32>
    %94 = vector.extract_strided_slice %91 {offsets = [9, 0], sizes = [1, 256], strides = [1, 1]} : vector<36x256xf32> to vector<1x256xf32>
    %95 = arith.addf %76, %94 : vector<1x256xf32>
    %96 = vector.extract_strided_slice %91 {offsets = [13, 0], sizes = [1, 256], strides = [1, 1]} : vector<36x256xf32> to vector<1x256xf32>
    %97 = arith.addf %78, %96 : vector<1x256xf32>
    %98 = vector.extract_strided_slice %91 {offsets = [17, 0], sizes = [1, 256], strides = [1, 1]} : vector<36x256xf32> to vector<1x256xf32>
    %99 = arith.addf %80, %98 : vector<1x256xf32>
    %100 = vector.extract_strided_slice %91 {offsets = [21, 0], sizes = [1, 256], strides = [1, 1]} : vector<36x256xf32> to vector<1x256xf32>
    %101 = arith.addf %82, %100 : vector<1x256xf32>
    %102 = vector.extract_strided_slice %91 {offsets = [25, 0], sizes = [1, 256], strides = [1, 1]} : vector<36x256xf32> to vector<1x256xf32>
    %103 = arith.addf %84, %102 : vector<1x256xf32>
    %104 = vector.extract_strided_slice %91 {offsets = [29, 0], sizes = [1, 256], strides = [1, 1]} : vector<36x256xf32> to vector<1x256xf32>
    %105 = arith.addf %86, %104 : vector<1x256xf32>
    %106 = vector.extract_strided_slice %91 {offsets = [33, 0], sizes = [1, 256], strides = [1, 1]} : vector<36x256xf32> to vector<1x256xf32>
    %107 = arith.addf %88, %106 : vector<1x256xf32>
    %c6 = arith.constant 6 : index
    %c0_20 = arith.constant 0 : index
    %c0_21 = arith.constant 0 : index
    %108 = vector.load %arg2[%c6, %c0_20, %c0_21] : memref<8x144x256xf32, #tpu.memory_space<vmem>>, vector<1x144x256xf32>
    %109 = vector.shape_cast %108 : vector<1x144x256xf32> to vector<144x256xf32>
    %cst_22 = arith.constant dense<0.000000e+00> : vector<36x256xf32>
    %110 = tpu.matmul %1, %109, %cst_22 {dimension_numbers = #tpu.dot_dimension_numbers<[1], [0], [0], [1], [0, 0, 1, 1], [], []>} : vector<36x144xf32>, vector<144x256xf32>, vector<36x256xf32> -> vector<36x256xf32>
    %111 = vector.extract_strided_slice %110 {offsets = [6, 0], sizes = [1, 256], strides = [1, 1]} : vector<36x256xf32> to vector<1x256xf32>
    %112 = arith.addf %93, %111 : vector<1x256xf32>
    %113 = vector.extract_strided_slice %110 {offsets = [10, 0], sizes = [1, 256], strides = [1, 1]} : vector<36x256xf32> to vector<1x256xf32>
    %114 = arith.addf %95, %113 : vector<1x256xf32>
    %115 = vector.extract_strided_slice %110 {offsets = [14, 0], sizes = [1, 256], strides = [1, 1]} : vector<36x256xf32> to vector<1x256xf32>
    %116 = arith.addf %97, %115 : vector<1x256xf32>
    %117 = vector.extract_strided_slice %110 {offsets = [18, 0], sizes = [1, 256], strides = [1, 1]} : vector<36x256xf32> to vector<1x256xf32>
    %118 = arith.addf %99, %117 : vector<1x256xf32>
    %119 = vector.extract_strided_slice %110 {offsets = [22, 0], sizes = [1, 256], strides = [1, 1]} : vector<36x256xf32> to vector<1x256xf32>
    %120 = arith.addf %101, %119 : vector<1x256xf32>
    %121 = vector.extract_strided_slice %110 {offsets = [26, 0], sizes = [1, 256], strides = [1, 1]} : vector<36x256xf32> to vector<1x256xf32>
    %122 = arith.addf %103, %121 : vector<1x256xf32>
    %123 = vector.extract_strided_slice %110 {offsets = [30, 0], sizes = [1, 256], strides = [1, 1]} : vector<36x256xf32> to vector<1x256xf32>
    %124 = arith.addf %105, %123 : vector<1x256xf32>
    %125 = vector.extract_strided_slice %110 {offsets = [34, 0], sizes = [1, 256], strides = [1, 1]} : vector<36x256xf32> to vector<1x256xf32>
    %126 = arith.addf %107, %125 : vector<1x256xf32>
    %c7 = arith.constant 7 : index
    %c0_23 = arith.constant 0 : index
    %c0_24 = arith.constant 0 : index
    %127 = vector.load %arg2[%c7, %c0_23, %c0_24] : memref<8x144x256xf32, #tpu.memory_space<vmem>>, vector<1x144x256xf32>
    %128 = vector.shape_cast %127 : vector<1x144x256xf32> to vector<144x256xf32>
    %cst_25 = arith.constant dense<0.000000e+00> : vector<36x256xf32>
    %129 = tpu.matmul %1, %128, %cst_25 {dimension_numbers = #tpu.dot_dimension_numbers<[1], [0], [0], [1], [0, 0, 1, 1], [], []>} : vector<36x144xf32>, vector<144x256xf32>, vector<36x256xf32> -> vector<36x256xf32>
    %130 = vector.extract_strided_slice %129 {offsets = [7, 0], sizes = [1, 256], strides = [1, 1]} : vector<36x256xf32> to vector<1x256xf32>
    %131 = arith.addf %112, %130 : vector<1x256xf32>
    %132 = vector.extract_strided_slice %129 {offsets = [11, 0], sizes = [1, 256], strides = [1, 1]} : vector<36x256xf32> to vector<1x256xf32>
    %133 = arith.addf %114, %132 : vector<1x256xf32>
    %134 = vector.extract_strided_slice %129 {offsets = [15, 0], sizes = [1, 256], strides = [1, 1]} : vector<36x256xf32> to vector<1x256xf32>
    %135 = arith.addf %116, %134 : vector<1x256xf32>
    %136 = vector.extract_strided_slice %129 {offsets = [19, 0], sizes = [1, 256], strides = [1, 1]} : vector<36x256xf32> to vector<1x256xf32>
    %137 = arith.addf %118, %136 : vector<1x256xf32>
    %138 = vector.extract_strided_slice %129 {offsets = [23, 0], sizes = [1, 256], strides = [1, 1]} : vector<36x256xf32> to vector<1x256xf32>
    %139 = arith.addf %120, %138 : vector<1x256xf32>
    %140 = vector.extract_strided_slice %129 {offsets = [27, 0], sizes = [1, 256], strides = [1, 1]} : vector<36x256xf32> to vector<1x256xf32>
    %141 = arith.addf %122, %140 : vector<1x256xf32>
    %142 = vector.extract_strided_slice %129 {offsets = [31, 0], sizes = [1, 256], strides = [1, 1]} : vector<36x256xf32> to vector<1x256xf32>
    %143 = arith.addf %124, %142 : vector<1x256xf32>
    %144 = vector.extract_strided_slice %129 {offsets = [35, 0], sizes = [1, 256], strides = [1, 1]} : vector<36x256xf32> to vector<1x256xf32>
    %145 = arith.addf %126, %144 : vector<1x256xf32>
    %c0_26 = arith.constant 0 : index
    %c0_27 = arith.constant 0 : index
    %146 = vector.load %arg13[%c0_26, %c0_27] : memref<8x256xf32, #tpu.memory_space<vmem>>, vector<1x256xf32>
    tpu.vector_store %arg13[%c0_26, %c0_27], %131 {strides = array<i32>} : memref<8x256xf32, #tpu.memory_space<vmem>>, vector<1x256xf32>,
    %c1_28 = arith.constant 1 : index
    %c0_29 = arith.constant 0 : index
    %147 = vector.load %arg13[%c1_28, %c0_29] : memref<8x256xf32, #tpu.memory_space<vmem>>, vector<1x256xf32>
    tpu.vector_store %arg13[%c1_28, %c0_29], %133 {strides = array<i32>} : memref<8x256xf32, #tpu.memory_space<vmem>>, vector<1x256xf32>,
    %c2_30 = arith.constant 2 : index
    %c0_31 = arith.constant 0 : index
    %148 = vector.load %arg13[%c2_30, %c0_31] : memref<8x256xf32, #tpu.memory_space<vmem>>, vector<1x256xf32>
    tpu.vector_store %arg13[%c2_30, %c0_31], %135 {strides = array<i32>} : memref<8x256xf32, #tpu.memory_space<vmem>>, vector<1x256xf32>,
    %c3_32 = arith.constant 3 : index
    %c0_33 = arith.constant 0 : index
    %149 = vector.load %arg13[%c3_32, %c0_33] : memref<8x256xf32, #tpu.memory_space<vmem>>, vector<1x256xf32>
    tpu.vector_store %arg13[%c3_32, %c0_33], %137 {strides = array<i32>} : memref<8x256xf32, #tpu.memory_space<vmem>>, vector<1x256xf32>,
    %c4_34 = arith.constant 4 : index
    %c0_35 = arith.constant 0 : index
    %150 = vector.load %arg13[%c4_34, %c0_35] : memref<8x256xf32, #tpu.memory_space<vmem>>, vector<1x256xf32>
    tpu.vector_store %arg13[%c4_34, %c0_35], %139 {strides = array<i32>} : memref<8x256xf32, #tpu.memory_space<vmem>>, vector<1x256xf32>,
    %c5_36 = arith.constant 5 : index
    %c0_37 = arith.constant 0 : index
    %151 = vector.load %arg13[%c5_36, %c0_37] : memref<8x256xf32, #tpu.memory_space<vmem>>, vector<1x256xf32>
    tpu.vector_store %arg13[%c5_36, %c0_37], %141 {strides = array<i32>} : memref<8x256xf32, #tpu.memory_space<vmem>>, vector<1x256xf32>,
    %c6_38 = arith.constant 6 : index
    %c0_39 = arith.constant 0 : index
    %152 = vector.load %arg13[%c6_38, %c0_39] : memref<8x256xf32, #tpu.memory_space<vmem>>, vector<1x256xf32>
    tpu.vector_store %arg13[%c6_38, %c0_39], %143 {strides = array<i32>} : memref<8x256xf32, #tpu.memory_space<vmem>>, vector<1x256xf32>,
    %c7_40 = arith.constant 7 : index
    %c0_41 = arith.constant 0 : index
    %153 = vector.load %arg13[%c7_40, %c0_41] : memref<8x256xf32, #tpu.memory_space<vmem>>, vector<1x256xf32>
    tpu.vector_store %arg13[%c7_40, %c0_41], %145 {strides = array<i32>} : memref<8x256xf32, #tpu.memory_space<vmem>>, vector<1x256xf32>,
    %c0_42 = arith.constant 0 : index
    %c0_43 = arith.constant 0 : index
    %154 = vector.load %arg13[%c0_42, %c0_43] : memref<8x256xf32, #tpu.memory_space<vmem>>, vector<8x256xf32>
    %c0_44 = arith.constant 0 : index
    %c0_45 = arith.constant 0 : index
    %155 = vector.load %arg3[%c0_44, %c0_45] : memref<1x256xf32, #tpu.memory_space<vmem>>, vector<1x256xf32>
    %156 = vector.broadcast %155 : vector<1x256xf32> to vector<8x256xf32>
    %157 = arith.addf %154, %156 : vector<8x256xf32>
    %cst_46 = arith.constant 0.000000e+00 : f32
    %158 = vector.broadcast %cst_46 : f32 to vector<8x256xf32>
    %159 = arith.maximumf %157, %158 : vector<8x256xf32>
    %c0_47 = arith.constant 0 : index
    %c0_48 = arith.constant 0 : index
    %c0_49 = arith.constant 0 : index
    %160 = vector.load %arg4[%c0_47, %c0_48, %c0_49] : memref<4x256x192xf32, #tpu.memory_space<vmem>>, vector<1x256x192xf32>
    %161 = vector.shape_cast %160 : vector<1x256x192xf32> to vector<256x192xf32>
    %cst_50 = arith.constant dense<0.000000e+00> : vector<8x192xf32>
    %162 = tpu.matmul %159, %161, %cst_50 {dimension_numbers = #tpu.dot_dimension_numbers<[1], [0], [0], [1], [0, 0, 1, 1], [], []>} : vector<8x256xf32>, vector<256x192xf32>, vector<8x192xf32> -> vector<8x192xf32>
    %163 = vector.extract_strided_slice %162 {offsets = [0, 0], sizes = [1, 192], strides = [1, 1]} : vector<8x192xf32> to vector<1x192xf32>
    %164 = vector.extract_strided_slice %162 {offsets = [2, 0], sizes = [1, 192], strides = [1, 1]} : vector<8x192xf32> to vector<1x192xf32>
    %165 = vector.extract_strided_slice %162 {offsets = [4, 0], sizes = [1, 192], strides = [1, 1]} : vector<8x192xf32> to vector<1x192xf32>
    %c1_51 = arith.constant 1 : index
    %c0_52 = arith.constant 0 : index
    %c0_53 = arith.constant 0 : index
    %166 = vector.load %arg4[%c1_51, %c0_52, %c0_53] : memref<4x256x192xf32, #tpu.memory_space<vmem>>, vector<1x256x192xf32>
    %167 = vector.shape_cast %166 : vector<1x256x192xf32> to vector<256x192xf32>
    %cst_54 = arith.constant dense<0.000000e+00> : vector<8x192xf32>
    %168 = tpu.matmul %159, %167, %cst_54 {dimension_numbers = #tpu.dot_dimension_numbers<[1], [0], [0], [1], [0, 0, 1, 1], [], []>} : vector<8x256xf32>, vector<256x192xf32>, vector<8x192xf32> -> vector<8x192xf32>
    %169 = vector.extract_strided_slice %168 {offsets = [1, 0], sizes = [1, 192], strides = [1, 1]} : vector<8x192xf32> to vector<1x192xf32>
    %170 = arith.addf %163, %169 : vector<1x192xf32>
    %171 = vector.extract_strided_slice %168 {offsets = [3, 0], sizes = [1, 192], strides = [1, 1]} : vector<8x192xf32> to vector<1x192xf32>
    %172 = arith.addf %164, %171 : vector<1x192xf32>
    %173 = vector.extract_strided_slice %168 {offsets = [5, 0], sizes = [1, 192], strides = [1, 1]} : vector<8x192xf32> to vector<1x192xf32>
    %174 = arith.addf %165, %173 : vector<1x192xf32>
    %c2_55 = arith.constant 2 : index
    %c0_56 = arith.constant 0 : index
    %c0_57 = arith.constant 0 : index
    %175 = vector.load %arg4[%c2_55, %c0_56, %c0_57] : memref<4x256x192xf32, #tpu.memory_space<vmem>>, vector<1x256x192xf32>
    %176 = vector.shape_cast %175 : vector<1x256x192xf32> to vector<256x192xf32>
    %cst_58 = arith.constant dense<0.000000e+00> : vector<8x192xf32>
    %177 = tpu.matmul %159, %176, %cst_58 {dimension_numbers = #tpu.dot_dimension_numbers<[1], [0], [0], [1], [0, 0, 1, 1], [], []>} : vector<8x256xf32>, vector<256x192xf32>, vector<8x192xf32> -> vector<8x192xf32>
    %178 = vector.extract_strided_slice %177 {offsets = [2, 0], sizes = [1, 192], strides = [1, 1]} : vector<8x192xf32> to vector<1x192xf32>
    %179 = arith.addf %170, %178 : vector<1x192xf32>
    %180 = vector.extract_strided_slice %177 {offsets = [4, 0], sizes = [1, 192], strides = [1, 1]} : vector<8x192xf32> to vector<1x192xf32>
    %181 = arith.addf %172, %180 : vector<1x192xf32>
    %182 = vector.extract_strided_slice %177 {offsets = [6, 0], sizes = [1, 192], strides = [1, 1]} : vector<8x192xf32> to vector<1x192xf32>
    %183 = arith.addf %174, %182 : vector<1x192xf32>
    %c3_59 = arith.constant 3 : index
    %c0_60 = arith.constant 0 : index
    %c0_61 = arith.constant 0 : index
    %184 = vector.load %arg4[%c3_59, %c0_60, %c0_61] : memref<4x256x192xf32, #tpu.memory_space<vmem>>, vector<1x256x192xf32>
    %185 = vector.shape_cast %184 : vector<1x256x192xf32> to vector<256x192xf32>
    %cst_62 = arith.constant dense<0.000000e+00> : vector<8x192xf32>
    %186 = tpu.matmul %159, %185, %cst_62 {dimension_numbers = #tpu.dot_dimension_numbers<[1], [0], [0], [1], [0, 0, 1, 1], [], []>} : vector<8x256xf32>, vector<256x192xf32>, vector<8x192xf32> -> vector<8x192xf32>
    %187 = vector.extract_strided_slice %186 {offsets = [3, 0], sizes = [1, 192], strides = [1, 1]} : vector<8x192xf32> to vector<1x192xf32>
    %188 = arith.addf %179, %187 : vector<1x192xf32>
    %189 = vector.extract_strided_slice %186 {offsets = [5, 0], sizes = [1, 192], strides = [1, 1]} : vector<8x192xf32> to vector<1x192xf32>
    %190 = arith.addf %181, %189 : vector<1x192xf32>
    %191 = vector.extract_strided_slice %186 {offsets = [7, 0], sizes = [1, 192], strides = [1, 1]} : vector<8x192xf32> to vector<1x192xf32>
    %192 = arith.addf %183, %191 : vector<1x192xf32>
    %c0_63 = arith.constant 0 : index
    %c0_64 = arith.constant 0 : index
    %193 = vector.load %arg14[%c0_63, %c0_64] : memref<3x192xf32, #tpu.memory_space<vmem>>, vector<1x192xf32>
    tpu.vector_store %arg14[%c0_63, %c0_64], %188 {strides = array<i32>} : memref<3x192xf32, #tpu.memory_space<vmem>>, vector<1x192xf32>,
    %c1_65 = arith.constant 1 : index
    %c0_66 = arith.constant 0 : index
    %194 = vector.load %arg14[%c1_65, %c0_66] : memref<3x192xf32, #tpu.memory_space<vmem>>, vector<1x192xf32>
    tpu.vector_store %arg14[%c1_65, %c0_66], %190 {strides = array<i32>} : memref<3x192xf32, #tpu.memory_space<vmem>>, vector<1x192xf32>,
    %c2_67 = arith.constant 2 : index
    %c0_68 = arith.constant 0 : index
    %195 = vector.load %arg14[%c2_67, %c0_68] : memref<3x192xf32, #tpu.memory_space<vmem>>, vector<1x192xf32>
    tpu.vector_store %arg14[%c2_67, %c0_68], %192 {strides = array<i32>} : memref<3x192xf32, #tpu.memory_space<vmem>>, vector<1x192xf32>,
    %c0_69 = arith.constant 0 : index
    %c0_70 = arith.constant 0 : index
    %196 = vector.load %arg14[%c0_69, %c0_70] : memref<3x192xf32, #tpu.memory_space<vmem>>, vector<3x192xf32>
    %c0_71 = arith.constant 0 : index
    %c0_72 = arith.constant 0 : index
    %197 = vector.load %arg5[%c0_71, %c0_72] : memref<1x192xf32, #tpu.memory_space<vmem>>, vector<1x192xf32>
    %198 = vector.broadcast %197 : vector<1x192xf32> to vector<3x192xf32>
    %199 = arith.addf %196, %198 : vector<3x192xf32>
    %cst_73 = arith.constant 0.000000e+00 : f32
    %200 = vector.broadcast %cst_73 : f32 to vector<3x192xf32>
    %201 = arith.maximumf %199, %200 : vector<3x192xf32>
    %c0_74 = arith.constant 0 : index
    %c0_75 = arith.constant 0 : index
    %c0_76 = arith.constant 0 : index
    %202 = vector.load %arg6[%c0_74, %c0_75, %c0_76] : memref<3x192x64xf32, #tpu.memory_space<vmem>>, vector<1x192x64xf32>
    %203 = vector.shape_cast %202 : vector<1x192x64xf32> to vector<192x64xf32>
    %cst_77 = arith.constant dense<0.000000e+00> : vector<3x64xf32>
    %204 = tpu.matmul %201, %203, %cst_77 {dimension_numbers = #tpu.dot_dimension_numbers<[1], [0], [0], [1], [0, 0, 1, 1], [], []>} : vector<3x192xf32>, vector<192x64xf32>, vector<3x64xf32> -> vector<3x64xf32>
    %205 = vector.extract_strided_slice %204 {offsets = [0, 0], sizes = [1, 64], strides = [1, 1]} : vector<3x64xf32> to vector<1x64xf32>
    %c1_78 = arith.constant 1 : index
    %c0_79 = arith.constant 0 : index
    %c0_80 = arith.constant 0 : index
    %206 = vector.load %arg6[%c1_78, %c0_79, %c0_80] : memref<3x192x64xf32, #tpu.memory_space<vmem>>, vector<1x192x64xf32>
    %207 = vector.shape_cast %206 : vector<1x192x64xf32> to vector<192x64xf32>
    %cst_81 = arith.constant dense<0.000000e+00> : vector<3x64xf32>
    %208 = tpu.matmul %201, %207, %cst_81 {dimension_numbers = #tpu.dot_dimension_numbers<[1], [0], [0], [1], [0, 0, 1, 1], [], []>} : vector<3x192xf32>, vector<192x64xf32>, vector<3x64xf32> -> vector<3x64xf32>
    %209 = vector.extract_strided_slice %208 {offsets = [1, 0], sizes = [1, 64], strides = [1, 1]} : vector<3x64xf32> to vector<1x64xf32>
    %210 = arith.addf %205, %209 : vector<1x64xf32>
    %c2_82 = arith.constant 2 : index
    %c0_83 = arith.constant 0 : index
    %c0_84 = arith.constant 0 : index
    %211 = vector.load %arg6[%c2_82, %c0_83, %c0_84] : memref<3x192x64xf32, #tpu.memory_space<vmem>>, vector<1x192x64xf32>
    %212 = vector.shape_cast %211 : vector<1x192x64xf32> to vector<192x64xf32>
    %cst_85 = arith.constant dense<0.000000e+00> : vector<3x64xf32>
    %213 = tpu.matmul %201, %212, %cst_85 {dimension_numbers = #tpu.dot_dimension_numbers<[1], [0], [0], [1], [0, 0, 1, 1], [], []>} : vector<3x192xf32>, vector<192x64xf32>, vector<3x64xf32> -> vector<3x64xf32>
    %214 = vector.extract_strided_slice %213 {offsets = [2, 0], sizes = [1, 64], strides = [1, 1]} : vector<3x64xf32> to vector<1x64xf32>
    %215 = arith.addf %210, %214 : vector<1x64xf32>
    %c0_86 = arith.constant 0 : index
    %c0_87 = arith.constant 0 : index
    %216 = vector.load %arg15[%c0_86, %c0_87] : memref<1x64xf32, #tpu.memory_space<vmem>>, vector<1x64xf32>
    tpu.vector_store %arg15[%c0_86, %c0_87], %215 {strides = array<i32>} : memref<1x64xf32, #tpu.memory_space<vmem>>, vector<1x64xf32>,
    %c0_88 = arith.constant 0 : index
    %c0_89 = arith.constant 0 : index
    %217 = vector.load %arg15[%c0_88, %c0_89] : memref<1x64xf32, #tpu.memory_space<vmem>>, vector<1x64xf32>
    %c0_90 = arith.constant 0 : index
    %c0_91 = arith.constant 0 : index
    %218 = vector.load %arg7[%c0_90, %c0_91] : memref<1x64xf32, #tpu.memory_space<vmem>>, vector<1x64xf32>
    %219 = arith.addf %217, %218 : vector<1x64xf32>
    %cst_92 = arith.constant 0.000000e+00 : f32
    %220 = vector.broadcast %cst_92 : f32 to vector<1x64xf32>
    %221 = arith.maximumf %219, %220 : vector<1x64xf32>
    %c0_93 = arith.constant 0 : index
    %c0_94 = arith.constant 0 : index
    %c0_95 = arith.constant 0 : index
    %222 = vector.load %arg8[%c0_93, %c0_94, %c0_95] : memref<1x64x512xf32, #tpu.memory_space<vmem>>, vector<1x64x512xf32>
    %223 = vector.shape_cast %222 : vector<1x64x512xf32> to vector<64x512xf32>
    %cst_96 = arith.constant dense<0.000000e+00> : vector<1x512xf32>
    %224 = tpu.matmul %221, %223, %cst_96 {dimension_numbers = #tpu.dot_dimension_numbers<[1], [0], [0], [1], [0, 0, 1, 1], [], []>} : vector<1x64xf32>, vector<64x512xf32>, vector<1x512xf32> -> vector<1x512xf32>
    %c0_97 = arith.constant 0 : index
    %c0_98 = arith.constant 0 : index
    %225 = vector.load %arg9[%c0_97, %c0_98] : memref<1x512xf32, #tpu.memory_space<vmem>>, vector<1x512xf32>
    %226 = arith.addf %224, %225 : vector<1x512xf32>
    %cst_99 = arith.constant 0.000000e+00 : f32
    %227 = vector.broadcast %cst_99 : f32 to vector<1x512xf32>
    %228 = arith.maximumf %226, %227 : vector<1x512xf32>
    %c0_100 = arith.constant 0 : index
    %c0_101 = arith.constant 0 : index
    %229 = vector.load %arg10[%c0_100, %c0_101] : memref<512x6xf32, #tpu.memory_space<vmem>>, vector<512x6xf32>
    %cst_102 = arith.constant dense<0.000000e+00> : vector<1x6xf32>
    %230 = tpu.matmul %228, %229, %cst_102 {dimension_numbers = #tpu.dot_dimension_numbers<[1], [0], [0], [1], [0, 0, 1, 1], [], []>} : vector<1x512xf32>, vector<512x6xf32>, vector<1x6xf32> -> vector<1x6xf32>
    %c0_103 = arith.constant 0 : index
    %c0_104 = arith.constant 0 : index
    %231 = vector.load %arg11[%c0_103, %c0_104] : memref<1x6xf32, #tpu.memory_space<vmem>>, vector<1x6xf32>
    %232 = arith.addf %230, %231 : vector<1x6xf32>
    %c0_105 = arith.constant 0 : index
    %c0_106 = arith.constant 0 : index
    %c0_107 = arith.constant 0 : index
    %233 = vector.load %arg12[%c0_105, %c0_106, %c0_107] : memref<1x1x6xf32, #tpu.memory_space<vmem>>, vector<1x1x6xf32>
    %234 = vector.shape_cast %233 : vector<1x1x6xf32> to vector<1x6xf32>
    %235 = vector.shape_cast %232 : vector<1x6xf32> to vector<1x1x6xf32>
    tpu.vector_store %arg12[%c0_105, %c0_106, %c0_107], %235 {strides = array<i32>} : memref<1x1x6xf32, #tpu.memory_space<vmem>>, vector<1x1x6xf32>,
    return
  }
  func.func @transform_0(%arg0: i32) -> (i32, i32, i32) {
    %c0_i32 = arith.constant 0 : i32
    %c0_i32_0 = arith.constant 0 : i32
    %c0_i32_1 = arith.constant 0 : i32
    return %arg0, %c0_i32, %c0_i32_0 : i32, i32, i32
  }
  func.func @transform_1(%arg0: i32) -> (i32, i32, i32) {
    %c0_i32 = arith.constant 0 : i32
    %c0_i32_0 = arith.constant 0 : i32
    %c0_i32_1 = arith.constant 0 : i32
    %c0_i32_2 = arith.constant 0 : i32
    return %c0_i32, %c0_i32_0, %c0_i32_1 : i32, i32, i32
  }
  func.func @transform_2(%arg0: i32) -> (i32, i32) {
    %c0_i32 = arith.constant 0 : i32
    %c0_i32_0 = arith.constant 0 : i32
    %c0_i32_1 = arith.constant 0 : i32
    return %c0_i32, %c0_i32_0 : i32, i32
  }
  func.func @transform_3(%arg0: i32) -> (i32, i32, i32) {
    %c0_i32 = arith.constant 0 : i32
    %c0_i32_0 = arith.constant 0 : i32
    %c0_i32_1 = arith.constant 0 : i32
    %c0_i32_2 = arith.constant 0 : i32
    return %c0_i32, %c0_i32_0, %c0_i32_1 : i32, i32, i32
  }
  func.func @transform_4(%arg0: i32) -> (i32, i32) {
    %c0_i32 = arith.constant 0 : i32
    %c0_i32_0 = arith.constant 0 : i32
    %c0_i32_1 = arith.constant 0 : i32
    return %c0_i32, %c0_i32_0 : i32, i32
  }
  func.func @transform_5(%arg0: i32) -> (i32, i32, i32) {
    %c0_i32 = arith.constant 0 : i32
    %c0_i32_0 = arith.constant 0 : i32
    %c0_i32_1 = arith.constant 0 : i32
    %c0_i32_2 = arith.constant 0 : i32
    return %c0_i32, %c0_i32_0, %c0_i32_1 : i32, i32, i32
  }
  func.func @transform_6(%arg0: i32) -> (i32, i32) {
    %c0_i32 = arith.constant 0 : i32
    %c0_i32_0 = arith.constant 0 : i32
    %c0_i32_1 = arith.constant 0 : i32
    return %c0_i32, %c0_i32_0 : i32, i32
  }
  func.func @transform_7(%arg0: i32) -> (i32, i32, i32) {
    %c0_i32 = arith.constant 0 : i32
    %c0_i32_0 = arith.constant 0 : i32
    %c0_i32_1 = arith.constant 0 : i32
    %c0_i32_2 = arith.constant 0 : i32
    return %c0_i32, %c0_i32_0, %c0_i32_1 : i32, i32, i32
  }
  func.func @transform_8(%arg0: i32) -> (i32, i32) {
    %c0_i32 = arith.constant 0 : i32
    %c0_i32_0 = arith.constant 0 : i32
    %c0_i32_1 = arith.constant 0 : i32
    return %c0_i32, %c0_i32_0 : i32, i32
  }
  func.func @transform_9(%arg0: i32) -> (i32, i32) {
    %c0_i32 = arith.constant 0 : i32
    %c0_i32_0 = arith.constant 0 : i32
    %c0_i32_1 = arith.constant 0 : i32
    return %c0_i32, %c0_i32_0 : i32, i32
  }
  func.func @transform_10(%arg0: i32) -> (i32, i32) {
    %c0_i32 = arith.constant 0 : i32
    %c0_i32_0 = arith.constant 0 : i32
    %c0_i32_1 = arith.constant 0 : i32
    return %c0_i32, %c0_i32_0 : i32, i32
  }
  func.func @transform_11(%arg0: i32) -> (i32, i32, i32) {
    %c0_i32 = arith.constant 0 : i32
    %c0_i32_0 = arith.constant 0 : i32
    %c0_i32_1 = arith.constant 0 : i32
    return %arg0, %c0_i32, %c0_i32_0 : i32, i32, i32
  }
}

</mosaic_0001>

<llo_original>
// kernel: fwd.1
$region0: #{fwd.1}
  #allocation0 [shape = 'u32[]', space=smem, size = 0x4, offset = 0x4, fixed_abs, tag = 'smem constant byte address 0x4 - core index']
  #allocation1 [shape = 'u32[144,128]{1,0:T(1,128)}', space=vmem, size = 0x12000, scoped, tag = 'internal scratch']
  #allocation2 [shape = 'f32[8,256]{1,0:T(8,128)}', space=vmem, size = 0x2000, scoped, tag = 'scratch operand']
  #allocation3 [shape = 'f32[3,192]{1,0:T(4,128)}', space=vmem, size = 0x1000, scoped, tag = 'scratch operand']
  #allocation4 [shape = 'f32[1,64]{1,0:T(1,128)}', space=vmem, size = 0x200, scoped, tag = 'scratch operand']
  %s0 = inlined_call_operand.vmem [shape: f32[2,36,144], index: 0, kind: input, shape index: {}]
  %s1 = inlined_call_operand.vmem [shape: f32[8,144,256], index: 1, kind: input, shape index: {}]
  %s2 = inlined_call_operand.vmem [shape: f32[1,256], index: 2, kind: input, shape index: {}]
  %s3 = inlined_call_operand.vmem [shape: f32[4,256,192], index: 3, kind: input, shape index: {}]
  %s4 = inlined_call_operand.vmem [shape: f32[1,192], index: 4, kind: input, shape index: {}]
  %s5 = inlined_call_operand.vmem [shape: f32[3,192,64], index: 5, kind: input, shape index: {}]
  %s6 = inlined_call_operand.vmem [shape: f32[1,64], index: 6, kind: input, shape index: {}]
  %s7 = inlined_call_operand.vmem [shape: f32[1,64,512], index: 7, kind: input, shape index: {}]
  %s8 = inlined_call_operand.vmem [shape: f32[1,512], index: 8, kind: input, shape index: {}]
  %s9 = inlined_call_operand.vmem [shape: f32[512,6], index: 9, kind: input, shape index: {}]
  %s10 = inlined_call_operand.vmem [shape: f32[1,6], index: 10, kind: input, shape index: {}]
  %s11 = inlined_call_operand.hbm [shape: f32[2,1,6], index: 11, kind: output, shape index: {}]
  %s12 = sld [smem:[#allocation0]]
  $region77: #{fwd.1} parent=0
    _
  %s14 = ssub.s32 1, %s12
  %s15 = scalar_select 0, %s14, %s12
  $region1: #{fwd.1} parent=0
    #allocation5 [shape = 'u8[1024]{0}', space=vmem, size = 0x400, scoped, tag = 'output window, operand 0']
    #allocation6 [shape = 's32[2]{0}', space=sflag, size = 0x8, scoped, tag = 'scoped memory for fwd.1']
    %16 = vsyncpa [#allocation6], 0
    %s17 = scalar_lea.sflag [#allocation6], 1
    %18 = vsyncpa %s17, 0
    loop: start=0, step=1, limit=4
    $region2: #{fwd.1} parent=1 // loop_pre_header
      _
    $region3: #{fwd.1} parent=1 // loop_header
      %s20 = sphi 0, %s24
      %p21 = scmp.ge.s32.totalorder %s20, 4
      %s30 = sphi 0, %s32
      %s33 = sphi 0, %s30
      %s34 = sphi 0, %s33
      %s50 = sphi 0, %s34
      %s54 = sphi 0, %s54
      %s56 = sphi 0, %s54
      %s57 = sphi 0, %s56
      %s71 = sphi 0, %s57
      %s75 = sphi 0, %s75
      %s77 = sphi 0, %s75
      %s78 = sphi 0, %s77
      %s92 = sphi 0, %s78
      %s96 = sphi 0, %s96
      %s98 = sphi 0, %s96
      %s99 = sphi 0, %s98
      %s113 = sphi 0, %s99
      %s117 = sphi 0, %s117
      %s119 = sphi 0, %s117
      %s120 = sphi 0, %s119
      %s134 = sphi 0, %s120
      %s138 = sphi 0, %s138
      %s140 = sphi 0, %s138
      %s141 = sphi 0, %s140
      %s155 = sphi 0, %s141
      %s159 = sphi 0, %s159
      %s161 = sphi 0, %s159
      %s162 = sphi 0, %s161
      %s176 = sphi 0, %s162
      %s180 = sphi 0, %s180
      %s182 = sphi 0, %s180
      %s183 = sphi 0, %s182
      %s197 = sphi 0, %s183
      %s201 = sphi 0, %s201
      %s203 = sphi 0, %s201
      %s204 = sphi 0, %s203
      %s218 = sphi 0, %s204
      %s222 = sphi 0, %s222
      %s224 = sphi 0, %s222
      %s225 = sphi 0, %s224
      %s239 = sphi 0, %s225
      %s243 = sphi 0, %s243
      %s245 = sphi 0, %s243
      %s246 = sphi 0, %s245
      %s260 = sphi 0, %s246
      %s266 = sphi 0, %s268
      %s269 = sphi 0, %s266
      %s270 = sphi 0, %s269
      %s286 = sphi 0, %s270
    $region4: #{fwd.1} parent=1 // loop_header_branch
      %23 = sbr.rel (%p21) target = $region8
    $region5: #{fwd.1} parent=1 // loop_body
      %s25 = ssub.s32 %s20, 1
      %s26 = ssub.s32 %s20, 2
      %s27 = sadd.s32 %s20, 1
      %s28 = ssub.s32 %s20, %s27
      %p29 = scmp.eq.s32.totalorder %s28, 0
      %s31 = sadd.s32 %s30, 1
      %s32 = scalar_select %p29, %s30, %s31
      %p35 = pneg %p29
      %p36 = scmp.eq.s32.totalorder %s20, 1
      %p37 = por %p35, %p36
      %p38 = scmp.ne.s32.totalorder %s30, %s33
      %p39 = scmp.eq.s32.totalorder %s20, 0
      %p40 = por %p38, %p39
      %p41 = scmp.ne.s32.totalorder %s30, %s33
      %p42 = scmp.eq.s32.totalorder %s25, 1
      %p43 = por %p41, %p42
      %p44 = scmp.ne.s32.totalorder %s33, %s34
      %p45 = scmp.eq.s32.totalorder %s25, 0
      %p46 = por %p44, %p45
      %p47 = scmp.ne.s32.totalorder %s33, %s34
      %p48 = scmp.eq.s32.totalorder %s26, 1
      %p49 = por %p47, %p48
      %p51 = scmp.ne.s32.totalorder %s34, %s50
      %p52 = scmp.eq.s32.totalorder %s26, 0
      %p53 = por %p51, %p52
      %s55 = sadd.s32 %s54, 1
      %p58 = scmp.eq.s32.totalorder %s20, 1
      %p59 = scmp.ne.s32.totalorder %s54, %s56
      %p60 = scmp.eq.s32.totalorder %s20, 0
      %p61 = por %p59, %p60
      %p62 = scmp.ne.s32.totalorder %s54, %s56
      %p63 = scmp.eq.s32.totalorder %s25, 1
      %p64 = por %p62, %p63
      %p65 = scmp.ne.s32.totalorder %s56, %s57
      %p66 = scmp.eq.s32.totalorder %s25, 0
      %p67 = por %p65, %p66
      %p68 = scmp.ne.s32.totalorder %s56, %s57
      %p69 = scmp.eq.s32.totalorder %s26, 1
      %p70 = por %p68, %p69
      %p72 = scmp.ne.s32.totalorder %s57, %s71
      %p73 = scmp.eq.s32.totalorder %s26, 0
      %p74 = por %p72, %p73
      %s76 = sadd.s32 %s75, 1
      %p79 = scmp.eq.s32.totalorder %s20, 1
      %p80 = scmp.ne.s32.totalorder %s75, %s77
      %p81 = scmp.eq.s32.totalorder %s20, 0
      %p82 = por %p80, %p81
      %p83 = scmp.ne.s32.totalorder %s75, %s77
      %p84 = scmp.eq.s32.totalorder %s25, 1
      %p85 = por %p83, %p84
      %p86 = scmp.ne.s32.totalorder %s77, %s78
      %p87 = scmp.eq.s32.totalorder %s25, 0
      %p88 = por %p86, %p87
      %p89 = scmp.ne.s32.totalorder %s77, %s78
      %p90 = scmp.eq.s32.totalorder %s26, 1
      %p91 = por %p89, %p90
      %p93 = scmp.ne.s32.totalorder %s78, %s92
      %p94 = scmp.eq.s32.totalorder %s26, 0
      %p95 = por %p93, %p94
      %s97 = sadd.s32 %s96, 1
      %p100 = scmp.eq.s32.totalorder %s20, 1
      %p101 = scmp.ne.s32.totalorder %s96, %s98
      %p102 = scmp.eq.s32.totalorder %s20, 0
      %p103 = por %p101, %p102
      %p104 = scmp.ne.s32.totalorder %s96, %s98
      %p105 = scmp.eq.s32.totalorder %s25, 1
      %p106 = por %p104, %p105
      %p107 = scmp.ne.s32.totalorder %s98, %s99
      %p108 = scmp.eq.s32.totalorder %s25, 0
      %p109 = por %p107, %p108
      %p110 = scmp.ne.s32.totalorder %s98, %s99
      %p111 = scmp.eq.s32.totalorder %s26, 1
      %p112 = por %p110, %p111
      %p114 = scmp.ne.s32.totalorder %s99, %s113
      %p115 = scmp.eq.s32.totalorder %s26, 0
      %p116 = por %p114, %p115
      %s118 = sadd.s32 %s117, 1
      %p121 = scmp.eq.s32.totalorder %s20, 1
      %p122 = scmp.ne.s32.totalorder %s117, %s119
      %p123 = scmp.eq.s32.totalorder %s20, 0
      %p124 = por %p122, %p123
      %p125 = scmp.ne.s32.totalorder %s117, %s119
      %p126 = scmp.eq.s32.totalorder %s25, 1
      %p127 = por %p125, %p126
      %p128 = scmp.ne.s32.totalorder %s119, %s120
      %p129 = scmp.eq.s32.totalorder %s25, 0
      %p130 = por %p128, %p129
      %p131 = scmp.ne.s32.totalorder %s119, %s120
      %p132 = scmp.eq.s32.totalorder %s26, 1
      %p133 = por %p131, %p132
      %p135 = scmp.ne.s32.totalorder %s120, %s134
      %p136 = scmp.eq.s32.totalorder %s26, 0
      %p137 = por %p135, %p136
      %s139 = sadd.s32 %s138, 1
      %p142 = scmp.eq.s32.totalorder %s20, 1
      %p143 = scmp.ne.s32.totalorder %s138, %s140
      %p144 = scmp.eq.s32.totalorder %s20, 0
      %p145 = por %p143, %p144
      %p146 = scmp.ne.s32.totalorder %s138, %s140
      %p147 = scmp.eq.s32.totalorder %s25, 1
      %p148 = por %p146, %p147
      %p149 = scmp.ne.s32.totalorder %s140, %s141
      %p150 = scmp.eq.s32.totalorder %s25, 0
      %p151 = por %p149, %p150
      %p152 = scmp.ne.s32.totalorder %s140, %s141
      %p153 = scmp.eq.s32.totalorder %s26, 1
      %p154 = por %p152, %p153
      %p156 = scmp.ne.s32.totalorder %s141, %s155
      %p157 = scmp.eq.s32.totalorder %s26, 0
      %p158 = por %p156, %p157
      %s160 = sadd.s32 %s159, 1
      %p163 = scmp.eq.s32.totalorder %s20, 1
      %p164 = scmp.ne.s32.totalorder %s159, %s161
      %p165 = scmp.eq.s32.totalorder %s20, 0
      %p166 = por %p164, %p165
      %p167 = scmp.ne.s32.totalorder %s159, %s161
      %p168 = scmp.eq.s32.totalorder %s25, 1
      %p169 = por %p167, %p168
      %p170 = scmp.ne.s32.totalorder %s161, %s162
      %p171 = scmp.eq.s32.totalorder %s25, 0
      %p172 = por %p170, %p171
      %p173 = scmp.ne.s32.totalorder %s161, %s162
      %p174 = scmp.eq.s32.totalorder %s26, 1
      %p175 = por %p173, %p174
      %p177 = scmp.ne.s32.totalorder %s162, %s176
      %p178 = scmp.eq.s32.totalorder %s26, 0
      %p179 = por %p177, %p178
      %s181 = sadd.s32 %s180, 1
      %p184 = scmp.eq.s32.totalorder %s20, 1
      %p185 = scmp.ne.s32.totalorder %s180, %s182
      %p186 = scmp.eq.s32.totalorder %s20, 0
      %p187 = por %p185, %p186
      %p188 = scmp.ne.s32.totalorder %s180, %s182
      %p189 = scmp.eq.s32.totalorder %s25, 1
      %p190 = por %p188, %p189
      %p191 = scmp.ne.s32.totalorder %s182, %s183
      %p192 = scmp.eq.s32.totalorder %s25, 0
      %p193 = por %p191, %p192
      %p194 = scmp.ne.s32.totalorder %s182, %s183
      %p195 = scmp.eq.s32.totalorder %s26, 1
      %p196 = por %p194, %p195
      %p198 = scmp.ne.s32.totalorder %s183, %s197
      %p199 = scmp.eq.s32.totalorder %s26, 0
      %p200 = por %p198, %p199
      %s202 = sadd.s32 %s201, 1
      %p205 = scmp.eq.s32.totalorder %s20, 1
      %p206 = scmp.ne.s32.totalorder %s201, %s203
      %p207 = scmp.eq.s32.totalorder %s20, 0
      %p208 = por %p206, %p207
      %p209 = scmp.ne.s32.totalorder %s201, %s203
      %p210 = scmp.eq.s32.totalorder %s25, 1
      %p211 = por %p209, %p210
      %p212 = scmp.ne.s32.totalorder %s203, %s204
      %p213 = scmp.eq.s32.totalorder %s25, 0
      %p214 = por %p212, %p213
      %p215 = scmp.ne.s32.totalorder %s203, %s204
      %p216 = scmp.eq.s32.totalorder %s26, 1
      %p217 = por %p215, %p216
      %p219 = scmp.ne.s32.totalorder %s204, %s218
      %p220 = scmp.eq.s32.totalorder %s26, 0
      %p221 = por %p219, %p220
      %s223 = sadd.s32 %s222, 1
      %p226 = scmp.eq.s32.totalorder %s20, 1
      %p227 = scmp.ne.s32.totalorder %s222, %s224
      %p228 = scmp.eq.s32.totalorder %s20, 0
      %p229 = por %p227, %p228
      %p230 = scmp.ne.s32.totalorder %s222, %s224
      %p231 = scmp.eq.s32.totalorder %s25, 1
      %p232 = por %p230, %p231
      %p233 = scmp.ne.s32.totalorder %s224, %s225
      %p234 = scmp.eq.s32.totalorder %s25, 0
      %p235 = por %p233, %p234
      %p236 = scmp.ne.s32.totalorder %s224, %s225
      %p237 = scmp.eq.s32.totalorder %s26, 1
      %p238 = por %p236, %p237
      %p240 = scmp.ne.s32.totalorder %s225, %s239
      %p241 = scmp.eq.s32.totalorder %s26, 0
      %p242 = por %p240, %p241
      %s244 = sadd.s32 %s243, 1
      %p247 = scmp.eq.s32.totalorder %s20, 1
      %p248 = scmp.ne.s32.totalorder %s243, %s245
      %p249 = scmp.eq.s32.totalorder %s20, 0
      %p250 = por %p248, %p249
      %p251 = scmp.ne.s32.totalorder %s243, %s245
      %p252 = scmp.eq.s32.totalorder %s25, 1
      %p253 = por %p251, %p252
      %p254 = scmp.ne.s32.totalorder %s245, %s246
      %p255 = scmp.eq.s32.totalorder %s25, 0
      %p256 = por %p254, %p255
      %p257 = scmp.ne.s32.totalorder %s245, %s246
      %p258 = scmp.eq.s32.totalorder %s26, 1
      %p259 = por %p257, %p258
      %p261 = scmp.ne.s32.totalorder %s246, %s260
      %p262 = scmp.eq.s32.totalorder %s26, 0
      %p263 = por %p261, %p262
      %s264 = ssub.s32 %s20, %s27
      %p265 = scmp.eq.s32.totalorder %s264, 0
      %s267 = sadd.s32 %s266, 1
      %s268 = scalar_select %p265, %s266, %s267
      %p271 = pneg %p265
      %p272 = scmp.eq.s32.totalorder %s20, 1
      %p273 = por %p271, %p272
      %p274 = scmp.ne.s32.totalorder %s266, %s269
      %p275 = scmp.eq.s32.totalorder %s20, 0
      %p276 = por %p274, %p275
      %p277 = scmp.ne.s32.totalorder %s266, %s269
      %p278 = scmp.eq.s32.totalorder %s25, 1
      %p279 = por %p277, %p278
      %p280 = scmp.ne.s32.totalorder %s269, %s270
      %p281 = scmp.eq.s32.totalorder %s25, 0
      %p282 = por %p280, %p281
      %p283 = scmp.ne.s32.totalorder %s269, %s270
      %p284 = scmp.eq.s32.totalorder %s26, 1
      %p285 = por %p283, %p284
      %p287 = scmp.ne.s32.totalorder %s270, %s286
      %p288 = scmp.eq.s32.totalorder %s26, 0
      %p289 = por %p287, %p288
      %p290 = scmp.le.s32.totalorder 1, %s20
      %p291 = scmp.lt.s32.totalorder %s20, 3
      %p292 = pnand %p290, %p291
      %p293 = pneg %p292
      // Predicated region
      $region9: #{fwd.1} parent=5 // pred_check
        _
      $region10: #{fwd.1} parent=5 // pred_check_branch
        %295 = sbr.rel (%p292) target = $region12
      $region11: #{fwd.1} parent=5 // pred_region
        %s296 = ssub.s32 %s20, 1
        // Predicated region
        $region13: #{fwd.1} parent=11 // pred_check
          %p297 = pneg %p67
        $region14: #{fwd.1} parent=11 // pred_check_branch
          %299 = sbr.rel (%p297) target = $region16
        $region15: #{fwd.1} parent=11 // pred_region
          _
        $region16: #{fwd.1} parent=11 // pred_fallthru
          _
        // Predicated region
        $region17: #{fwd.1} parent=11 // pred_check
          %p300 = pneg %p88
        $region18: #{fwd.1} parent=11 // pred_check_branch
          %302 = sbr.rel (%p300) target = $region20
        $region19: #{fwd.1} parent=11 // pred_region
          _
        $region20: #{fwd.1} parent=11 // pred_fallthru
          _
        // Predicated region
        $region21: #{fwd.1} parent=11 // pred_check
          %p303 = pneg %p109
        $region22: #{fwd.1} parent=11 // pred_check_branch
          %305 = sbr.rel (%p303) target = $region24
        $region23: #{fwd.1} parent=11 // pred_region
          _
        $region24: #{fwd.1} parent=11 // pred_fallthru
          _
        // Predicated region
        $region25: #{fwd.1} parent=11 // pred_check
          %p306 = pneg %p130
        $region26: #{fwd.1} parent=11 // pred_check_branch
          %308 = sbr.rel (%p306) target = $region28
        $region27: #{fwd.1} parent=11 // pred_region
          _
        $region28: #{fwd.1} parent=11 // pred_fallthru
          _
        // Predicated region
        $region29: #{fwd.1} parent=11 // pred_check
          %p309 = pneg %p151
        $region30: #{fwd.1} parent=11 // pred_check_branch
          %311 = sbr.rel (%p309) target = $region32
        $region31: #{fwd.1} parent=11 // pred_region
          _
        $region32: #{fwd.1} parent=11 // pred_fallthru
          _
        // Predicated region
        $region33: #{fwd.1} parent=11 // pred_check
          %p312 = pneg %p172
        $region34: #{fwd.1} parent=11 // pred_check_branch
          %314 = sbr.rel (%p312) target = $region36
        $region35: #{fwd.1} parent=11 // pred_region
          _
        $region36: #{fwd.1} parent=11 // pred_fallthru
          _
        // Predicated region
        $region37: #{fwd.1} parent=11 // pred_check
          %p315 = pneg %p193
        $region38: #{fwd.1} parent=11 // pred_check_branch
          %317 = sbr.rel (%p315) target = $region40
        $region39: #{fwd.1} parent=11 // pred_region
          _
        $region40: #{fwd.1} parent=11 // pred_fallthru
          _
        // Predicated region
        $region41: #{fwd.1} parent=11 // pred_check
          %p318 = pneg %p214
        $region42: #{fwd.1} parent=11 // pred_check_branch
          %320 = sbr.rel (%p318) target = $region44
        $region43: #{fwd.1} parent=11 // pred_region
          _
        $region44: #{fwd.1} parent=11 // pred_fallthru
          _
        // Predicated region
        $region45: #{fwd.1} parent=11 // pred_check
          %p321 = pneg %p235
        $region46: #{fwd.1} parent=11 // pred_check_branch
          %323 = sbr.rel (%p321) target = $region48
        $region47: #{fwd.1} parent=11 // pred_region
          _
        $region48: #{fwd.1} parent=11 // pred_fallthru
          _
        // Predicated region
        $region49: #{fwd.1} parent=11 // pred_check
          %p324 = pneg %p256
        $region50: #{fwd.1} parent=11 // pred_check_branch
          %326 = sbr.rel (%p324) target = $region52
        $region51: #{fwd.1} parent=11 // pred_region
          _
        $region52: #{fwd.1} parent=11 // pred_fallthru
          _
      $region12: #{fwd.1} parent=5 // pred_fallthru
        _
      %p327 = scmp.lt.s32.totalorder %s20, 2
      // Predicated region
      $region53: #{fwd.1} parent=5 // pred_check
        %p328 = pneg %p327
      $region54: #{fwd.1} parent=5 // pred_check_branch
        %330 = sbr.rel (%p328) target = $region56
      $region55: #{fwd.1} parent=5 // pred_region
        // Predicated region
        $region57: #{fwd.1} parent=55 // pred_check
          %p331 = pneg %p40
        $region58: #{fwd.1} parent=55 // pred_check_branch
          %333 = sbr.rel (%p331) target = $region60
        $region59: #{fwd.1} parent=55 // pred_region
          %p334 = scmp.lt.s32.totalorder %s20, 1
          %s335 = scalar_select %p334, %s20, 1
          %s336 = smul.addr %s335, 10
          %s337 = smul.addr %s336, 8
          %s338 = scalar_lea.vmem %s0, %s337
        $region60: #{fwd.1} parent=55 // pred_fallthru
          _
      $region56: #{fwd.1} parent=5 // pred_fallthru
        _
      %p339 = scmp.le.s32.totalorder 1, %s20
      %p340 = scmp.lt.s32.totalorder %s20, 3
      %p341 = pnand %p339, %p340
      %p342 = pneg %p341
      // Predicated region
      $region61: #{fwd.1} parent=5 // pred_check
        _
      $region62: #{fwd.1} parent=5 // pred_check_branch
        %344 = sbr.rel (%p341) target = $region64
      $region63: #{fwd.1} parent=5 // pred_region
        %s345 = ssub.s32 %s20, 1
        %p346 = scmp.lt.s32.totalorder %s25, 1
        %s347 = scalar_select %p346, %s25, 1
        %s348 = smul.addr %s347, 10
        %s349 = smul.addr %s348, 8
        %s350 = scalar_lea.vmem %s0, %s349
        %p351 = pneg %p46
        %p352 = pneg %p43
        %p353 = pneg %p67
        %p354 = pneg %p64
        %p355 = pneg %p88
        %p356 = pneg %p85
        %p357 = pneg %p109
        %p358 = pneg %p106
        %p359 = pneg %p130
        %p360 = pneg %p127
        %p361 = pneg %p151
        %p362 = pneg %p148
        %p363 = pneg %p172
        %p364 = pneg %p169
        %p365 = pneg %p193
        %p366 = pneg %p190
        %p367 = pneg %p214
        %p368 = pneg %p211
        %p369 = pneg %p235
        %p370 = pneg %p232
        %p371 = pneg %p256
        %p372 = pneg %p253
        %p373 = pneg %p282
        %p374 = pneg %p279
        %s375 = sand.u32 %s269, 1
        %s376 = scalar_lea.sflag [#allocation6], %s375
        %s377 = sand.u32 %s269, 1
        %s378 = scalar_lea.vmem [#allocation5], %s377
        %p379 = scmp.lt.s32.totalorder %s25, 1
        %s380 = scalar_select %p379, %s25, 1
        %s381 = smul.addr %s380, 10
        %s382 = smul.addr %s381, 8
        %s383 = scalar_lea.vmem %s0, %s382
        %v384 = vld [vmem:[%s383] sm:$0xff]
        %v385 = vld [vmem:[%s383 + $0x8] sm:$0xff]
        %v386 = vld [vmem:[%s383 + $0x10] sm:$0xff]
        %v387 = vld [vmem:[%s383 + $0x18] sm:$0xff]
        %v388 = vld [vmem:[%s383 + $0x20] sm:$0xff]
        %v389 = vld [vmem:[%s383 + $0x28] sm:$0xff]
        %v390 = vld [vmem:[%s383 + $0x30] sm:$0xff]
        %v391 = vld [vmem:[%s383 + $0x38] sm:$0xff]
        %v392 = vld [vmem:[%s383 + $0x40] sm:$0xf]
        %v393 = vld [vmem:[%s383 + $0x48] sm:$0xf]
        %v394 = vld [vmem:[%s1] sm:$0xff]
        %v395 = vld [vmem:[%s1 + $0x8] sm:$0xff]
        %v396 = vld [vmem:[%s1 + $0x10] sm:$0xff]
        %v397 = vld [vmem:[%s1 + $0x18] sm:$0xff]
        %v398 = vld [vmem:[%s1 + $0x20] sm:$0xff]
        %v399 = vld [vmem:[%s1 + $0x28] sm:$0xff]
        %v400 = vld [vmem:[%s1 + $0x30] sm:$0xff]
        %v401 = vld [vmem:[%s1 + $0x38] sm:$0xff]
        %v402 = vld [vmem:[%s1 + $0x40] sm:$0xff]
        %v403 = vld [vmem:[%s1 + $0x48] sm:$0xff]
        %v404 = vld [vmem:[%s1 + $0x50] sm:$0xff]
        %v405 = vld [vmem:[%s1 + $0x58] sm:$0xff]
        %v406 = vld [vmem:[%s1 + $0x60] sm:$0xff]
        %v407 = vld [vmem:[%s1 + $0x68] sm:$0xff]
        %v408 = vld [vmem:[%s1 + $0x70] sm:$0xff]
        %v409 = vld [vmem:[%s1 + $0x78] sm:$0xff]
        %v410 = vld [vmem:[%s1 + $0x80] sm:$0xff]
        %v411 = vld [vmem:[%s1 + $0x88] sm:$0xff]
        %v412 = vld [vmem:[%s1 + $0x90] sm:$0xff]
        %v413 = vld [vmem:[%s1 + $0x98] sm:$0xff]
        %v414 = vld [vmem:[%s1 + $0xa0] sm:$0xff]
        %v415 = vld [vmem:[%s1 + $0xa8] sm:$0xff]
        %v416 = vld [vmem:[%s1 + $0xb0] sm:$0xff]
        %v417 = vld [vmem:[%s1 + $0xb8] sm:$0xff]
        %v418 = vld [vmem:[%s1 + $0xc0] sm:$0xff]
        %v419 = vld [vmem:[%s1 + $0xc8] sm:$0xff]
        %v420 = vld [vmem:[%s1 + $0xd0] sm:$0xff]
        %v421 = vld [vmem:[%s1 + $0xd8] sm:$0xff]
        %v422 = vld [vmem:[%s1 + $0xe0] sm:$0xff]
        %v423 = vld [vmem:[%s1 + $0xe8] sm:$0xff]
        %v424 = vld [vmem:[%s1 + $0xf0] sm:$0xff]
        %v425 = vld [vmem:[%s1 + $0xf8] sm:$0xff]
        %v426 = vld [vmem:[%s1 + $0x100] sm:$0xff]
        %v427 = vld [vmem:[%s1 + $0x108] sm:$0xff]
        %v428 = vld [vmem:[%s1 + $0x110] sm:$0xff]
        %v429 = vld [vmem:[%s1 + $0x118] sm:$0xff]
        %vm430 = vcmask 130048
        %v432 = vsel %vm430, %v385, 0
        %v435 = vsel %vm430, %v387, 0
        %v438 = vsel %vm430, %v389, 0
        %v441 = vsel %vm430, %v391, 0
        %v444 = vsel %vm430, %v393, 0
        %446 = vmatprep.subr.mxu0 %v395
        %447 = vmatpush1.msra.mxu0 %v394
        %448 = vmatprep.subr.mxu0 %v397
        %449 = vmatpush1.msra.mxu0 %v396
        %450 = vmatprep.subr.mxu0 %v399
        %451 = vmatpush1.msra.mxu0 %v398
        %452 = vmatprep.subr.mxu0 %v401
        %453 = vmatpush1.msra.mxu0 %v400
        %454 = vmatprep.subr.mxu0 %v403
        %455 = vmatpush1.msra.mxu0 %v402
        %456 = vmatprep.subr.mxu0 %v405
        %457 = vmatpush1.msra.mxu0 %v404
        %458 = vmatprep.subr.mxu0 %v407
        %459 = vmatpush1.msra.mxu0 %v406
        %460 = vmatprep.subr.mxu0 %v409
        %461 = vmatpush1.msra.mxu0 %v408
        %462 = vmatprep.subr.mxu0 %v411
        %463 = vmatpush1.msra.mxu0 %v410
        %464 = vmatprep.subr.mxu0 %v413
        %465 = vmatpush1.msra.mxu0 %v412
        %466 = vmatprep.subr.mxu0 %v415
        %467 = vmatpush1.msra.mxu0 %v414
        %468 = vmatprep.subr.mxu0 %v417
        %469 = vmatpush1.msra.mxu0 %v416
        %470 = vmatprep.subr.mxu0 %v419
        %471 = vmatpush1.msra.mxu0 %v418
        %472 = vmatprep.subr.mxu0 %v421
        %473 = vmatpush1.msra.mxu0 %v420
        %474 = vmatprep.subr.mxu0 %v423
        %475 = vmatpush1.msra.mxu0 %v422
        %476 = vmatprep.subr.mxu0 %v425
        %477 = vmatpush1.msra.mxu0 %v424
        %478 = vmatprep.subr.mxu0 %v427
        %479 = vmatpush1.msra.mxu0 %v426
        %480 = vmatprep.subr.mxu0 %v429
        %481 = vmatpush1.msra.mxu0 %v428
        %482 = vmatprep.subr.mxu0 0.0
        %483 = vmatpush1.msra.mxu0 0.0
        %484 = vmatprep.subr.mxu0 0.0
        %485 = vmatpush1.msra.mxu0 0.0
        %486 = vmatprep.subr.mxu0 0.0
        %487 = vmatpush1.msra.mxu0 0.0
        %488 = vmatprep.subr.mxu0 0.0
        %489 = vmatpush1.msra.mxu0 0.0
        %490 = vmatprep.subr.mxu0 0.0
        %491 = vmatpush1.msra.mxu0 0.0
        %492 = vmatprep.subr.mxu0 0.0
        %493 = vmatpush1.msra.mxu0 0.0
        %494 = vmatprep.subr.mxu0 0.0
        %495 = vmatpush1.msra.mxu0 0.0
        %496 = vmatprep.subr.mxu0 0.0
        %497 = vmatpush1.msra.mxu0 0.0
        %498 = vmatprep.subr.mxu0 0.0
        %499 = vmatpush1.msra.mxu0 0.0
        %500 = vmatprep.subr.mxu0 0.0
        %501 = vmatpush1.msra.mxu0 0.0
        %502 = vmatprep.subr.mxu0 0.0
        %503 = vmatpush1.msra.mxu0 0.0
        %504 = vmatprep.subr.mxu0 0.0
        %505 = vmatpush1.msra.mxu0 0.0
        %506 = vmatprep.subr.mxu0 0.0
        %507 = vmatpush1.msra.mxu0 0.0
        %508 = vmatprep.subr.mxu0 0.0
        %509 = vmatpush1.msra.mxu0 0.0
        %510 = vmatprep.mubr.f32.mxu0 %v432
        %511 = vmatmul.mubr.f32.gmra.mrb[0].mxu0 %v384
        %v512 = vpop.f32.mrb[0].mxu0
        %v513 = vadd.f32 0.0, %v512
        %v514 = vpop.f32.mrb[0].mxu0
        %v515 = vadd.f32 0.0, %v514
        %516 = vmatprep.mubr.f32.mxu0 %v435
        %517 = vmatmul.mubr.f32.gmra.mrb[0].mxu0 %v386
        %v518 = vpop.f32.mrb[0].mxu0
        %v519 = vadd.f32 0.0, %v518
        %v520 = vpop.f32.mrb[0].mxu0
        %v521 = vadd.f32 0.0, %v520
        %522 = vmatprep.mubr.f32.mxu0 %v438
        %523 = vmatmul.mubr.f32.gmra.mrb[0].mxu0 %v388
        %v524 = vpop.f32.mrb[0].mxu0
        %v525 = vadd.f32 0.0, %v524
        %v526 = vpop.f32.mrb[0].mxu0
        %v527 = vadd.f32 0.0, %v526
        %528 = vmatprep.mubr.f32.mxu0 %v441
        %529 = vmatmul.mubr.f32.gmra.mrb[0].mxu0 %v390
        %v530 = vpop.f32.mrb[0].mxu0
        %v531 = vadd.f32 0.0, %v530
        %v532 = vpop.f32.mrb[0].mxu0
        %v533 = vadd.f32 0.0, %v532
        %534 = vmatprep.mubr.f32.mxu0 %v444
        %535 = vmatmul.mubr.f32.gmra.mrb[0].mxu0 %v392
        %v536 = vpop.f32.mrb[0].mxu0
        %v537 = vpop.f32.mrb[0].mxu0
        %538 = vdwg.mxu0
        %s539 = scalar_lea.vmem %s1, 288
        %v540 = vld [vmem:[%s539] sm:$0xff]
        %v541 = vld [vmem:[%s539 + $0x8] sm:$0xff]
        %v542 = vld [vmem:[%s539 + $0x10] sm:$0xff]
        %v543 = vld [vmem:[%s539 + $0x18] sm:$0xff]
        %v544 = vld [vmem:[%s539 + $0x20] sm:$0xff]
        %v545 = vld [vmem:[%s539 + $0x28] sm:$0xff]
        %v546 = vld [vmem:[%s539 + $0x30] sm:$0xff]
        %v547 = vld [vmem:[%s539 + $0x38] sm:$0xff]
        %v548 = vld [vmem:[%s539 + $0x40] sm:$0xff]
        %v549 = vld [vmem:[%s539 + $0x48] sm:$0xff]
        %v550 = vld [vmem:[%s539 + $0x50] sm:$0xff]
        %v551 = vld [vmem:[%s539 + $0x58] sm:$0xff]
        %v552 = vld [vmem:[%s539 + $0x60] sm:$0xff]
        %v553 = vld [vmem:[%s539 + $0x68] sm:$0xff]
        %v554 = vld [vmem:[%s539 + $0x70] sm:$0xff]
        %v555 = vld [vmem:[%s539 + $0x78] sm:$0xff]
        %v556 = vld [vmem:[%s539 + $0x80] sm:$0xff]
        %v557 = vld [vmem:[%s539 + $0x88] sm:$0xff]
        %v558 = vld [vmem:[%s539 + $0x90] sm:$0xff]
        %v559 = vld [vmem:[%s539 + $0x98] sm:$0xff]
        %v560 = vld [vmem:[%s539 + $0xa0] sm:$0xff]
        %v561 = vld [vmem:[%s539 + $0xa8] sm:$0xff]
        %v562 = vld [vmem:[%s539 + $0xb0] sm:$0xff]
        %v563 = vld [vmem:[%s539 + $0xb8] sm:$0xff]
        %v564 = vld [vmem:[%s539 + $0xc0] sm:$0xff]
        %v565 = vld [vmem:[%s539 + $0xc8] sm:$0xff]
        %v566 = vld [vmem:[%s539 + $0xd0] sm:$0xff]
        %v567 = vld [vmem:[%s539 + $0xd8] sm:$0xff]
        %v568 = vld [vmem:[%s539 + $0xe0] sm:$0xff]
        %v569 = vld [vmem:[%s539 + $0xe8] sm:$0xff]
        %v570 = vld [vmem:[%s539 + $0xf0] sm:$0xff]
        %v571 = vld [vmem:[%s539 + $0xf8] sm:$0xff]
        %v572 = vld [vmem:[%s539 + $0x100] sm:$0xff]
        %v573 = vld [vmem:[%s539 + $0x108] sm:$0xff]
        %v574 = vld [vmem:[%s539 + $0x110] sm:$0xff]
        %v575 = vld [vmem:[%s539 + $0x118] sm:$0xff]
        %576 = vmatprep.subr.mxu0 %v541
        %577 = vmatpush1.msra.mxu0 %v540
        %578 = vmatprep.subr.mxu0 %v543
        %579 = vmatpush1.msra.mxu0 %v542
        %580 = vmatprep.subr.mxu0 %v545
        %581 = vmatpush1.msra.mxu0 %v544
        %582 = vmatprep.subr.mxu0 %v547
        %583 = vmatpush1.msra.mxu0 %v546
        %584 = vmatprep.subr.mxu0 %v549
        %585 = vmatpush1.msra.mxu0 %v548
        %586 = vmatprep.subr.mxu0 %v551
        %587 = vmatpush1.msra.mxu0 %v550
        %588 = vmatprep.subr.mxu0 %v553
        %589 = vmatpush1.msra.mxu0 %v552
        %590 = vmatprep.subr.mxu0 %v555
        %591 = vmatpush1.msra.mxu0 %v554
        %592 = vmatprep.subr.mxu0 %v557
        %593 = vmatpush1.msra.mxu0 %v556
        %594 = vmatprep.subr.mxu0 %v559
        %595 = vmatpush1.msra.mxu0 %v558
        %596 = vmatprep.subr.mxu0 %v561
        %597 = vmatpush1.msra.mxu0 %v560
        %598 = vmatprep.subr.mxu0 %v563
        %599 = vmatpush1.msra.mxu0 %v562
        %600 = vmatprep.subr.mxu0 %v565
        %601 = vmatpush1.msra.mxu0 %v564
        %602 = vmatprep.subr.mxu0 %v567
        %603 = vmatpush1.msra.mxu0 %v566
        %604 = vmatprep.subr.mxu0 %v569
        %605 = vmatpush1.msra.mxu0 %v568
        %606 = vmatprep.subr.mxu0 %v571
        %607 = vmatpush1.msra.mxu0 %v570
        %608 = vmatprep.subr.mxu0 %v573
        %609 = vmatpush1.msra.mxu0 %v572
        %610 = vmatprep.subr.mxu0 %v575
        %611 = vmatpush1.msra.mxu0 %v574
        %612 = vmatprep.subr.mxu0 0.0
        %613 = vmatpush1.msra.mxu0 0.0
        %614 = vmatprep.subr.mxu0 0.0
        %615 = vmatpush1.msra.mxu0 0.0
        %616 = vmatprep.subr.mxu0 0.0
        %617 = vmatpush1.msra.mxu0 0.0
        %618 = vmatprep.subr.mxu0 0.0
        %619 = vmatpush1.msra.mxu0 0.0
        %620 = vmatprep.subr.mxu0 0.0
        %621 = vmatpush1.msra.mxu0 0.0
        %622 = vmatprep.subr.mxu0 0.0
        %623 = vmatpush1.msra.mxu0 0.0
        %624 = vmatprep.subr.mxu0 0.0
        %625 = vmatpush1.msra.mxu0 0.0
        %626 = vmatprep.subr.mxu0 0.0
        %627 = vmatpush1.msra.mxu0 0.0
        %628 = vmatprep.subr.mxu0 0.0
        %629 = vmatpush1.msra.mxu0 0.0
        %630 = vmatprep.subr.mxu0 0.0
        %631 = vmatpush1.msra.mxu0 0.0
        %632 = vmatprep.subr.mxu0 0.0
        %633 = vmatpush1.msra.mxu0 0.0
        %634 = vmatprep.subr.mxu0 0.0
        %635 = vmatpush1.msra.mxu0 0.0
        %636 = vmatprep.subr.mxu0 0.0
        %637 = vmatpush1.msra.mxu0 0.0
        %638 = vmatprep.subr.mxu0 0.0
        %639 = vmatpush1.msra.mxu0 0.0
        %640 = vmatprep.mubr.f32.mxu0 %v432
        %641 = vmatmul.mubr.f32.gmra.mrb[0].mxu0 %v384
        %v642 = vpop.f32.mrb[0].mxu0
        %v643 = vadd.f32 0.0, %v642
        %v644 = vpop.f32.mrb[0].mxu0
        %v645 = vadd.f32 0.0, %v644
        %646 = vmatprep.mubr.f32.mxu0 %v435
        %647 = vmatmul.mubr.f32.gmra.mrb[0].mxu0 %v386
        %v648 = vpop.f32.mrb[0].mxu0
        %v649 = vadd.f32 0.0, %v648
        %v650 = vpop.f32.mrb[0].mxu0
        %v651 = vadd.f32 0.0, %v650
        %652 = vmatprep.mubr.f32.mxu0 %v438
        %653 = vmatmul.mubr.f32.gmra.mrb[0].mxu0 %v388
        %v654 = vpop.f32.mrb[0].mxu0
        %v655 = vadd.f32 0.0, %v654
        %v656 = vpop.f32.mrb[0].mxu0
        %v657 = vadd.f32 0.0, %v656
        %658 = vmatprep.mubr.f32.mxu0 %v441
        %659 = vmatmul.mubr.f32.gmra.mrb[0].mxu0 %v390
        %v660 = vpop.f32.mrb[0].mxu0
        %v661 = vadd.f32 0.0, %v660
        %v662 = vpop.f32.mrb[0].mxu0
        %v663 = vadd.f32 0.0, %v662
        %664 = vmatprep.mubr.f32.mxu0 %v444
        %665 = vmatmul.mubr.f32.gmra.mrb[0].mxu0 %v392
        %v666 = vpop.f32.mrb[0].mxu0
        %v667 = vpop.f32.mrb[0].mxu0
        %668 = vdwg.mxu0
        %v671 = vrot.slane %v643, 1
        %v672 = vrot.slane %v645, 1
        %v675 = vadd.f32 %v513, %v671
        %v676 = vadd.f32 %v515, %v672
        %v679 = vrot.slane %v649, 1
        %v680 = vrot.slane %v651, 1
        %v683 = vadd.f32 %v519, %v679
        %v684 = vadd.f32 %v521, %v680
        %v687 = vrot.slane %v655, 1
        %v688 = vrot.slane %v657, 1
        %v691 = vadd.f32 %v525, %v687
        %v692 = vadd.f32 %v527, %v688
        %v695 = vrot.slane %v661, 1
        %v696 = vrot.slane %v663, 1
        %v699 = vadd.f32 %v531, %v695
        %v700 = vadd.f32 %v533, %v696
        %s701 = scalar_lea.vmem %s1, 576
        %v702 = vld [vmem:[%s701] sm:$0xff]
        %v703 = vld [vmem:[%s701 + $0x8] sm:$0xff]
        %v704 = vld [vmem:[%s701 + $0x10] sm:$0xff]
        %v705 = vld [vmem:[%s701 + $0x18] sm:$0xff]
        %v706 = vld [vmem:[%s701 + $0x20] sm:$0xff]
        %v707 = vld [vmem:[%s701 + $0x28] sm:$0xff]
        %v708 = vld [vmem:[%s701 + $0x30] sm:$0xff]
        %v709 = vld [vmem:[%s701 + $0x38] sm:$0xff]
        %v710 = vld [vmem:[%s701 + $0x40] sm:$0xff]
        %v711 = vld [vmem:[%s701 + $0x48] sm:$0xff]
        %v712 = vld [vmem:[%s701 + $0x50] sm:$0xff]
        %v713 = vld [vmem:[%s701 + $0x58] sm:$0xff]
        %v714 = vld [vmem:[%s701 + $0x60] sm:$0xff]
        %v715 = vld [vmem:[%s701 + $0x68] sm:$0xff]
        %v716 = vld [vmem:[%s701 + $0x70] sm:$0xff]
        %v717 = vld [vmem:[%s701 + $0x78] sm:$0xff]
        %v718 = vld [vmem:[%s701 + $0x80] sm:$0xff]
        %v719 = vld [vmem:[%s701 + $0x88] sm:$0xff]
        %v720 = vld [vmem:[%s701 + $0x90] sm:$0xff]
        %v721 = vld [vmem:[%s701 + $0x98] sm:$0xff]
        %v722 = vld [vmem:[%s701 + $0xa0] sm:$0xff]
        %v723 = vld [vmem:[%s701 + $0xa8] sm:$0xff]
        %v724 = vld [vmem:[%s701 + $0xb0] sm:$0xff]
        %v725 = vld [vmem:[%s701 + $0xb8] sm:$0xff]
        %v726 = vld [vmem:[%s701 + $0xc0] sm:$0xff]
        %v727 = vld [vmem:[%s701 + $0xc8] sm:$0xff]
        %v728 = vld [vmem:[%s701 + $0xd0] sm:$0xff]
        %v729 = vld [vmem:[%s701 + $0xd8] sm:$0xff]
        %v730 = vld [vmem:[%s701 + $0xe0] sm:$0xff]
        %v731 = vld [vmem:[%s701 + $0xe8] sm:$0xff]
        %v732 = vld [vmem:[%s701 + $0xf0] sm:$0xff]
        %v733 = vld [vmem:[%s701 + $0xf8] sm:$0xff]
        %v734 = vld [vmem:[%s701 + $0x100] sm:$0xff]
        %v735 = vld [vmem:[%s701 + $0x108] sm:$0xff]
        %v736 = vld [vmem:[%s701 + $0x110] sm:$0xff]
        %v737 = vld [vmem:[%s701 + $0x118] sm:$0xff]
        %738 = vmatprep.subr.mxu0 %v703
        %739 = vmatpush1.msra.mxu0 %v702
        %740 = vmatprep.subr.mxu0 %v705
        %741 = vmatpush1.msra.mxu0 %v704
        %742 = vmatprep.subr.mxu0 %v707
        %743 = vmatpush1.msra.mxu0 %v706
        %744 = vmatprep.subr.mxu0 %v709
        %745 = vmatpush1.msra.mxu0 %v708
        %746 = vmatprep.subr.mxu0 %v711
        %747 = vmatpush1.msra.mxu0 %v710
        %748 = vmatprep.subr.mxu0 %v713
        %749 = vmatpush1.msra.mxu0 %v712
        %750 = vmatprep.subr.mxu0 %v715
        %751 = vmatpush1.msra.mxu0 %v714
        %752 = vmatprep.subr.mxu0 %v717
        %753 = vmatpush1.msra.mxu0 %v716
        %754 = vmatprep.subr.mxu0 %v719
        %755 = vmatpush1.msra.mxu0 %v718
        %756 = vmatprep.subr.mxu0 %v721
        %757 = vmatpush1.msra.mxu0 %v720
        %758 = vmatprep.subr.mxu0 %v723
        %759 = vmatpush1.msra.mxu0 %v722
        %760 = vmatprep.subr.mxu0 %v725
        %761 = vmatpush1.msra.mxu0 %v724
        %762 = vmatprep.subr.mxu0 %v727
        %763 = vmatpush1.msra.mxu0 %v726
        %764 = vmatprep.subr.mxu0 %v729
        %765 = vmatpush1.msra.mxu0 %v728
        %766 = vmatprep.subr.mxu0 %v731
        %767 = vmatpush1.msra.mxu0 %v730
        %768 = vmatprep.subr.mxu0 %v733
        %769 = vmatpush1.msra.mxu0 %v732
        %770 = vmatprep.subr.mxu0 %v735
        %771 = vmatpush1.msra.mxu0 %v734
        %772 = vmatprep.subr.mxu0 %v737
        %773 = vmatpush1.msra.mxu0 %v736
        %774 = vmatprep.subr.mxu0 0.0
        %775 = vmatpush1.msra.mxu0 0.0
        %776 = vmatprep.subr.mxu0 0.0
        %777 = vmatpush1.msra.mxu0 0.0
        %778 = vmatprep.subr.mxu0 0.0
        %779 = vmatpush1.msra.mxu0 0.0
        %780 = vmatprep.subr.mxu0 0.0
        %781 = vmatpush1.msra.mxu0 0.0
        %782 = vmatprep.subr.mxu0 0.0
        %783 = vmatpush1.msra.mxu0 0.0
        %784 = vmatprep.subr.mxu0 0.0
        %785 = vmatpush1.msra.mxu0 0.0
        %786 = vmatprep.subr.mxu0 0.0
        %787 = vmatpush1.msra.mxu0 0.0
        %788 = vmatprep.subr.mxu0 0.0
        %789 = vmatpush1.msra.mxu0 0.0
        %790 = vmatprep.subr.mxu0 0.0
        %791 = vmatpush1.msra.mxu0 0.0
        %792 = vmatprep.subr.mxu0 0.0
        %793 = vmatpush1.msra.mxu0 0.0
        %794 = vmatprep.subr.mxu0 0.0
        %795 = vmatpush1.msra.mxu0 0.0
        %796 = vmatprep.subr.mxu0 0.0
        %797 = vmatpush1.msra.mxu0 0.0
        %798 = vmatprep.subr.mxu0 0.0
        %799 = vmatpush1.msra.mxu0 0.0
        %800 = vmatprep.subr.mxu0 0.0
        %801 = vmatpush1.msra.mxu0 0.0
        %802 = vmatprep.mubr.f32.mxu0 %v432
        %803 = vmatmul.mubr.f32.gmra.mrb[0].mxu0 %v384
        %v804 = vpop.f32.mrb[0].mxu0
        %v805 = vadd.f32 0.0, %v804
        %v806 = vpop.f32.mrb[0].mxu0
        %v807 = vadd.f32 0.0, %v806
        %808 = vmatprep.mubr.f32.mxu0 %v435
        %809 = vmatmul.mubr.f32.gmra.mrb[0].mxu0 %v386
        %v810 = vpop.f32.mrb[0].mxu0
        %v811 = vadd.f32 0.0, %v810
        %v812 = vpop.f32.mrb[0].mxu0
        %v813 = vadd.f32 0.0, %v812
        %814 = vmatprep.mubr.f32.mxu0 %v438
        %815 = vmatmul.mubr.f32.gmra.mrb[0].mxu0 %v388
        %v816 = vpop.f32.mrb[0].mxu0
        %v817 = vadd.f32 0.0, %v816
        %v818 = vpop.f32.mrb[0].mxu0
        %v819 = vadd.f32 0.0, %v818
        %820 = vmatprep.mubr.f32.mxu0 %v441
        %821 = vmatmul.mubr.f32.gmra.mrb[0].mxu0 %v390
        %v822 = vpop.f32.mrb[0].mxu0
        %v823 = vadd.f32 0.0, %v822
        %v824 = vpop.f32.mrb[0].mxu0
        %v825 = vadd.f32 0.0, %v824
        %826 = vmatprep.mubr.f32.mxu0 %v444
        %827 = vmatmul.mubr.f32.gmra.mrb[0].mxu0 %v392
        %v828 = vpop.f32.mrb[0].mxu0
        %v829 = vpop.f32.mrb[0].mxu0
        %830 = vdwg.mxu0
        %v833 = vrot.slane %v805, 2
        %v834 = vrot.slane %v807, 2
        %v837 = vadd.f32 %v675, %v833
        %v838 = vadd.f32 %v676, %v834
        %v841 = vrot.slane %v811, 2
        %v842 = vrot.slane %v813, 2
        %v845 = vadd.f32 %v683, %v841
        %v846 = vadd.f32 %v684, %v842
        %v849 = vrot.slane %v817, 2
        %v850 = vrot.slane %v819, 2
        %v853 = vadd.f32 %v691, %v849
        %v854 = vadd.f32 %v692, %v850
        %v857 = vrot.slane %v823, 2
        %v858 = vrot.slane %v825, 2
        %v861 = vadd.f32 %v699, %v857
        %v862 = vadd.f32 %v700, %v858
        %s863 = scalar_lea.vmem %s1, 864
        %v864 = vld [vmem:[%s863] sm:$0xff]
        %v865 = vld [vmem:[%s863 + $0x8] sm:$0xff]
        %v866 = vld [vmem:[%s863 + $0x10] sm:$0xff]
        %v867 = vld [vmem:[%s863 + $0x18] sm:$0xff]
        %v868 = vld [vmem:[%s863 + $0x20] sm:$0xff]
        %v869 = vld [vmem:[%s863 + $0x28] sm:$0xff]
        %v870 = vld [vmem:[%s863 + $0x30] sm:$0xff]
        %v871 = vld [vmem:[%s863 + $0x38] sm:$0xff]
        %v872 = vld [vmem:[%s863 + $0x40] sm:$0xff]
        %v873 = vld [vmem:[%s863 + $0x48] sm:$0xff]
        %v874 = vld [vmem:[%s863 + $0x50] sm:$0xff]
        %v875 = vld [vmem:[%s863 + $0x58] sm:$0xff]
        %v876 = vld [vmem:[%s863 + $0x60] sm:$0xff]
        %v877 = vld [vmem:[%s863 + $0x68] sm:$0xff]
        %v878 = vld [vmem:[%s863 + $0x70] sm:$0xff]
        %v879 = vld [vmem:[%s863 + $0x78] sm:$0xff]
        %v880 = vld [vmem:[%s863 + $0x80] sm:$0xff]
        %v881 = vld [vmem:[%s863 + $0x88] sm:$0xff]
        %v882 = vld [vmem:[%s863 + $0x90] sm:$0xff]
        %v883 = vld [vmem:[%s863 + $0x98] sm:$0xff]
        %v884 = vld [vmem:[%s863 + $0xa0] sm:$0xff]
        %v885 = vld [vmem:[%s863 + $0xa8] sm:$0xff]
        %v886 = vld [vmem:[%s863 + $0xb0] sm:$0xff]
        %v887 = vld [vmem:[%s863 + $0xb8] sm:$0xff]
        %v888 = vld [vmem:[%s863 + $0xc0] sm:$0xff]
        %v889 = vld [vmem:[%s863 + $0xc8] sm:$0xff]
        %v890 = vld [vmem:[%s863 + $0xd0] sm:$0xff]
        %v891 = vld [vmem:[%s863 + $0xd8] sm:$0xff]
        %v892 = vld [vmem:[%s863 + $0xe0] sm:$0xff]
        %v893 = vld [vmem:[%s863 + $0xe8] sm:$0xff]
        %v894 = vld [vmem:[%s863 + $0xf0] sm:$0xff]
        %v895 = vld [vmem:[%s863 + $0xf8] sm:$0xff]
        %v896 = vld [vmem:[%s863 + $0x100] sm:$0xff]
        %v897 = vld [vmem:[%s863 + $0x108] sm:$0xff]
        %v898 = vld [vmem:[%s863 + $0x110] sm:$0xff]
        %v899 = vld [vmem:[%s863 + $0x118] sm:$0xff]
        %900 = vmatprep.subr.mxu0 %v865
        %901 = vmatpush1.msra.mxu0 %v864
        %902 = vmatprep.subr.mxu0 %v867
        %903 = vmatpush1.msra.mxu0 %v866
        %904 = vmatprep.subr.mxu0 %v869
        %905 = vmatpush1.msra.mxu0 %v868
        %906 = vmatprep.subr.mxu0 %v871
        %907 = vmatpush1.msra.mxu0 %v870
        %908 = vmatprep.subr.mxu0 %v873
        %909 = vmatpush1.msra.mxu0 %v872
        %910 = vmatprep.subr.mxu0 %v875
        %911 = vmatpush1.msra.mxu0 %v874
        %912 = vmatprep.subr.mxu0 %v877
        %913 = vmatpush1.msra.mxu0 %v876
        %914 = vmatprep.subr.mxu0 %v879
        %915 = vmatpush1.msra.mxu0 %v878
        %916 = vmatprep.subr.mxu0 %v881
        %917 = vmatpush1.msra.mxu0 %v880
        %918 = vmatprep.subr.mxu0 %v883
        %919 = vmatpush1.msra.mxu0 %v882
        %920 = vmatprep.subr.mxu0 %v885
        %921 = vmatpush1.msra.mxu0 %v884
        %922 = vmatprep.subr.mxu0 %v887
        %923 = vmatpush1.msra.mxu0 %v886
        %924 = vmatprep.subr.mxu0 %v889
        %925 = vmatpush1.msra.mxu0 %v888
        %926 = vmatprep.subr.mxu0 %v891
        %927 = vmatpush1.msra.mxu0 %v890
        %928 = vmatprep.subr.mxu0 %v893
        %929 = vmatpush1.msra.mxu0 %v892
        %930 = vmatprep.subr.mxu0 %v895
        %931 = vmatpush1.msra.mxu0 %v894
        %932 = vmatprep.subr.mxu0 %v897
        %933 = vmatpush1.msra.mxu0 %v896
        %934 = vmatprep.subr.mxu0 %v899
        %935 = vmatpush1.msra.mxu0 %v898
        %936 = vmatprep.subr.mxu0 0.0
        %937 = vmatpush1.msra.mxu0 0.0
        %938 = vmatprep.subr.mxu0 0.0
        %939 = vmatpush1.msra.mxu0 0.0
        %940 = vmatprep.subr.mxu0 0.0
        %941 = vmatpush1.msra.mxu0 0.0
        %942 = vmatprep.subr.mxu0 0.0
        %943 = vmatpush1.msra.mxu0 0.0
        %944 = vmatprep.subr.mxu0 0.0
        %945 = vmatpush1.msra.mxu0 0.0
        %946 = vmatprep.subr.mxu0 0.0
        %947 = vmatpush1.msra.mxu0 0.0
        %948 = vmatprep.subr.mxu0 0.0
        %949 = vmatpush1.msra.mxu0 0.0
        %950 = vmatprep.subr.mxu0 0.0
        %951 = vmatpush1.msra.mxu0 0.0
        %952 = vmatprep.subr.mxu0 0.0
        %953 = vmatpush1.msra.mxu0 0.0
        %954 = vmatprep.subr.mxu0 0.0
        %955 = vmatpush1.msra.mxu0 0.0
        %956 = vmatprep.subr.mxu0 0.0
        %957 = vmatpush1.msra.mxu0 0.0
        %958 = vmatprep.subr.mxu0 0.0
        %959 = vmatpush1.msra.mxu0 0.0
        %960 = vmatprep.subr.mxu0 0.0
        %961 = vmatpush1.msra.mxu0 0.0
        %962 = vmatprep.subr.mxu0 0.0
        %963 = vmatpush1.msra.mxu0 0.0
        %964 = vmatprep.mubr.f32.mxu0 %v432
        %965 = vmatmul.mubr.f32.gmra.mrb[0].mxu0 %v384
        %v966 = vpop.f32.mrb[0].mxu0
        %v967 = vadd.f32 0.0, %v966
        %v968 = vpop.f32.mrb[0].mxu0
        %v969 = vadd.f32 0.0, %v968
        %970 = vmatprep.mubr.f32.mxu0 %v435
        %971 = vmatmul.mubr.f32.gmra.mrb[0].mxu0 %v386
        %v972 = vpop.f32.mrb[0].mxu0
        %v973 = vadd.f32 0.0, %v972
        %v974 = vpop.f32.mrb[0].mxu0
        %v975 = vadd.f32 0.0, %v974
        %976 = vmatprep.mubr.f32.mxu0 %v438
        %977 = vmatmul.mubr.f32.gmra.mrb[0].mxu0 %v388
        %v978 = vpop.f32.mrb[0].mxu0
        %v979 = vadd.f32 0.0, %v978
        %v980 = vpop.f32.mrb[0].mxu0
        %v981 = vadd.f32 0.0, %v980
        %982 = vmatprep.mubr.f32.mxu0 %v441
        %983 = vmatmul.mubr.f32.gmra.mrb[0].mxu0 %v390
        %v984 = vpop.f32.mrb[0].mxu0
        %v985 = vadd.f32 0.0, %v984
        %v986 = vpop.f32.mrb[0].mxu0
        %v987 = vadd.f32 0.0, %v986
        %988 = vmatprep.mubr.f32.mxu0 %v444
        %989 = vmatmul.mubr.f32.gmra.mrb[0].mxu0 %v392
        %v990 = vpop.f32.mrb[0].mxu0
        %v991 = vpop.f32.mrb[0].mxu0
        %992 = vdwg.mxu0
        %v995 = vrot.slane %v967, 3
        %v996 = vrot.slane %v969, 3
        %v999 = vadd.f32 %v837, %v995
        %v1000 = vadd.f32 %v838, %v996
        %v1003 = vrot.slane %v973, 3
        %v1004 = vrot.slane %v975, 3
        %v1007 = vadd.f32 %v845, %v1003
        %v1008 = vadd.f32 %v846, %v1004
        %v1011 = vrot.slane %v979, 3
        %v1012 = vrot.slane %v981, 3
        %v1015 = vadd.f32 %v853, %v1011
        %v1016 = vadd.f32 %v854, %v1012
        %v1019 = vrot.slane %v985, 3
        %v1020 = vrot.slane %v987, 3
        %v1023 = vadd.f32 %v861, %v1019
        %v1024 = vadd.f32 %v862, %v1020
        %s1025 = scalar_lea.vmem %s1, 1152
        %v1026 = vld [vmem:[%s1025] sm:$0xff]
        %v1027 = vld [vmem:[%s1025 + $0x8] sm:$0xff]
        %v1028 = vld [vmem:[%s1025 + $0x10] sm:$0xff]
        %v1029 = vld [vmem:[%s1025 + $0x18] sm:$0xff]
        %v1030 = vld [vmem:[%s1025 + $0x20] sm:$0xff]
        %v1031 = vld [vmem:[%s1025 + $0x28] sm:$0xff]
        %v1032 = vld [vmem:[%s1025 + $0x30] sm:$0xff]
        %v1033 = vld [vmem:[%s1025 + $0x38] sm:$0xff]
        %v1034 = vld [vmem:[%s1025 + $0x40] sm:$0xff]
        %v1035 = vld [vmem:[%s1025 + $0x48] sm:$0xff]
        %v1036 = vld [vmem:[%s1025 + $0x50] sm:$0xff]
        %v1037 = vld [vmem:[%s1025 + $0x58] sm:$0xff]
        %v1038 = vld [vmem:[%s1025 + $0x60] sm:$0xff]
        %v1039 = vld [vmem:[%s1025 + $0x68] sm:$0xff]
        %v1040 = vld [vmem:[%s1025 + $0x70] sm:$0xff]
        %v1041 = vld [vmem:[%s1025 + $0x78] sm:$0xff]
        %v1042 = vld [vmem:[%s1025 + $0x80] sm:$0xff]
        %v1043 = vld [vmem:[%s1025 + $0x88] sm:$0xff]
        %v1044 = vld [vmem:[%s1025 + $0x90] sm:$0xff]
        %v1045 = vld [vmem:[%s1025 + $0x98] sm:$0xff]
        %v1046 = vld [vmem:[%s1025 + $0xa0] sm:$0xff]
        %v1047 = vld [vmem:[%s1025 + $0xa8] sm:$0xff]
        %v1048 = vld [vmem:[%s1025 + $0xb0] sm:$0xff]
        %v1049 = vld [vmem:[%s1025 + $0xb8] sm:$0xff]
        %v1050 = vld [vmem:[%s1025 + $0xc0] sm:$0xff]
        %v1051 = vld [vmem:[%s1025 + $0xc8] sm:$0xff]
        %v1052 = vld [vmem:[%s1025 + $0xd0] sm:$0xff]
        %v1053 = vld [vmem:[%s1025 + $0xd8] sm:$0xff]
        %v1054 = vld [vmem:[%s1025 + $0xe0] sm:$0xff]
        %v1055 = vld [vmem:[%s1025 + $0xe8] sm:$0xff]
        %v1056 = vld [vmem:[%s1025 + $0xf0] sm:$0xff]
        %v1057 = vld [vmem:[%s1025 + $0xf8] sm:$0xff]
        %v1058 = vld [vmem:[%s1025 + $0x100] sm:$0xff]
        %v1059 = vld [vmem:[%s1025 + $0x108] sm:$0xff]
        %v1060 = vld [vmem:[%s1025 + $0x110] sm:$0xff]
        %v1061 = vld [vmem:[%s1025 + $0x118] sm:$0xff]
        %1062 = vmatprep.subr.mxu0 %v1027
        %1063 = vmatpush1.msra.mxu0 %v1026
        %1064 = vmatprep.subr.mxu0 %v1029
        %1065 = vmatpush1.msra.mxu0 %v1028
        %1066 = vmatprep.subr.mxu0 %v1031
        %1067 = vmatpush1.msra.mxu0 %v1030
        %1068 = vmatprep.subr.mxu0 %v1033
        %1069 = vmatpush1.msra.mxu0 %v1032
        %1070 = vmatprep.subr.mxu0 %v1035
        %1071 = vmatpush1.msra.mxu0 %v1034
        %1072 = vmatprep.subr.mxu0 %v1037
        %1073 = vmatpush1.msra.mxu0 %v1036
        %1074 = vmatprep.subr.mxu0 %v1039
        %1075 = vmatpush1.msra.mxu0 %v1038
        %1076 = vmatprep.subr.mxu0 %v1041
        %1077 = vmatpush1.msra.mxu0 %v1040
        %1078 = vmatprep.subr.mxu0 %v1043
        %1079 = vmatpush1.msra.mxu0 %v1042
        %1080 = vmatprep.subr.mxu0 %v1045
        %1081 = vmatpush1.msra.mxu0 %v1044
        %1082 = vmatprep.subr.mxu0 %v1047
        %1083 = vmatpush1.msra.mxu0 %v1046
        %1084 = vmatprep.subr.mxu0 %v1049
        %1085 = vmatpush1.msra.mxu0 %v1048
        %1086 = vmatprep.subr.mxu0 %v1051
        %1087 = vmatpush1.msra.mxu0 %v1050
        %1088 = vmatprep.subr.mxu0 %v1053
        %1089 = vmatpush1.msra.mxu0 %v1052
        %1090 = vmatprep.subr.mxu0 %v1055
        %1091 = vmatpush1.msra.mxu0 %v1054
        %1092 = vmatprep.subr.mxu0 %v1057
        %1093 = vmatpush1.msra.mxu0 %v1056
        %1094 = vmatprep.subr.mxu0 %v1059
        %1095 = vmatpush1.msra.mxu0 %v1058
        %1096 = vmatprep.subr.mxu0 %v1061
        %1097 = vmatpush1.msra.mxu0 %v1060
        %1098 = vmatprep.subr.mxu0 0.0
        %1099 = vmatpush1.msra.mxu0 0.0
        %1100 = vmatprep.subr.mxu0 0.0
        %1101 = vmatpush1.msra.mxu0 0.0
        %1102 = vmatprep.subr.mxu0 0.0
        %1103 = vmatpush1.msra.mxu0 0.0
        %1104 = vmatprep.subr.mxu0 0.0
        %1105 = vmatpush1.msra.mxu0 0.0
        %1106 = vmatprep.subr.mxu0 0.0
        %1107 = vmatpush1.msra.mxu0 0.0
        %1108 = vmatprep.subr.mxu0 0.0
        %1109 = vmatpush1.msra.mxu0 0.0
        %1110 = vmatprep.subr.mxu0 0.0
        %1111 = vmatpush1.msra.mxu0 0.0
        %1112 = vmatprep.subr.mxu0 0.0
        %1113 = vmatpush1.msra.mxu0 0.0
        %1114 = vmatprep.subr.mxu0 0.0
        %1115 = vmatpush1.msra.mxu0 0.0
        %1116 = vmatprep.subr.mxu0 0.0
        %1117 = vmatpush1.msra.mxu0 0.0
        %1118 = vmatprep.subr.mxu0 0.0
        %1119 = vmatpush1.msra.mxu0 0.0
        %1120 = vmatprep.subr.mxu0 0.0
        %1121 = vmatpush1.msra.mxu0 0.0
        %1122 = vmatprep.subr.mxu0 0.0
        %1123 = vmatpush1.msra.mxu0 0.0
        %1124 = vmatprep.subr.mxu0 0.0
        %1125 = vmatpush1.msra.mxu0 0.0
        %1126 = vmatprep.mubr.f32.mxu0 %v432
        %1127 = vmatmul.mubr.f32.gmra.mrb[0].mxu0 %v384
        %v1128 = vpop.f32.mrb[0].mxu0
        %v1129 = vadd.f32 0.0, %v1128
        %v1130 = vpop.f32.mrb[0].mxu0
        %v1131 = vadd.f32 0.0, %v1130
        %1132 = vmatprep.mubr.f32.mxu0 %v435
        %1133 = vmatmul.mubr.f32.gmra.mrb[0].mxu0 %v386
        %v1134 = vpop.f32.mrb[0].mxu0
        %v1135 = vadd.f32 0.0, %v1134
        %v1136 = vpop.f32.mrb[0].mxu0
        %v1137 = vadd.f32 0.0, %v1136
        %1138 = vmatprep.mubr.f32.mxu0 %v438
        %1139 = vmatmul.mubr.f32.gmra.mrb[0].mxu0 %v388
        %v1140 = vpop.f32.mrb[0].mxu0
        %v1141 = vadd.f32 0.0, %v1140
        %v1142 = vpop.f32.mrb[0].mxu0
        %v1143 = vadd.f32 0.0, %v1142
        %1144 = vmatprep.mubr.f32.mxu0 %v441
        %1145 = vmatmul.mubr.f32.gmra.mrb[0].mxu0 %v390
        %v1146 = vpop.f32.mrb[0].mxu0
        %v1147 = vadd.f32 0.0, %v1146
        %v1148 = vpop.f32.mrb[0].mxu0
        %v1149 = vadd.f32 0.0, %v1148
        %1150 = vmatprep.mubr.f32.mxu0 %v444
        %1151 = vmatmul.mubr.f32.gmra.mrb[0].mxu0 %v392
        %v1152 = vpop.f32.mrb[0].mxu0
        %v1153 = vadd.f32 0.0, %v1152
        %v1154 = vpop.f32.mrb[0].mxu0
        %v1155 = vadd.f32 0.0, %v1154
        %1156 = vdwg.mxu0
        %v1159 = vrot.slane %v1129, 4
        %v1160 = vrot.slane %v1131, 4
        %v1163 = vadd.f32 %v999, %v1159
        %v1164 = vadd.f32 %v1000, %v1160
        %v1167 = vrot.slane %v1135, 4
        %v1168 = vrot.slane %v1137, 4
        %v1171 = vadd.f32 %v999, %v1167
        %v1172 = vadd.f32 %v1000, %v1168
        %v1173 = vadd.f32 %v1007, %v1167
        %v1174 = vadd.f32 %v1008, %v1168
        %v1177 = vrot.slane %v1141, 4
        %v1178 = vrot.slane %v1143, 4
        %v1181 = vadd.f32 %v1007, %v1177
        %v1182 = vadd.f32 %v1008, %v1178
        %v1183 = vadd.f32 %v1015, %v1177
        %v1184 = vadd.f32 %v1016, %v1178
        %v1187 = vrot.slane %v1147, 4
        %v1188 = vrot.slane %v1149, 4
        %v1191 = vadd.f32 %v1015, %v1187
        %v1192 = vadd.f32 %v1016, %v1188
        %v1193 = vadd.f32 %v1023, %v1187
        %v1194 = vadd.f32 %v1024, %v1188
        %v1197 = vrot.slane %v1153, 4
        %v1198 = vrot.slane %v1155, 4
        %v1201 = vadd.f32 %v1023, %v1197
        %v1202 = vadd.f32 %v1024, %v1198
        %s1203 = scalar_lea.vmem %s1, 1440
        %v1204 = vld [vmem:[%s1203] sm:$0xff]
        %v1205 = vld [vmem:[%s1203 + $0x8] sm:$0xff]
        %v1206 = vld [vmem:[%s1203 + $0x10] sm:$0xff]
        %v1207 = vld [vmem:[%s1203 + $0x18] sm:$0xff]
        %v1208 = vld [vmem:[%s1203 + $0x20] sm:$0xff]
        %v1209 = vld [vmem:[%s1203 + $0x28] sm:$0xff]
        %v1210 = vld [vmem:[%s1203 + $0x30] sm:$0xff]
        %v1211 = vld [vmem:[%s1203 + $0x38] sm:$0xff]
        %v1212 = vld [vmem:[%s1203 + $0x40] sm:$0xff]
        %v1213 = vld [vmem:[%s1203 + $0x48] sm:$0xff]
        %v1214 = vld [vmem:[%s1203 + $0x50] sm:$0xff]
        %v1215 = vld [vmem:[%s1203 + $0x58] sm:$0xff]
        %v1216 = vld [vmem:[%s1203 + $0x60] sm:$0xff]
        %v1217 = vld [vmem:[%s1203 + $0x68] sm:$0xff]
        %v1218 = vld [vmem:[%s1203 + $0x70] sm:$0xff]
        %v1219 = vld [vmem:[%s1203 + $0x78] sm:$0xff]
        %v1220 = vld [vmem:[%s1203 + $0x80] sm:$0xff]
        %v1221 = vld [vmem:[%s1203 + $0x88] sm:$0xff]
        %v1222 = vld [vmem:[%s1203 + $0x90] sm:$0xff]
        %v1223 = vld [vmem:[%s1203 + $0x98] sm:$0xff]
        %v1224 = vld [vmem:[%s1203 + $0xa0] sm:$0xff]
        %v1225 = vld [vmem:[%s1203 + $0xa8] sm:$0xff]
        %v1226 = vld [vmem:[%s1203 + $0xb0] sm:$0xff]
        %v1227 = vld [vmem:[%s1203 + $0xb8] sm:$0xff]
        %v1228 = vld [vmem:[%s1203 + $0xc0] sm:$0xff]
        %v1229 = vld [vmem:[%s1203 + $0xc8] sm:$0xff]
        %v1230 = vld [vmem:[%s1203 + $0xd0] sm:$0xff]
        %v1231 = vld [vmem:[%s1203 + $0xd8] sm:$0xff]
        %v1232 = vld [vmem:[%s1203 + $0xe0] sm:$0xff]
        %v1233 = vld [vmem:[%s1203 + $0xe8] sm:$0xff]
        %v1234 = vld [vmem:[%s1203 + $0xf0] sm:$0xff]
        %v1235 = vld [vmem:[%s1203 + $0xf8] sm:$0xff]
        %v1236 = vld [vmem:[%s1203 + $0x100] sm:$0xff]
        %v1237 = vld [vmem:[%s1203 + $0x108] sm:$0xff]
        %v1238 = vld [vmem:[%s1203 + $0x110] sm:$0xff]
        %v1239 = vld [vmem:[%s1203 + $0x118] sm:$0xff]
        %1240 = vmatprep.subr.mxu0 %v1205
        %1241 = vmatpush1.msra.mxu0 %v1204
        %1242 = vmatprep.subr.mxu0 %v1207
        %1243 = vmatpush1.msra.mxu0 %v1206
        %1244 = vmatprep.subr.mxu0 %v1209
        %1245 = vmatpush1.msra.mxu0 %v1208
        %1246 = vmatprep.subr.mxu0 %v1211
        %1247 = vmatpush1.msra.mxu0 %v1210
        %1248 = vmatprep.subr.mxu0 %v1213
        %1249 = vmatpush1.msra.mxu0 %v1212
        %1250 = vmatprep.subr.mxu0 %v1215
        %1251 = vmatpush1.msra.mxu0 %v1214
        %1252 = vmatprep.subr.mxu0 %v1217
        %1253 = vmatpush1.msra.mxu0 %v1216
        %1254 = vmatprep.subr.mxu0 %v1219
        %1255 = vmatpush1.msra.mxu0 %v1218
        %1256 = vmatprep.subr.mxu0 %v1221
        %1257 = vmatpush1.msra.mxu0 %v1220
        %1258 = vmatprep.subr.mxu0 %v1223
        %1259 = vmatpush1.msra.mxu0 %v1222
        %1260 = vmatprep.subr.mxu0 %v1225
        %1261 = vmatpush1.msra.mxu0 %v1224
        %1262 = vmatprep.subr.mxu0 %v1227
        %1263 = vmatpush1.msra.mxu0 %v1226
        %1264 = vmatprep.subr.mxu0 %v1229
        %1265 = vmatpush1.msra.mxu0 %v1228
        %1266 = vmatprep.subr.mxu0 %v1231
        %1267 = vmatpush1.msra.mxu0 %v1230
        %1268 = vmatprep.subr.mxu0 %v1233
        %1269 = vmatpush1.msra.mxu0 %v1232
        %1270 = vmatprep.subr.mxu0 %v1235
        %1271 = vmatpush1.msra.mxu0 %v1234
        %1272 = vmatprep.subr.mxu0 %v1237
        %1273 = vmatpush1.msra.mxu0 %v1236
        %1274 = vmatprep.subr.mxu0 %v1239
        %1275 = vmatpush1.msra.mxu0 %v1238
        %1276 = vmatprep.subr.mxu0 0.0
        %1277 = vmatpush1.msra.mxu0 0.0
        %1278 = vmatprep.subr.mxu0 0.0
        %1279 = vmatpush1.msra.mxu0 0.0
        %1280 = vmatprep.subr.mxu0 0.0
        %1281 = vmatpush1.msra.mxu0 0.0
        %1282 = vmatprep.subr.mxu0 0.0
        %1283 = vmatpush1.msra.mxu0 0.0
        %1284 = vmatprep.subr.mxu0 0.0
        %1285 = vmatpush1.msra.mxu0 0.0
        %1286 = vmatprep.subr.mxu0 0.0
        %1287 = vmatpush1.msra.mxu0 0.0
        %1288 = vmatprep.subr.mxu0 0.0
        %1289 = vmatpush1.msra.mxu0 0.0
        %1290 = vmatprep.subr.mxu0 0.0
        %1291 = vmatpush1.msra.mxu0 0.0
        %1292 = vmatprep.subr.mxu0 0.0
        %1293 = vmatpush1.msra.mxu0 0.0
        %1294 = vmatprep.subr.mxu0 0.0
        %1295 = vmatpush1.msra.mxu0 0.0
        %1296 = vmatprep.subr.mxu0 0.0
        %1297 = vmatpush1.msra.mxu0 0.0
        %1298 = vmatprep.subr.mxu0 0.0
        %1299 = vmatpush1.msra.mxu0 0.0
        %1300 = vmatprep.subr.mxu0 0.0
        %1301 = vmatpush1.msra.mxu0 0.0
        %1302 = vmatprep.subr.mxu0 0.0
        %1303 = vmatpush1.msra.mxu0 0.0
        %1304 = vmatprep.mubr.f32.mxu0 %v432
        %1305 = vmatmul.mubr.f32.gmra.mrb[0].mxu0 %v384
        %v1306 = vpop.f32.mrb[0].mxu0
        %v1307 = vadd.f32 0.0, %v1306
        %v1308 = vpop.f32.mrb[0].mxu0
        %v1309 = vadd.f32 0.0, %v1308
        %1310 = vmatprep.mubr.f32.mxu0 %v435
        %1311 = vmatmul.mubr.f32.gmra.mrb[0].mxu0 %v386
        %v1312 = vpop.f32.mrb[0].mxu0
        %v1313 = vadd.f32 0.0, %v1312
        %v1314 = vpop.f32.mrb[0].mxu0
        %v1315 = vadd.f32 0.0, %v1314
        %1316 = vmatprep.mubr.f32.mxu0 %v438
        %1317 = vmatmul.mubr.f32.gmra.mrb[0].mxu0 %v388
        %v1318 = vpop.f32.mrb[0].mxu0
        %v1319 = vadd.f32 0.0, %v1318
        %v1320 = vpop.f32.mrb[0].mxu0
        %v1321 = vadd.f32 0.0, %v1320
        %1322 = vmatprep.mubr.f32.mxu0 %v441
        %1323 = vmatmul.mubr.f32.gmra.mrb[0].mxu0 %v390
        %v1324 = vpop.f32.mrb[0].mxu0
        %v1325 = vadd.f32 0.0, %v1324
        %v1326 = vpop.f32.mrb[0].mxu0
        %v1327 = vadd.f32 0.0, %v1326
        %1328 = vmatprep.mubr.f32.mxu0 %v444
        %1329 = vmatmul.mubr.f32.gmra.mrb[0].mxu0 %v392
        %v1330 = vpop.f32.mrb[0].mxu0
        %v1331 = vadd.f32 0.0, %v1330
        %v1332 = vpop.f32.mrb[0].mxu0
        %v1333 = vadd.f32 0.0, %v1332
        %1334 = vdwg.mxu0
        %v1337 = vrot.slane %v1307, 5
        %v1338 = vrot.slane %v1309, 5
        %v1341 = vadd.f32 %v1163, %v1337
        %v1342 = vadd.f32 %v1164, %v1338
        %v1345 = vrot.slane %v1313, 5
        %v1346 = vrot.slane %v1315, 5
        %v1349 = vadd.f32 %v1171, %v1345
        %v1350 = vadd.f32 %v1172, %v1346
        %v1351 = vadd.f32 %v1173, %v1345
        %v1352 = vadd.f32 %v1174, %v1346
        %v1355 = vrot.slane %v1319, 5
        %v1356 = vrot.slane %v1321, 5
        %v1359 = vadd.f32 %v1181, %v1355
        %v1360 = vadd.f32 %v1182, %v1356
        %v1361 = vadd.f32 %v1183, %v1355
        %v1362 = vadd.f32 %v1184, %v1356
        %v1365 = vrot.slane %v1325, 5
        %v1366 = vrot.slane %v1327, 5
        %v1369 = vadd.f32 %v1191, %v1365
        %v1370 = vadd.f32 %v1192, %v1366
        %v1371 = vadd.f32 %v1193, %v1365
        %v1372 = vadd.f32 %v1194, %v1366
        %v1375 = vrot.slane %v1331, 5
        %v1376 = vrot.slane %v1333, 5
        %v1379 = vadd.f32 %v1201, %v1375
        %v1380 = vadd.f32 %v1202, %v1376
        %s1381 = scalar_lea.vmem %s1, 1728
        %v1382 = vld [vmem:[%s1381] sm:$0xff]
        %v1383 = vld [vmem:[%s1381 + $0x8] sm:$0xff]
        %v1384 = vld [vmem:[%s1381 + $0x10] sm:$0xff]
        %v1385 = vld [vmem:[%s1381 + $0x18] sm:$0xff]
        %v1386 = vld [vmem:[%s1381 + $0x20] sm:$0xff]
        %v1387 = vld [vmem:[%s1381 + $0x28] sm:$0xff]
        %v1388 = vld [vmem:[%s1381 + $0x30] sm:$0xff]
        %v1389 = vld [vmem:[%s1381 + $0x38] sm:$0xff]
        %v1390 = vld [vmem:[%s1381 + $0x40] sm:$0xff]
        %v1391 = vld [vmem:[%s1381 + $0x48] sm:$0xff]
        %v1392 = vld [vmem:[%s1381 + $0x50] sm:$0xff]
        %v1393 = vld [vmem:[%s1381 + $0x58] sm:$0xff]
        %v1394 = vld [vmem:[%s1381 + $0x60] sm:$0xff]
        %v1395 = vld [vmem:[%s1381 + $0x68] sm:$0xff]
        %v1396 = vld [vmem:[%s1381 + $0x70] sm:$0xff]
        %v1397 = vld [vmem:[%s1381 + $0x78] sm:$0xff]
        %v1398 = vld [vmem:[%s1381 + $0x80] sm:$0xff]
        %v1399 = vld [vmem:[%s1381 + $0x88] sm:$0xff]
        %v1400 = vld [vmem:[%s1381 + $0x90] sm:$0xff]
        %v1401 = vld [vmem:[%s1381 + $0x98] sm:$0xff]
        %v1402 = vld [vmem:[%s1381 + $0xa0] sm:$0xff]
        %v1403 = vld [vmem:[%s1381 + $0xa8] sm:$0xff]
        %v1404 = vld [vmem:[%s1381 + $0xb0] sm:$0xff]
        %v1405 = vld [vmem:[%s1381 + $0xb8] sm:$0xff]
        %v1406 = vld [vmem:[%s1381 + $0xc0] sm:$0xff]
        %v1407 = vld [vmem:[%s1381 + $0xc8] sm:$0xff]
        %v1408 = vld [vmem:[%s1381 + $0xd0] sm:$0xff]
        %v1409 = vld [vmem:[%s1381 + $0xd8] sm:$0xff]
        %v1410 = vld [vmem:[%s1381 + $0xe0] sm:$0xff]
        %v1411 = vld [vmem:[%s1381 + $0xe8] sm:$0xff]
        %v1412 = vld [vmem:[%s1381 + $0xf0] sm:$0xff]
        %v1413 = vld [vmem:[%s1381 + $0xf8] sm:$0xff]
        %v1414 = vld [vmem:[%s1381 + $0x100] sm:$0xff]
        %v1415 = vld [vmem:[%s1381 + $0x108] sm:$0xff]
        %v1416 = vld [vmem:[%s1381 + $0x110] sm:$0xff]
        %v1417 = vld [vmem:[%s1381 + $0x118] sm:$0xff]
        %1418 = vmatprep.subr.mxu0 %v1383
        %1419 = vmatpush1.msra.mxu0 %v1382
        %1420 = vmatprep.subr.mxu0 %v1385
        %1421 = vmatpush1.msra.mxu0 %v1384
        %1422 = vmatprep.subr.mxu0 %v1387
        %1423 = vmatpush1.msra.mxu0 %v1386
        %1424 = vmatprep.subr.mxu0 %v1389
        %1425 = vmatpush1.msra.mxu0 %v1388
        %1426 = vmatprep.subr.mxu0 %v1391
        %1427 = vmatpush1.msra.mxu0 %v1390
        %1428 = vmatprep.subr.mxu0 %v1393
        %1429 = vmatpush1.msra.mxu0 %v1392
        %1430 = vmatprep.subr.mxu0 %v1395
        %1431 = vmatpush1.msra.mxu0 %v1394
        %1432 = vmatprep.subr.mxu0 %v1397
        %1433 = vmatpush1.msra.mxu0 %v1396
        %1434 = vmatprep.subr.mxu0 %v1399
        %1435 = vmatpush1.msra.mxu0 %v1398
        %1436 = vmatprep.subr.mxu0 %v1401
        %1437 = vmatpush1.msra.mxu0 %v1400
        %1438 = vmatprep.subr.mxu0 %v1403
        %1439 = vmatpush1.msra.mxu0 %v1402
        %1440 = vmatprep.subr.mxu0 %v1405
        %1441 = vmatpush1.msra.mxu0 %v1404
        %1442 = vmatprep.subr.mxu0 %v1407
        %1443 = vmatpush1.msra.mxu0 %v1406
        %1444 = vmatprep.subr.mxu0 %v1409
        %1445 = vmatpush1.msra.mxu0 %v1408
        %1446 = vmatprep.subr.mxu0 %v1411
        %1447 = vmatpush1.msra.mxu0 %v1410
        %1448 = vmatprep.subr.mxu0 %v1413
        %1449 = vmatpush1.msra.mxu0 %v1412
        %1450 = vmatprep.subr.mxu0 %v1415
        %1451 = vmatpush1.msra.mxu0 %v1414
        %1452 = vmatprep.subr.mxu0 %v1417
        %1453 = vmatpush1.msra.mxu0 %v1416
        %1454 = vmatprep.subr.mxu0 0.0
        %1455 = vmatpush1.msra.mxu0 0.0
        %1456 = vmatprep.subr.mxu0 0.0
        %1457 = vmatpush1.msra.mxu0 0.0
        %1458 = vmatprep.subr.mxu0 0.0
        %1459 = vmatpush1.msra.mxu0 0.0
        %1460 = vmatprep.subr.mxu0 0.0
        %1461 = vmatpush1.msra.mxu0 0.0
        %1462 = vmatprep.subr.mxu0 0.0
        %1463 = vmatpush1.msra.mxu0 0.0
        %1464 = vmatprep.subr.mxu0 0.0
        %1465 = vmatpush1.msra.mxu0 0.0
        %1466 = vmatprep.subr.mxu0 0.0
        %1467 = vmatpush1.msra.mxu0 0.0
        %1468 = vmatprep.subr.mxu0 0.0
        %1469 = vmatpush1.msra.mxu0 0.0
        %1470 = vmatprep.subr.mxu0 0.0
        %1471 = vmatpush1.msra.mxu0 0.0
        %1472 = vmatprep.subr.mxu0 0.0
        %1473 = vmatpush1.msra.mxu0 0.0
        %1474 = vmatprep.subr.mxu0 0.0
        %1475 = vmatpush1.msra.mxu0 0.0
        %1476 = vmatprep.subr.mxu0 0.0
        %1477 = vmatpush1.msra.mxu0 0.0
        %1478 = vmatprep.subr.mxu0 0.0
        %1479 = vmatpush1.msra.mxu0 0.0
        %1480 = vmatprep.subr.mxu0 0.0
        %1481 = vmatpush1.msra.mxu0 0.0
        %1482 = vmatprep.mubr.f32.mxu0 %v432
        %1483 = vmatmul.mubr.f32.gmra.mrb[0].mxu0 %v384
        %v1484 = vpop.f32.mrb[0].mxu0
        %v1485 = vadd.f32 0.0, %v1484
        %v1486 = vpop.f32.mrb[0].mxu0
        %v1487 = vadd.f32 0.0, %v1486
        %1488 = vmatprep.mubr.f32.mxu0 %v435
        %1489 = vmatmul.mubr.f32.gmra.mrb[0].mxu0 %v386
        %v1490 = vpop.f32.mrb[0].mxu0
        %v1491 = vadd.f32 0.0, %v1490
        %v1492 = vpop.f32.mrb[0].mxu0
        %v1493 = vadd.f32 0.0, %v1492
        %1494 = vmatprep.mubr.f32.mxu0 %v438
        %1495 = vmatmul.mubr.f32.gmra.mrb[0].mxu0 %v388
        %v1496 = vpop.f32.mrb[0].mxu0
        %v1497 = vadd.f32 0.0, %v1496
        %v1498 = vpop.f32.mrb[0].mxu0
        %v1499 = vadd.f32 0.0, %v1498
        %1500 = vmatprep.mubr.f32.mxu0 %v441
        %1501 = vmatmul.mubr.f32.gmra.mrb[0].mxu0 %v390
        %v1502 = vpop.f32.mrb[0].mxu0
        %v1503 = vadd.f32 0.0, %v1502
        %v1504 = vpop.f32.mrb[0].mxu0
        %v1505 = vadd.f32 0.0, %v1504
        %1506 = vmatprep.mubr.f32.mxu0 %v444
        %1507 = vmatmul.mubr.f32.gmra.mrb[0].mxu0 %v392
        %v1508 = vpop.f32.mrb[0].mxu0
        %v1509 = vadd.f32 0.0, %v1508
        %v1510 = vpop.f32.mrb[0].mxu0
        %v1511 = vadd.f32 0.0, %v1510
        %1512 = vdwg.mxu0
        %v1515 = vrot.slane %v1485, 6
        %v1516 = vrot.slane %v1487, 6
        %v1519 = vadd.f32 %v1341, %v1515
        %v1520 = vadd.f32 %v1342, %v1516
        %v1523 = vrot.slane %v1491, 6
        %v1524 = vrot.slane %v1493, 6
        %v1527 = vadd.f32 %v1349, %v1523
        %v1528 = vadd.f32 %v1350, %v1524
        %v1529 = vadd.f32 %v1351, %v1523
        %v1530 = vadd.f32 %v1352, %v1524
        %v1533 = vrot.slane %v1497, 6
        %v1534 = vrot.slane %v1499, 6
        %v1537 = vadd.f32 %v1359, %v1533
        %v1538 = vadd.f32 %v1360, %v1534
        %v1539 = vadd.f32 %v1361, %v1533
        %v1540 = vadd.f32 %v1362, %v1534
        %v1543 = vrot.slane %v1503, 6
        %v1544 = vrot.slane %v1505, 6
        %v1547 = vadd.f32 %v1369, %v1543
        %v1548 = vadd.f32 %v1370, %v1544
        %v1549 = vadd.f32 %v1371, %v1543
        %v1550 = vadd.f32 %v1372, %v1544
        %v1553 = vrot.slane %v1509, 6
        %v1554 = vrot.slane %v1511, 6
        %v1557 = vadd.f32 %v1379, %v1553
        %v1558 = vadd.f32 %v1380, %v1554
        %s1559 = scalar_lea.vmem %s1, 2016
        %v1560 = vld [vmem:[%s1559] sm:$0xff]
        %v1561 = vld [vmem:[%s1559 + $0x8] sm:$0xff]
        %v1562 = vld [vmem:[%s1559 + $0x10] sm:$0xff]
        %v1563 = vld [vmem:[%s1559 + $0x18] sm:$0xff]
        %v1564 = vld [vmem:[%s1559 + $0x20] sm:$0xff]
        %v1565 = vld [vmem:[%s1559 + $0x28] sm:$0xff]
        %v1566 = vld [vmem:[%s1559 + $0x30] sm:$0xff]
        %v1567 = vld [vmem:[%s1559 + $0x38] sm:$0xff]
        %v1568 = vld [vmem:[%s1559 + $0x40] sm:$0xff]
        %v1569 = vld [vmem:[%s1559 + $0x48] sm:$0xff]
        %v1570 = vld [vmem:[%s1559 + $0x50] sm:$0xff]
        %v1571 = vld [vmem:[%s1559 + $0x58] sm:$0xff]
        %v1572 = vld [vmem:[%s1559 + $0x60] sm:$0xff]
        %v1573 = vld [vmem:[%s1559 + $0x68] sm:$0xff]
        %v1574 = vld [vmem:[%s1559 + $0x70] sm:$0xff]
        %v1575 = vld [vmem:[%s1559 + $0x78] sm:$0xff]
        %v1576 = vld [vmem:[%s1559 + $0x80] sm:$0xff]
        %v1577 = vld [vmem:[%s1559 + $0x88] sm:$0xff]
        %v1578 = vld [vmem:[%s1559 + $0x90] sm:$0xff]
        %v1579 = vld [vmem:[%s1559 + $0x98] sm:$0xff]
        %v1580 = vld [vmem:[%s1559 + $0xa0] sm:$0xff]
        %v1581 = vld [vmem:[%s1559 + $0xa8] sm:$0xff]
        %v1582 = vld [vmem:[%s1559 + $0xb0] sm:$0xff]
        %v1583 = vld [vmem:[%s1559 + $0xb8] sm:$0xff]
        %v1584 = vld [vmem:[%s1559 + $0xc0] sm:$0xff]
        %v1585 = vld [vmem:[%s1559 + $0xc8] sm:$0xff]
        %v1586 = vld [vmem:[%s1559 + $0xd0] sm:$0xff]
        %v1587 = vld [vmem:[%s1559 + $0xd8] sm:$0xff]
        %v1588 = vld [vmem:[%s1559 + $0xe0] sm:$0xff]
        %v1589 = vld [vmem:[%s1559 + $0xe8] sm:$0xff]
        %v1590 = vld [vmem:[%s1559 + $0xf0] sm:$0xff]
        %v1591 = vld [vmem:[%s1559 + $0xf8] sm:$0xff]
        %v1592 = vld [vmem:[%s1559 + $0x100] sm:$0xff]
        %v1593 = vld [vmem:[%s1559 + $0x108] sm:$0xff]
        %v1594 = vld [vmem:[%s1559 + $0x110] sm:$0xff]
        %v1595 = vld [vmem:[%s1559 + $0x118] sm:$0xff]
        %1596 = vmatprep.subr.mxu0 %v1561
        %1597 = vmatpush1.msra.mxu0 %v1560
        %1598 = vmatprep.subr.mxu0 %v1563
        %1599 = vmatpush1.msra.mxu0 %v1562
        %1600 = vmatprep.subr.mxu0 %v1565
        %1601 = vmatpush1.msra.mxu0 %v1564
        %1602 = vmatprep.subr.mxu0 %v1567
        %1603 = vmatpush1.msra.mxu0 %v1566
        %1604 = vmatprep.subr.mxu0 %v1569
        %1605 = vmatpush1.msra.mxu0 %v1568
        %1606 = vmatprep.subr.mxu0 %v1571
        %1607 = vmatpush1.msra.mxu0 %v1570
        %1608 = vmatprep.subr.mxu0 %v1573
        %1609 = vmatpush1.msra.mxu0 %v1572
        %1610 = vmatprep.subr.mxu0 %v1575
        %1611 = vmatpush1.msra.mxu0 %v1574
        %1612 = vmatprep.subr.mxu0 %v1577
        %1613 = vmatpush1.msra.mxu0 %v1576
        %1614 = vmatprep.subr.mxu0 %v1579
        %1615 = vmatpush1.msra.mxu0 %v1578
        %1616 = vmatprep.subr.mxu0 %v1581
        %1617 = vmatpush1.msra.mxu0 %v1580
        %1618 = vmatprep.subr.mxu0 %v1583
        %1619 = vmatpush1.msra.mxu0 %v1582
        %1620 = vmatprep.subr.mxu0 %v1585
        %1621 = vmatpush1.msra.mxu0 %v1584
        %1622 = vmatprep.subr.mxu0 %v1587
        %1623 = vmatpush1.msra.mxu0 %v1586
        %1624 = vmatprep.subr.mxu0 %v1589
        %1625 = vmatpush1.msra.mxu0 %v1588
        %1626 = vmatprep.subr.mxu0 %v1591
        %1627 = vmatpush1.msra.mxu0 %v1590
        %1628 = vmatprep.subr.mxu0 %v1593
        %1629 = vmatpush1.msra.mxu0 %v1592
        %1630 = vmatprep.subr.mxu0 %v1595
        %1631 = vmatpush1.msra.mxu0 %v1594
        %1632 = vmatprep.subr.mxu0 0.0
        %1633 = vmatpush1.msra.mxu0 0.0
        %1634 = vmatprep.subr.mxu0 0.0
        %1635 = vmatpush1.msra.mxu0 0.0
        %1636 = vmatprep.subr.mxu0 0.0
        %1637 = vmatpush1.msra.mxu0 0.0
        %1638 = vmatprep.subr.mxu0 0.0
        %1639 = vmatpush1.msra.mxu0 0.0
        %1640 = vmatprep.subr.mxu0 0.0
        %1641 = vmatpush1.msra.mxu0 0.0
        %1642 = vmatprep.subr.mxu0 0.0
        %1643 = vmatpush1.msra.mxu0 0.0
        %1644 = vmatprep.subr.mxu0 0.0
        %1645 = vmatpush1.msra.mxu0 0.0
        %1646 = vmatprep.subr.mxu0 0.0
        %1647 = vmatpush1.msra.mxu0 0.0
        %1648 = vmatprep.subr.mxu0 0.0
        %1649 = vmatpush1.msra.mxu0 0.0
        %1650 = vmatprep.subr.mxu0 0.0
        %1651 = vmatpush1.msra.mxu0 0.0
        %1652 = vmatprep.subr.mxu0 0.0
        %1653 = vmatpush1.msra.mxu0 0.0
        %1654 = vmatprep.subr.mxu0 0.0
        %1655 = vmatpush1.msra.mxu0 0.0
        %1656 = vmatprep.subr.mxu0 0.0
        %1657 = vmatpush1.msra.mxu0 0.0
        %1658 = vmatprep.subr.mxu0 0.0
        %1659 = vmatpush1.msra.mxu0 0.0
        %1660 = vmatprep.mubr.f32.mxu0 %v432
        %1661 = vmatmul.mubr.f32.gmra.mrb[0].mxu0 %v384
        %v1662 = vpop.f32.mrb[0].mxu0
        %v1663 = vadd.f32 0.0, %v1662
        %v1664 = vpop.f32.mrb[0].mxu0
        %v1665 = vadd.f32 0.0, %v1664
        %1666 = vmatprep.mubr.f32.mxu0 %v435
        %1667 = vmatmul.mubr.f32.gmra.mrb[0].mxu0 %v386
        %v1668 = vpop.f32.mrb[0].mxu0
        %v1669 = vadd.f32 0.0, %v1668
        %v1670 = vpop.f32.mrb[0].mxu0
        %v1671 = vadd.f32 0.0, %v1670
        %1672 = vmatprep.mubr.f32.mxu0 %v438
        %1673 = vmatmul.mubr.f32.gmra.mrb[0].mxu0 %v388
        %v1674 = vpop.f32.mrb[0].mxu0
        %v1675 = vadd.f32 0.0, %v1674
        %v1676 = vpop.f32.mrb[0].mxu0
        %v1677 = vadd.f32 0.0, %v1676
        %1678 = vmatprep.mubr.f32.mxu0 %v441
        %1679 = vmatmul.mubr.f32.gmra.mrb[0].mxu0 %v390
        %v1680 = vpop.f32.mrb[0].mxu0
        %v1681 = vadd.f32 0.0, %v1680
        %v1682 = vpop.f32.mrb[0].mxu0
        %v1683 = vadd.f32 0.0, %v1682
        %1684 = vmatprep.mubr.f32.mxu0 %v444
        %1685 = vmatmul.mubr.f32.gmra.mrb[0].mxu0 %v392
        %v1686 = vpop.f32.mrb[0].mxu0
        %v1687 = vadd.f32 0.0, %v1686
        %v1688 = vpop.f32.mrb[0].mxu0
        %v1689 = vadd.f32 0.0, %v1688
        %1690 = vdwg.mxu0
        %v1693 = vrot.slane %v1663, 7
        %v1694 = vrot.slane %v1665, 7
        %v1697 = vadd.f32 %v1519, %v1693
        %v1698 = vadd.f32 %v1520, %v1694
        %v1701 = vrot.slane %v1669, 7
        %v1702 = vrot.slane %v1671, 7
        %v1705 = vadd.f32 %v1527, %v1701
        %v1706 = vadd.f32 %v1528, %v1702
        %v1707 = vadd.f32 %v1529, %v1701
        %v1708 = vadd.f32 %v1530, %v1702
        %v1711 = vrot.slane %v1675, 7
        %v1712 = vrot.slane %v1677, 7
        %v1715 = vadd.f32 %v1537, %v1711
        %v1716 = vadd.f32 %v1538, %v1712
        %v1717 = vadd.f32 %v1539, %v1711
        %v1718 = vadd.f32 %v1540, %v1712
        %v1721 = vrot.slane %v1681, 7
        %v1722 = vrot.slane %v1683, 7
        %v1725 = vadd.f32 %v1547, %v1721
        %v1726 = vadd.f32 %v1548, %v1722
        %v1727 = vadd.f32 %v1549, %v1721
        %v1728 = vadd.f32 %v1550, %v1722
        %v1731 = vrot.slane %v1687, 7
        %v1732 = vrot.slane %v1689, 7
        %v1735 = vadd.f32 %v1557, %v1731
        %v1736 = vadd.f32 %v1558, %v1732
        %v1739 = vcombine.low %v1697, %v1698
        %v1741 = vunpack.c.l.s4 1966171168
        %v1742 = vunpack.c.0.s8 %v1741
        %v1743 = vlaneseq
        %v1744 = vshrl.u32 %v1743, 7
        %v1745 = vsub.s32 %v1742, %v1744
        %v1746 = vrot.slane %v1739, %v1745
        %v1748 = vunpack.c.l.s4 1966171168
        %v1749 = vunpack.c.0.s8 %v1748
        %v1750 = vlaneseq
        %v1751 = vshrl.u32 %v1750, 7
        %v1752 = vsub.s32 %v1749, %v1751
        %v1753 = vrot.slane %v1746, %v1752
        %v1755 = vlaneseq
        %vm1756 = vcmp.ge.s32.totalorder %v1755, 0
        %vm1757 = vcmp.lt.s32.totalorder %v1755, 256
        %vm1758 = vmand %vm1756, %vm1757
        %1759 = vst.msk [vmem:[#allocation2] ss:$8 sm:$0x3] %vm1758, %v1753
        %1760 = vst.msk [vmem:[#allocation2] ss:$8 sm:$0x0] %vm1758, %v1753
        %v1763 = vcombine.high %v1705, %v1706
        %v1765 = vunpack.c.l.s4 1966171168
        %v1766 = vunpack.c.0.s8 %v1765
        %v1767 = vlaneseq
        %v1768 = vshrl.u32 %v1767, 7
        %v1769 = vsub.s32 %v1766, %v1768
        %v1770 = vrot.slane %v1763, %v1769
        %v1772 = vunpack.c.l.s4 1966171168
        %v1773 = vunpack.c.0.s8 %v1772
        %v1774 = vlaneseq
        %v1775 = vshrl.u32 %v1774, 7
        %v1776 = vsub.s32 %v1773, %v1775
        %v1777 = vrot.slane %v1770, %v1776
        %s1779 = scalar_lea.vmem [#allocation2], 1
        %1780 = vst.msk [vmem:[%s1779] ss:$8 sm:$0x3] %vm1758, %v1777
        %1781 = vst.msk [vmem:[%s1779] ss:$8 sm:$0x0] %vm1758, %v1777
        %v1784 = vcombine.low %v1707, %v1708
        %v1786 = vunpack.c.l.s4 1966171168
        %v1787 = vunpack.c.0.s8 %v1786
        %v1788 = vlaneseq
        %v1789 = vshrl.u32 %v1788, 7
        %v1790 = vsub.s32 %v1787, %v1789
        %v1791 = vrot.slane %v1784, %v1790
        %v1793 = vunpack.c.l.s4 1966171168
        %v1794 = vunpack.c.0.s8 %v1793
        %v1795 = vlaneseq
        %v1796 = vshrl.u32 %v1795, 7
        %v1797 = vsub.s32 %v1794, %v1796
        %v1798 = vrot.slane %v1791, %v1797
        %s1800 = scalar_lea.vmem [#allocation2], 2
        %1801 = vst.msk [vmem:[%s1800] ss:$8 sm:$0x3] %vm1758, %v1798
        %1802 = vst.msk [vmem:[%s1800] ss:$8 sm:$0x0] %vm1758, %v1798
        %v1805 = vcombine.high %v1715, %v1716
        %v1807 = vunpack.c.l.s4 1966171168
        %v1808 = vunpack.c.0.s8 %v1807
        %v1809 = vlaneseq
        %v1810 = vshrl.u32 %v1809, 7
        %v1811 = vsub.s32 %v1808, %v1810
        %v1812 = vrot.slane %v1805, %v1811
        %v1814 = vunpack.c.l.s4 1966171168
        %v1815 = vunpack.c.0.s8 %v1814
        %v1816 = vlaneseq
        %v1817 = vshrl.u32 %v1816, 7
        %v1818 = vsub.s32 %v1815, %v1817
        %v1819 = vrot.slane %v1812, %v1818
        %s1821 = scalar_lea.vmem [#allocation2], 3
        %1822 = vst.msk [vmem:[%s1821] ss:$8 sm:$0x3] %vm1758, %v1819
        %1823 = vst.msk [vmem:[%s1821] ss:$8 sm:$0x0] %vm1758, %v1819
        %v1826 = vcombine.low %v1717, %v1718
        %v1828 = vunpack.c.l.s4 1966171168
        %v1829 = vunpack.c.0.s8 %v1828
        %v1830 = vlaneseq
        %v1831 = vshrl.u32 %v1830, 7
        %v1832 = vsub.s32 %v1829, %v1831
        %v1833 = vrot.slane %v1826, %v1832
        %v1835 = vunpack.c.l.s4 1966171168
        %v1836 = vunpack.c.0.s8 %v1835
        %v1837 = vlaneseq
        %v1838 = vshrl.u32 %v1837, 7
        %v1839 = vsub.s32 %v1836, %v1838
        %v1840 = vrot.slane %v1833, %v1839
        %s1842 = scalar_lea.vmem [#allocation2], 4
        %1843 = vst.msk [vmem:[%s1842] ss:$8 sm:$0x3] %vm1758, %v1840
        %1844 = vst.msk [vmem:[%s1842] ss:$8 sm:$0x0] %vm1758, %v1840
        %v1847 = vcombine.high %v1725, %v1726
        %v1849 = vunpack.c.l.s4 1966171168
        %v1850 = vunpack.c.0.s8 %v1849
        %v1851 = vlaneseq
        %v1852 = vshrl.u32 %v1851, 7
        %v1853 = vsub.s32 %v1850, %v1852
        %v1854 = vrot.slane %v1847, %v1853
        %v1856 = vunpack.c.l.s4 1966171168
        %v1857 = vunpack.c.0.s8 %v1856
        %v1858 = vlaneseq
        %v1859 = vshrl.u32 %v1858, 7
        %v1860 = vsub.s32 %v1857, %v1859
        %v1861 = vrot.slane %v1854, %v1860
        %s1863 = scalar_lea.vmem [#allocation2], 5
        %1864 = vst.msk [vmem:[%s1863] ss:$8 sm:$0x3] %vm1758, %v1861
        %1865 = vst.msk [vmem:[%s1863] ss:$8 sm:$0x0] %vm1758, %v1861
        %v1868 = vcombine.low %v1727, %v1728
        %v1870 = vunpack.c.l.s4 1966171168
        %v1871 = vunpack.c.0.s8 %v1870
        %v1872 = vlaneseq
        %v1873 = vshrl.u32 %v1872, 7
        %v1874 = vsub.s32 %v1871, %v1873
        %v1875 = vrot.slane %v1868, %v1874
        %v1877 = vunpack.c.l.s4 1966171168
        %v1878 = vunpack.c.0.s8 %v1877
        %v1879 = vlaneseq
        %v1880 = vshrl.u32 %v1879, 7
        %v1881 = vsub.s32 %v1878, %v1880
        %v1882 = vrot.slane %v1875, %v1881
        %s1884 = scalar_lea.vmem [#allocation2], 6
        %1885 = vst.msk [vmem:[%s1884] ss:$8 sm:$0x3] %vm1758, %v1882
        %1886 = vst.msk [vmem:[%s1884] ss:$8 sm:$0x0] %vm1758, %v1882
        %v1889 = vcombine.high %v1735, %v1736
        %v1891 = vunpack.c.l.s4 1966171168
        %v1892 = vunpack.c.0.s8 %v1891
        %v1893 = vlaneseq
        %v1894 = vshrl.u32 %v1893, 7
        %v1895 = vsub.s32 %v1892, %v1894
        %v1896 = vrot.slane %v1889, %v1895
        %v1898 = vunpack.c.l.s4 1966171168
        %v1899 = vunpack.c.0.s8 %v1898
        %v1900 = vlaneseq
        %v1901 = vshrl.u32 %v1900, 7
        %v1902 = vsub.s32 %v1899, %v1901
        %v1903 = vrot.slane %v1896, %v1902
        %s1905 = scalar_lea.vmem [#allocation2], 7
        %1906 = vst.msk [vmem:[%s1905] ss:$8 sm:$0x3] %vm1758, %v1903
        %1907 = vst.msk [vmem:[%s1905] ss:$8 sm:$0x0] %vm1758, %v1903
        %v1908 = vld [vmem:[#allocation2] sm:$0xff]
        %v1909 = vld [vmem:[#allocation2 + $0x8] sm:$0xff]
        %v1910 = vld [vmem:[%s2] sm:$0x3]
        %v1912 = vlaneseq
        %v1913 = vshrl.u32 %v1912, 7
        %v1914 = vsub.s32 0, %v1913
        %v1915 = vrot.slane %v1910, %v1914
        %v1916 = vlaneseq
        %v1917 = vshrl.u32 %v1916, 7
        %v1918 = vsub.s32 1, %v1917
        %v1919 = vrot.slane %v1910, %v1918
        %v1922 = vadd.f32 %v1908, %v1915
        %v1923 = vadd.f32 %v1909, %v1919
        %v1924 = vmax.f32 %v1922, 0.0
        %v1925 = vmax.f32 %v1923, 0.0
        %v1926 = vld [vmem:[%s3] sm:$0xff]
        %v1927 = vld [vmem:[%s3 + $0x8] sm:$0xff]
        %v1928 = vld [vmem:[%s3 + $0x10] sm:$0xff]
        %v1929 = vld [vmem:[%s3 + $0x18] sm:$0xff]
        %v1930 = vld [vmem:[%s3 + $0x20] sm:$0xff]
        %v1931 = vld [vmem:[%s3 + $0x28] sm:$0xff]
        %v1932 = vld [vmem:[%s3 + $0x30] sm:$0xff]
        %v1933 = vld [vmem:[%s3 + $0x38] sm:$0xff]
        %v1934 = vld [vmem:[%s3 + $0x40] sm:$0xff]
        %v1935 = vld [vmem:[%s3 + $0x48] sm:$0xff]
        %v1936 = vld [vmem:[%s3 + $0x50] sm:$0xff]
        %v1937 = vld [vmem:[%s3 + $0x58] sm:$0xff]
        %v1938 = vld [vmem:[%s3 + $0x60] sm:$0xff]
        %v1939 = vld [vmem:[%s3 + $0x68] sm:$0xff]
        %v1940 = vld [vmem:[%s3 + $0x70] sm:$0xff]
        %v1941 = vld [vmem:[%s3 + $0x78] sm:$0xff]
        %v1942 = vld [vmem:[%s3 + $0x80] sm:$0xff]
        %v1943 = vld [vmem:[%s3 + $0x88] sm:$0xff]
        %v1944 = vld [vmem:[%s3 + $0x90] sm:$0xff]
        %v1945 = vld [vmem:[%s3 + $0x98] sm:$0xff]
        %v1946 = vld [vmem:[%s3 + $0xa0] sm:$0xff]
        %v1947 = vld [vmem:[%s3 + $0xa8] sm:$0xff]
        %v1948 = vld [vmem:[%s3 + $0xb0] sm:$0xff]
        %v1949 = vld [vmem:[%s3 + $0xb8] sm:$0xff]
        %v1950 = vld [vmem:[%s3 + $0xc0] sm:$0xff]
        %v1951 = vld [vmem:[%s3 + $0xc8] sm:$0xff]
        %v1952 = vld [vmem:[%s3 + $0xd0] sm:$0xff]
        %v1953 = vld [vmem:[%s3 + $0xd8] sm:$0xff]
        %v1954 = vld [vmem:[%s3 + $0xe0] sm:$0xff]
        %v1955 = vld [vmem:[%s3 + $0xe8] sm:$0xff]
        %v1956 = vld [vmem:[%s3 + $0xf0] sm:$0xff]
        %v1957 = vld [vmem:[%s3 + $0xf8] sm:$0xff]
        %v1958 = vld [vmem:[%s3 + $0x100] sm:$0xff]
        %v1959 = vld [vmem:[%s3 + $0x108] sm:$0xff]
        %v1960 = vld [vmem:[%s3 + $0x110] sm:$0xff]
        %v1961 = vld [vmem:[%s3 + $0x118] sm:$0xff]
        %v1962 = vld [vmem:[%s3 + $0x120] sm:$0xff]
        %v1963 = vld [vmem:[%s3 + $0x128] sm:$0xff]
        %v1964 = vld [vmem:[%s3 + $0x130] sm:$0xff]
        %v1965 = vld [vmem:[%s3 + $0x138] sm:$0xff]
        %v1966 = vld [vmem:[%s3 + $0x140] sm:$0xff]
        %v1967 = vld [vmem:[%s3 + $0x148] sm:$0xff]
        %v1968 = vld [vmem:[%s3 + $0x150] sm:$0xff]
        %v1969 = vld [vmem:[%s3 + $0x158] sm:$0xff]
        %v1970 = vld [vmem:[%s3 + $0x160] sm:$0xff]
        %v1971 = vld [vmem:[%s3 + $0x168] sm:$0xff]
        %v1972 = vld [vmem:[%s3 + $0x170] sm:$0xff]
        %v1973 = vld [vmem:[%s3 + $0x178] sm:$0xff]
        %v1974 = vld [vmem:[%s3 + $0x180] sm:$0xff]
        %v1975 = vld [vmem:[%s3 + $0x188] sm:$0xff]
        %v1976 = vld [vmem:[%s3 + $0x190] sm:$0xff]
        %v1977 = vld [vmem:[%s3 + $0x198] sm:$0xff]
        %v1978 = vld [vmem:[%s3 + $0x1a0] sm:$0xff]
        %v1979 = vld [vmem:[%s3 + $0x1a8] sm:$0xff]
        %v1980 = vld [vmem:[%s3 + $0x1b0] sm:$0xff]
        %v1981 = vld [vmem:[%s3 + $0x1b8] sm:$0xff]
        %v1982 = vld [vmem:[%s3 + $0x1c0] sm:$0xff]
        %v1983 = vld [vmem:[%s3 + $0x1c8] sm:$0xff]
        %v1984 = vld [vmem:[%s3 + $0x1d0] sm:$0xff]
        %v1985 = vld [vmem:[%s3 + $0x1d8] sm:$0xff]
        %v1986 = vld [vmem:[%s3 + $0x1e0] sm:$0xff]
        %v1987 = vld [vmem:[%s3 + $0x1e8] sm:$0xff]
        %v1988 = vld [vmem:[%s3 + $0x1f0] sm:$0xff]
        %v1989 = vld [vmem:[%s3 + $0x1f8] sm:$0xff]
        %1990 = vmatprep.subr.mxu0 %v1927
        %1991 = vmatpush1.msra.mxu0 %v1926
        %1992 = vmatprep.subr.mxu0 %v1929
        %1993 = vmatpush1.msra.mxu0 %v1928
        %1994 = vmatprep.subr.mxu0 %v1931
        %1995 = vmatpush1.msra.mxu0 %v1930
        %1996 = vmatprep.subr.mxu0 %v1933
        %1997 = vmatpush1.msra.mxu0 %v1932
        %1998 = vmatprep.subr.mxu0 %v1935
        %1999 = vmatpush1.msra.mxu0 %v1934
        %2000 = vmatprep.subr.mxu0 %v1937
        %2001 = vmatpush1.msra.mxu0 %v1936
        %2002 = vmatprep.subr.mxu0 %v1939
        %2003 = vmatpush1.msra.mxu0 %v1938
        %2004 = vmatprep.subr.mxu0 %v1941
        %2005 = vmatpush1.msra.mxu0 %v1940
        %2006 = vmatprep.subr.mxu0 %v1943
        %2007 = vmatpush1.msra.mxu0 %v1942
        %2008 = vmatprep.subr.mxu0 %v1945
        %2009 = vmatpush1.msra.mxu0 %v1944
        %2010 = vmatprep.subr.mxu0 %v1947
        %2011 = vmatpush1.msra.mxu0 %v1946
        %2012 = vmatprep.subr.mxu0 %v1949
        %2013 = vmatpush1.msra.mxu0 %v1948
        %2014 = vmatprep.subr.mxu0 %v1951
        %2015 = vmatpush1.msra.mxu0 %v1950
        %2016 = vmatprep.subr.mxu0 %v1953
        %2017 = vmatpush1.msra.mxu0 %v1952
        %2018 = vmatprep.subr.mxu0 %v1955
        %2019 = vmatpush1.msra.mxu0 %v1954
        %2020 = vmatprep.subr.mxu0 %v1957
        %2021 = vmatpush1.msra.mxu0 %v1956
        %2022 = vmatprep.subr.mxu0 %v1959
        %2023 = vmatpush1.msra.mxu0 %v1958
        %2024 = vmatprep.subr.mxu0 %v1961
        %2025 = vmatpush1.msra.mxu0 %v1960
        %2026 = vmatprep.subr.mxu0 %v1963
        %2027 = vmatpush1.msra.mxu0 %v1962
        %2028 = vmatprep.subr.mxu0 %v1965
        %2029 = vmatpush1.msra.mxu0 %v1964
        %2030 = vmatprep.subr.mxu0 %v1967
        %2031 = vmatpush1.msra.mxu0 %v1966
        %2032 = vmatprep.subr.mxu0 %v1969
        %2033 = vmatpush1.msra.mxu0 %v1968
        %2034 = vmatprep.subr.mxu0 %v1971
        %2035 = vmatpush1.msra.mxu0 %v1970
        %2036 = vmatprep.subr.mxu0 %v1973
        %2037 = vmatpush1.msra.mxu0 %v1972
        %2038 = vmatprep.subr.mxu0 %v1975
        %2039 = vmatpush1.msra.mxu0 %v1974
        %2040 = vmatprep.subr.mxu0 %v1977
        %2041 = vmatpush1.msra.mxu0 %v1976
        %2042 = vmatprep.subr.mxu0 %v1979
        %2043 = vmatpush1.msra.mxu0 %v1978
        %2044 = vmatprep.subr.mxu0 %v1981
        %2045 = vmatpush1.msra.mxu0 %v1980
        %2046 = vmatprep.subr.mxu0 %v1983
        %2047 = vmatpush1.msra.mxu0 %v1982
        %2048 = vmatprep.subr.mxu0 %v1985
        %2049 = vmatpush1.msra.mxu0 %v1984
        %2050 = vmatprep.subr.mxu0 %v1987
        %2051 = vmatpush1.msra.mxu0 %v1986
        %2052 = vmatprep.subr.mxu0 %v1989
        %2053 = vmatpush1.msra.mxu0 %v1988
        %2054 = vmatprep.mubr.f32.mxu0 %v1925
        %2055 = vmatmul.mubr.f32.gmra.mrb[0].mxu0 %v1924
        %v2056 = vpop.f32.mrb[0].mxu0
        %v2057 = vadd.f32 0.0, %v2056
        %v2058 = vpop.f32.mrb[0].mxu0
        %v2059 = vadd.f32 0.0, %v2058
        %2060 = vdwg.mxu0
        %s2061 = scalar_lea.vmem %s3, 512
        %v2062 = vld [vmem:[%s2061] sm:$0xff]
        %v2063 = vld [vmem:[%s2061 + $0x8] sm:$0xff]
        %v2064 = vld [vmem:[%s2061 + $0x10] sm:$0xff]
        %v2065 = vld [vmem:[%s2061 + $0x18] sm:$0xff]
        %v2066 = vld [vmem:[%s2061 + $0x20] sm:$0xff]
        %v2067 = vld [vmem:[%s2061 + $0x28] sm:$0xff]
        %v2068 = vld [vmem:[%s2061 + $0x30] sm:$0xff]
        %v2069 = vld [vmem:[%s2061 + $0x38] sm:$0xff]
        %v2070 = vld [vmem:[%s2061 + $0x40] sm:$0xff]
        %v2071 = vld [vmem:[%s2061 + $0x48] sm:$0xff]
        %v2072 = vld [vmem:[%s2061 + $0x50] sm:$0xff]
        %v2073 = vld [vmem:[%s2061 + $0x58] sm:$0xff]
        %v2074 = vld [vmem:[%s2061 + $0x60] sm:$0xff]
        %v2075 = vld [vmem:[%s2061 + $0x68] sm:$0xff]
        %v2076 = vld [vmem:[%s2061 + $0x70] sm:$0xff]
        %v2077 = vld [vmem:[%s2061 + $0x78] sm:$0xff]
        %v2078 = vld [vmem:[%s2061 + $0x80] sm:$0xff]
        %v2079 = vld [vmem:[%s2061 + $0x88] sm:$0xff]
        %v2080 = vld [vmem:[%s2061 + $0x90] sm:$0xff]
        %v2081 = vld [vmem:[%s2061 + $0x98] sm:$0xff]
        %v2082 = vld [vmem:[%s2061 + $0xa0] sm:$0xff]
        %v2083 = vld [vmem:[%s2061 + $0xa8] sm:$0xff]
        %v2084 = vld [vmem:[%s2061 + $0xb0] sm:$0xff]
        %v2085 = vld [vmem:[%s2061 + $0xb8] sm:$0xff]
        %v2086 = vld [vmem:[%s2061 + $0xc0] sm:$0xff]
        %v2087 = vld [vmem:[%s2061 + $0xc8] sm:$0xff]
        %v2088 = vld [vmem:[%s2061 + $0xd0] sm:$0xff]
        %v2089 = vld [vmem:[%s2061 + $0xd8] sm:$0xff]
        %v2090 = vld [vmem:[%s2061 + $0xe0] sm:$0xff]
        %v2091 = vld [vmem:[%s2061 + $0xe8] sm:$0xff]
        %v2092 = vld [vmem:[%s2061 + $0xf0] sm:$0xff]
        %v2093 = vld [vmem:[%s2061 + $0xf8] sm:$0xff]
        %v2094 = vld [vmem:[%s2061 + $0x100] sm:$0xff]
        %v2095 = vld [vmem:[%s2061 + $0x108] sm:$0xff]
        %v2096 = vld [vmem:[%s2061 + $0x110] sm:$0xff]
        %v2097 = vld [vmem:[%s2061 + $0x118] sm:$0xff]
        %v2098 = vld [vmem:[%s2061 + $0x120] sm:$0xff]
        %v2099 = vld [vmem:[%s2061 + $0x128] sm:$0xff]
        %v2100 = vld [vmem:[%s2061 + $0x130] sm:$0xff]
        %v2101 = vld [vmem:[%s2061 + $0x138] sm:$0xff]
        %v2102 = vld [vmem:[%s2061 + $0x140] sm:$0xff]
        %v2103 = vld [vmem:[%s2061 + $0x148] sm:$0xff]
        %v2104 = vld [vmem:[%s2061 + $0x150] sm:$0xff]
        %v2105 = vld [vmem:[%s2061 + $0x158] sm:$0xff]
        %v2106 = vld [vmem:[%s2061 + $0x160] sm:$0xff]
        %v2107 = vld [vmem:[%s2061 + $0x168] sm:$0xff]
        %v2108 = vld [vmem:[%s2061 + $0x170] sm:$0xff]
        %v2109 = vld [vmem:[%s2061 + $0x178] sm:$0xff]
        %v2110 = vld [vmem:[%s2061 + $0x180] sm:$0xff]
        %v2111 = vld [vmem:[%s2061 + $0x188] sm:$0xff]
        %v2112 = vld [vmem:[%s2061 + $0x190] sm:$0xff]
        %v2113 = vld [vmem:[%s2061 + $0x198] sm:$0xff]
        %v2114 = vld [vmem:[%s2061 + $0x1a0] sm:$0xff]
        %v2115 = vld [vmem:[%s2061 + $0x1a8] sm:$0xff]
        %v2116 = vld [vmem:[%s2061 + $0x1b0] sm:$0xff]
        %v2117 = vld [vmem:[%s2061 + $0x1b8] sm:$0xff]
        %v2118 = vld [vmem:[%s2061 + $0x1c0] sm:$0xff]
        %v2119 = vld [vmem:[%s2061 + $0x1c8] sm:$0xff]
        %v2120 = vld [vmem:[%s2061 + $0x1d0] sm:$0xff]
        %v2121 = vld [vmem:[%s2061 + $0x1d8] sm:$0xff]
        %v2122 = vld [vmem:[%s2061 + $0x1e0] sm:$0xff]
        %v2123 = vld [vmem:[%s2061 + $0x1e8] sm:$0xff]
        %v2124 = vld [vmem:[%s2061 + $0x1f0] sm:$0xff]
        %v2125 = vld [vmem:[%s2061 + $0x1f8] sm:$0xff]
        %2126 = vmatprep.subr.mxu0 %v2063
        %2127 = vmatpush1.msra.mxu0 %v2062
        %2128 = vmatprep.subr.mxu0 %v2065
        %2129 = vmatpush1.msra.mxu0 %v2064
        %2130 = vmatprep.subr.mxu0 %v2067
        %2131 = vmatpush1.msra.mxu0 %v2066
        %2132 = vmatprep.subr.mxu0 %v2069
        %2133 = vmatpush1.msra.mxu0 %v2068
        %2134 = vmatprep.subr.mxu0 %v2071
        %2135 = vmatpush1.msra.mxu0 %v2070
        %2136 = vmatprep.subr.mxu0 %v2073
        %2137 = vmatpush1.msra.mxu0 %v2072
        %2138 = vmatprep.subr.mxu0 %v2075
        %2139 = vmatpush1.msra.mxu0 %v2074
        %2140 = vmatprep.subr.mxu0 %v2077
        %2141 = vmatpush1.msra.mxu0 %v2076
        %2142 = vmatprep.subr.mxu0 %v2079
        %2143 = vmatpush1.msra.mxu0 %v2078
        %2144 = vmatprep.subr.mxu0 %v2081
        %2145 = vmatpush1.msra.mxu0 %v2080
        %2146 = vmatprep.subr.mxu0 %v2083
        %2147 = vmatpush1.msra.mxu0 %v2082
        %2148 = vmatprep.subr.mxu0 %v2085
        %2149 = vmatpush1.msra.mxu0 %v2084
        %2150 = vmatprep.subr.mxu0 %v2087
        %2151 = vmatpush1.msra.mxu0 %v2086
        %2152 = vmatprep.subr.mxu0 %v2089
        %2153 = vmatpush1.msra.mxu0 %v2088
        %2154 = vmatprep.subr.mxu0 %v2091
        %2155 = vmatpush1.msra.mxu0 %v2090
        %2156 = vmatprep.subr.mxu0 %v2093
        %2157 = vmatpush1.msra.mxu0 %v2092
        %2158 = vmatprep.subr.mxu0 %v2095
        %2159 = vmatpush1.msra.mxu0 %v2094
        %2160 = vmatprep.subr.mxu0 %v2097
        %2161 = vmatpush1.msra.mxu0 %v2096
        %2162 = vmatprep.subr.mxu0 %v2099
        %2163 = vmatpush1.msra.mxu0 %v2098
        %2164 = vmatprep.subr.mxu0 %v2101
        %2165 = vmatpush1.msra.mxu0 %v2100
        %2166 = vmatprep.subr.mxu0 %v2103
        %2167 = vmatpush1.msra.mxu0 %v2102
        %2168 = vmatprep.subr.mxu0 %v2105
        %2169 = vmatpush1.msra.mxu0 %v2104
        %2170 = vmatprep.subr.mxu0 %v2107
        %2171 = vmatpush1.msra.mxu0 %v2106
        %2172 = vmatprep.subr.mxu0 %v2109
        %2173 = vmatpush1.msra.mxu0 %v2108
        %2174 = vmatprep.subr.mxu0 %v2111
        %2175 = vmatpush1.msra.mxu0 %v2110
        %2176 = vmatprep.subr.mxu0 %v2113
        %2177 = vmatpush1.msra.mxu0 %v2112
        %2178 = vmatprep.subr.mxu0 %v2115
        %2179 = vmatpush1.msra.mxu0 %v2114
        %2180 = vmatprep.subr.mxu0 %v2117
        %2181 = vmatpush1.msra.mxu0 %v2116
        %2182 = vmatprep.subr.mxu0 %v2119
        %2183 = vmatpush1.msra.mxu0 %v2118
        %2184 = vmatprep.subr.mxu0 %v2121
        %2185 = vmatpush1.msra.mxu0 %v2120
        %2186 = vmatprep.subr.mxu0 %v2123
        %2187 = vmatpush1.msra.mxu0 %v2122
        %2188 = vmatprep.subr.mxu0 %v2125
        %2189 = vmatpush1.msra.mxu0 %v2124
        %2190 = vmatprep.mubr.f32.mxu0 %v1925
        %2191 = vmatmul.mubr.f32.gmra.mrb[0].mxu0 %v1924
        %v2192 = vpop.f32.mrb[0].mxu0
        %v2193 = vadd.f32 0.0, %v2192
        %v2194 = vpop.f32.mrb[0].mxu0
        %v2195 = vadd.f32 0.0, %v2194
        %2196 = vdwg.mxu0
        %v2199 = vrot.slane %v2193, 1
        %v2200 = vrot.slane %v2195, 1
        %v2203 = vadd.f32 %v2057, %v2199
        %v2204 = vadd.f32 %v2059, %v2200
        %s2205 = scalar_lea.vmem %s3, 1024
        %v2206 = vld [vmem:[%s2205] sm:$0xff]
        %v2207 = vld [vmem:[%s2205 + $0x8] sm:$0xff]
        %v2208 = vld [vmem:[%s2205 + $0x10] sm:$0xff]
        %v2209 = vld [vmem:[%s2205 + $0x18] sm:$0xff]
        %v2210 = vld [vmem:[%s2205 + $0x20] sm:$0xff]
        %v2211 = vld [vmem:[%s2205 + $0x28] sm:$0xff]
        %v2212 = vld [vmem:[%s2205 + $0x30] sm:$0xff]
        %v2213 = vld [vmem:[%s2205 + $0x38] sm:$0xff]
        %v2214 = vld [vmem:[%s2205 + $0x40] sm:$0xff]
        %v2215 = vld [vmem:[%s2205 + $0x48] sm:$0xff]
        %v2216 = vld [vmem:[%s2205 + $0x50] sm:$0xff]
        %v2217 = vld [vmem:[%s2205 + $0x58] sm:$0xff]
        %v2218 = vld [vmem:[%s2205 + $0x60] sm:$0xff]
        %v2219 = vld [vmem:[%s2205 + $0x68] sm:$0xff]
        %v2220 = vld [vmem:[%s2205 + $0x70] sm:$0xff]
        %v2221 = vld [vmem:[%s2205 + $0x78] sm:$0xff]
        %v2222 = vld [vmem:[%s2205 + $0x80] sm:$0xff]
        %v2223 = vld [vmem:[%s2205 + $0x88] sm:$0xff]
        %v2224 = vld [vmem:[%s2205 + $0x90] sm:$0xff]
        %v2225 = vld [vmem:[%s2205 + $0x98] sm:$0xff]
        %v2226 = vld [vmem:[%s2205 + $0xa0] sm:$0xff]
        %v2227 = vld [vmem:[%s2205 + $0xa8] sm:$0xff]
        %v2228 = vld [vmem:[%s2205 + $0xb0] sm:$0xff]
        %v2229 = vld [vmem:[%s2205 + $0xb8] sm:$0xff]
        %v2230 = vld [vmem:[%s2205 + $0xc0] sm:$0xff]
        %v2231 = vld [vmem:[%s2205 + $0xc8] sm:$0xff]
        %v2232 = vld [vmem:[%s2205 + $0xd0] sm:$0xff]
        %v2233 = vld [vmem:[%s2205 + $0xd8] sm:$0xff]
        %v2234 = vld [vmem:[%s2205 + $0xe0] sm:$0xff]
        %v2235 = vld [vmem:[%s2205 + $0xe8] sm:$0xff]
        %v2236 = vld [vmem:[%s2205 + $0xf0] sm:$0xff]
        %v2237 = vld [vmem:[%s2205 + $0xf8] sm:$0xff]
        %v2238 = vld [vmem:[%s2205 + $0x100] sm:$0xff]
        %v2239 = vld [vmem:[%s2205 + $0x108] sm:$0xff]
        %v2240 = vld [vmem:[%s2205 + $0x110] sm:$0xff]
        %v2241 = vld [vmem:[%s2205 + $0x118] sm:$0xff]
        %v2242 = vld [vmem:[%s2205 + $0x120] sm:$0xff]
        %v2243 = vld [vmem:[%s2205 + $0x128] sm:$0xff]
        %v2244 = vld [vmem:[%s2205 + $0x130] sm:$0xff]
        %v2245 = vld [vmem:[%s2205 + $0x138] sm:$0xff]
        %v2246 = vld [vmem:[%s2205 + $0x140] sm:$0xff]
        %v2247 = vld [vmem:[%s2205 + $0x148] sm:$0xff]
        %v2248 = vld [vmem:[%s2205 + $0x150] sm:$0xff]
        %v2249 = vld [vmem:[%s2205 + $0x158] sm:$0xff]
        %v2250 = vld [vmem:[%s2205 + $0x160] sm:$0xff]
        %v2251 = vld [vmem:[%s2205 + $0x168] sm:$0xff]
        %v2252 = vld [vmem:[%s2205 + $0x170] sm:$0xff]
        %v2253 = vld [vmem:[%s2205 + $0x178] sm:$0xff]
        %v2254 = vld [vmem:[%s2205 + $0x180] sm:$0xff]
        %v2255 = vld [vmem:[%s2205 + $0x188] sm:$0xff]
        %v2256 = vld [vmem:[%s2205 + $0x190] sm:$0xff]
        %v2257 = vld [vmem:[%s2205 + $0x198] sm:$0xff]
        %v2258 = vld [vmem:[%s2205 + $0x1a0] sm:$0xff]
        %v2259 = vld [vmem:[%s2205 + $0x1a8] sm:$0xff]
        %v2260 = vld [vmem:[%s2205 + $0x1b0] sm:$0xff]
        %v2261 = vld [vmem:[%s2205 + $0x1b8] sm:$0xff]
        %v2262 = vld [vmem:[%s2205 + $0x1c0] sm:$0xff]
        %v2263 = vld [vmem:[%s2205 + $0x1c8] sm:$0xff]
        %v2264 = vld [vmem:[%s2205 + $0x1d0] sm:$0xff]
        %v2265 = vld [vmem:[%s2205 + $0x1d8] sm:$0xff]
        %v2266 = vld [vmem:[%s2205 + $0x1e0] sm:$0xff]
        %v2267 = vld [vmem:[%s2205 + $0x1e8] sm:$0xff]
        %v2268 = vld [vmem:[%s2205 + $0x1f0] sm:$0xff]
        %v2269 = vld [vmem:[%s2205 + $0x1f8] sm:$0xff]
        %2270 = vmatprep.subr.mxu0 %v2207
        %2271 = vmatpush1.msra.mxu0 %v2206
        %2272 = vmatprep.subr.mxu0 %v2209
        %2273 = vmatpush1.msra.mxu0 %v2208
        %2274 = vmatprep.subr.mxu0 %v2211
        %2275 = vmatpush1.msra.mxu0 %v2210
        %2276 = vmatprep.subr.mxu0 %v2213
        %2277 = vmatpush1.msra.mxu0 %v2212
        %2278 = vmatprep.subr.mxu0 %v2215
        %2279 = vmatpush1.msra.mxu0 %v2214
        %2280 = vmatprep.subr.mxu0 %v2217
        %2281 = vmatpush1.msra.mxu0 %v2216
        %2282 = vmatprep.subr.mxu0 %v2219
        %2283 = vmatpush1.msra.mxu0 %v2218
        %2284 = vmatprep.subr.mxu0 %v2221
        %2285 = vmatpush1.msra.mxu0 %v2220
        %2286 = vmatprep.subr.mxu0 %v2223
        %2287 = vmatpush1.msra.mxu0 %v2222
        %2288 = vmatprep.subr.mxu0 %v2225
        %2289 = vmatpush1.msra.mxu0 %v2224
        %2290 = vmatprep.subr.mxu0 %v2227
        %2291 = vmatpush1.msra.mxu0 %v2226
        %2292 = vmatprep.subr.mxu0 %v2229
        %2293 = vmatpush1.msra.mxu0 %v2228
        %2294 = vmatprep.subr.mxu0 %v2231
        %2295 = vmatpush1.msra.mxu0 %v2230
        %2296 = vmatprep.subr.mxu0 %v2233
        %2297 = vmatpush1.msra.mxu0 %v2232
        %2298 = vmatprep.subr.mxu0 %v2235
        %2299 = vmatpush1.msra.mxu0 %v2234
        %2300 = vmatprep.subr.mxu0 %v2237
        %2301 = vmatpush1.msra.mxu0 %v2236
        %2302 = vmatprep.subr.mxu0 %v2239
        %2303 = vmatpush1.msra.mxu0 %v2238
        %2304 = vmatprep.subr.mxu0 %v2241
        %2305 = vmatpush1.msra.mxu0 %v2240
        %2306 = vmatprep.subr.mxu0 %v2243
        %2307 = vmatpush1.msra.mxu0 %v2242
        %2308 = vmatprep.subr.mxu0 %v2245
        %2309 = vmatpush1.msra.mxu0 %v2244
        %2310 = vmatprep.subr.mxu0 %v2247
        %2311 = vmatpush1.msra.mxu0 %v2246
        %2312 = vmatprep.subr.mxu0 %v2249
        %2313 = vmatpush1.msra.mxu0 %v2248
        %2314 = vmatprep.subr.mxu0 %v2251
        %2315 = vmatpush1.msra.mxu0 %v2250
        %2316 = vmatprep.subr.mxu0 %v2253
        %2317 = vmatpush1.msra.mxu0 %v2252
        %2318 = vmatprep.subr.mxu0 %v2255
        %2319 = vmatpush1.msra.mxu0 %v2254
        %2320 = vmatprep.subr.mxu0 %v2257
        %2321 = vmatpush1.msra.mxu0 %v2256
        %2322 = vmatprep.subr.mxu0 %v2259
        %2323 = vmatpush1.msra.mxu0 %v2258
        %2324 = vmatprep.subr.mxu0 %v2261
        %2325 = vmatpush1.msra.mxu0 %v2260
        %2326 = vmatprep.subr.mxu0 %v2263
        %2327 = vmatpush1.msra.mxu0 %v2262
        %2328 = vmatprep.subr.mxu0 %v2265
        %2329 = vmatpush1.msra.mxu0 %v2264
        %2330 = vmatprep.subr.mxu0 %v2267
        %2331 = vmatpush1.msra.mxu0 %v2266
        %2332 = vmatprep.subr.mxu0 %v2269
        %2333 = vmatpush1.msra.mxu0 %v2268
        %2334 = vmatprep.mubr.f32.mxu0 %v1925
        %2335 = vmatmul.mubr.f32.gmra.mrb[0].mxu0 %v1924
        %v2336 = vpop.f32.mrb[0].mxu0
        %v2337 = vadd.f32 0.0, %v2336
        %v2338 = vpop.f32.mrb[0].mxu0
        %v2339 = vadd.f32 0.0, %v2338
        %2340 = vdwg.mxu0
        %v2343 = vrot.slane %v2337, 2
        %v2344 = vrot.slane %v2339, 2
        %v2347 = vadd.f32 %v2203, %v2343
        %v2348 = vadd.f32 %v2204, %v2344
        %s2349 = scalar_lea.vmem %s3, 1536
        %v2350 = vld [vmem:[%s2349] sm:$0xff]
        %v2351 = vld [vmem:[%s2349 + $0x8] sm:$0xff]
        %v2352 = vld [vmem:[%s2349 + $0x10] sm:$0xff]
        %v2353 = vld [vmem:[%s2349 + $0x18] sm:$0xff]
        %v2354 = vld [vmem:[%s2349 + $0x20] sm:$0xff]
        %v2355 = vld [vmem:[%s2349 + $0x28] sm:$0xff]
        %v2356 = vld [vmem:[%s2349 + $0x30] sm:$0xff]
        %v2357 = vld [vmem:[%s2349 + $0x38] sm:$0xff]
        %v2358 = vld [vmem:[%s2349 + $0x40] sm:$0xff]
        %v2359 = vld [vmem:[%s2349 + $0x48] sm:$0xff]
        %v2360 = vld [vmem:[%s2349 + $0x50] sm:$0xff]
        %v2361 = vld [vmem:[%s2349 + $0x58] sm:$0xff]
        %v2362 = vld [vmem:[%s2349 + $0x60] sm:$0xff]
        %v2363 = vld [vmem:[%s2349 + $0x68] sm:$0xff]
        %v2364 = vld [vmem:[%s2349 + $0x70] sm:$0xff]
        %v2365 = vld [vmem:[%s2349 + $0x78] sm:$0xff]
        %v2366 = vld [vmem:[%s2349 + $0x80] sm:$0xff]
        %v2367 = vld [vmem:[%s2349 + $0x88] sm:$0xff]
        %v2368 = vld [vmem:[%s2349 + $0x90] sm:$0xff]
        %v2369 = vld [vmem:[%s2349 + $0x98] sm:$0xff]
        %v2370 = vld [vmem:[%s2349 + $0xa0] sm:$0xff]
        %v2371 = vld [vmem:[%s2349 + $0xa8] sm:$0xff]
        %v2372 = vld [vmem:[%s2349 + $0xb0] sm:$0xff]
        %v2373 = vld [vmem:[%s2349 + $0xb8] sm:$0xff]
        %v2374 = vld [vmem:[%s2349 + $0xc0] sm:$0xff]
        %v2375 = vld [vmem:[%s2349 + $0xc8] sm:$0xff]
        %v2376 = vld [vmem:[%s2349 + $0xd0] sm:$0xff]
        %v2377 = vld [vmem:[%s2349 + $0xd8] sm:$0xff]
        %v2378 = vld [vmem:[%s2349 + $0xe0] sm:$0xff]
        %v2379 = vld [vmem:[%s2349 + $0xe8] sm:$0xff]
        %v2380 = vld [vmem:[%s2349 + $0xf0] sm:$0xff]
        %v2381 = vld [vmem:[%s2349 + $0xf8] sm:$0xff]
        %v2382 = vld [vmem:[%s2349 + $0x100] sm:$0xff]
        %v2383 = vld [vmem:[%s2349 + $0x108] sm:$0xff]
        %v2384 = vld [vmem:[%s2349 + $0x110] sm:$0xff]
        %v2385 = vld [vmem:[%s2349 + $0x118] sm:$0xff]
        %v2386 = vld [vmem:[%s2349 + $0x120] sm:$0xff]
        %v2387 = vld [vmem:[%s2349 + $0x128] sm:$0xff]
        %v2388 = vld [vmem:[%s2349 + $0x130] sm:$0xff]
        %v2389 = vld [vmem:[%s2349 + $0x138] sm:$0xff]
        %v2390 = vld [vmem:[%s2349 + $0x140] sm:$0xff]
        %v2391 = vld [vmem:[%s2349 + $0x148] sm:$0xff]
        %v2392 = vld [vmem:[%s2349 + $0x150] sm:$0xff]
        %v2393 = vld [vmem:[%s2349 + $0x158] sm:$0xff]
        %v2394 = vld [vmem:[%s2349 + $0x160] sm:$0xff]
        %v2395 = vld [vmem:[%s2349 + $0x168] sm:$0xff]
        %v2396 = vld [vmem:[%s2349 + $0x170] sm:$0xff]
        %v2397 = vld [vmem:[%s2349 + $0x178] sm:$0xff]
        %v2398 = vld [vmem:[%s2349 + $0x180] sm:$0xff]
        %v2399 = vld [vmem:[%s2349 + $0x188] sm:$0xff]
        %v2400 = vld [vmem:[%s2349 + $0x190] sm:$0xff]
        %v2401 = vld [vmem:[%s2349 + $0x198] sm:$0xff]
        %v2402 = vld [vmem:[%s2349 + $0x1a0] sm:$0xff]
        %v2403 = vld [vmem:[%s2349 + $0x1a8] sm:$0xff]
        %v2404 = vld [vmem:[%s2349 + $0x1b0] sm:$0xff]
        %v2405 = vld [vmem:[%s2349 + $0x1b8] sm:$0xff]
        %v2406 = vld [vmem:[%s2349 + $0x1c0] sm:$0xff]
        %v2407 = vld [vmem:[%s2349 + $0x1c8] sm:$0xff]
        %v2408 = vld [vmem:[%s2349 + $0x1d0] sm:$0xff]
        %v2409 = vld [vmem:[%s2349 + $0x1d8] sm:$0xff]
        %v2410 = vld [vmem:[%s2349 + $0x1e0] sm:$0xff]
        %v2411 = vld [vmem:[%s2349 + $0x1e8] sm:$0xff]
        %v2412 = vld [vmem:[%s2349 + $0x1f0] sm:$0xff]
        %v2413 = vld [vmem:[%s2349 + $0x1f8] sm:$0xff]
        %2414 = vmatprep.subr.mxu0 %v2351
        %2415 = vmatpush1.msra.mxu0 %v2350
        %2416 = vmatprep.subr.mxu0 %v2353
        %2417 = vmatpush1.msra.mxu0 %v2352
        %2418 = vmatprep.subr.mxu0 %v2355
        %2419 = vmatpush1.msra.mxu0 %v2354
        %2420 = vmatprep.subr.mxu0 %v2357
        %2421 = vmatpush1.msra.mxu0 %v2356
        %2422 = vmatprep.subr.mxu0 %v2359
        %2423 = vmatpush1.msra.mxu0 %v2358
        %2424 = vmatprep.subr.mxu0 %v2361
        %2425 = vmatpush1.msra.mxu0 %v2360
        %2426 = vmatprep.subr.mxu0 %v2363
        %2427 = vmatpush1.msra.mxu0 %v2362
        %2428 = vmatprep.subr.mxu0 %v2365
        %2429 = vmatpush1.msra.mxu0 %v2364
        %2430 = vmatprep.subr.mxu0 %v2367
        %2431 = vmatpush1.msra.mxu0 %v2366
        %2432 = vmatprep.subr.mxu0 %v2369
        %2433 = vmatpush1.msra.mxu0 %v2368
        %2434 = vmatprep.subr.mxu0 %v2371
        %2435 = vmatpush1.msra.mxu0 %v2370
        %2436 = vmatprep.subr.mxu0 %v2373
        %2437 = vmatpush1.msra.mxu0 %v2372
        %2438 = vmatprep.subr.mxu0 %v2375
        %2439 = vmatpush1.msra.mxu0 %v2374
        %2440 = vmatprep.subr.mxu0 %v2377
        %2441 = vmatpush1.msra.mxu0 %v2376
        %2442 = vmatprep.subr.mxu0 %v2379
        %2443 = vmatpush1.msra.mxu0 %v2378
        %2444 = vmatprep.subr.mxu0 %v2381
        %2445 = vmatpush1.msra.mxu0 %v2380
        %2446 = vmatprep.subr.mxu0 %v2383
        %2447 = vmatpush1.msra.mxu0 %v2382
        %2448 = vmatprep.subr.mxu0 %v2385
        %2449 = vmatpush1.msra.mxu0 %v2384
        %2450 = vmatprep.subr.mxu0 %v2387
        %2451 = vmatpush1.msra.mxu0 %v2386
        %2452 = vmatprep.subr.mxu0 %v2389
        %2453 = vmatpush1.msra.mxu0 %v2388
        %2454 = vmatprep.subr.mxu0 %v2391
        %2455 = vmatpush1.msra.mxu0 %v2390
        %2456 = vmatprep.subr.mxu0 %v2393
        %2457 = vmatpush1.msra.mxu0 %v2392
        %2458 = vmatprep.subr.mxu0 %v2395
        %2459 = vmatpush1.msra.mxu0 %v2394
        %2460 = vmatprep.subr.mxu0 %v2397
        %2461 = vmatpush1.msra.mxu0 %v2396
        %2462 = vmatprep.subr.mxu0 %v2399
        %2463 = vmatpush1.msra.mxu0 %v2398
        %2464 = vmatprep.subr.mxu0 %v2401
        %2465 = vmatpush1.msra.mxu0 %v2400
        %2466 = vmatprep.subr.mxu0 %v2403
        %2467 = vmatpush1.msra.mxu0 %v2402
        %2468 = vmatprep.subr.mxu0 %v2405
        %2469 = vmatpush1.msra.mxu0 %v2404
        %2470 = vmatprep.subr.mxu0 %v2407
        %2471 = vmatpush1.msra.mxu0 %v2406
        %2472 = vmatprep.subr.mxu0 %v2409
        %2473 = vmatpush1.msra.mxu0 %v2408
        %2474 = vmatprep.subr.mxu0 %v2411
        %2475 = vmatpush1.msra.mxu0 %v2410
        %2476 = vmatprep.subr.mxu0 %v2413
        %2477 = vmatpush1.msra.mxu0 %v2412
        %2478 = vmatprep.mubr.f32.mxu0 %v1925
        %2479 = vmatmul.mubr.f32.gmra.mrb[0].mxu0 %v1924
        %v2480 = vpop.f32.mrb[0].mxu0
        %v2481 = vadd.f32 0.0, %v2480
        %v2482 = vpop.f32.mrb[0].mxu0
        %v2483 = vadd.f32 0.0, %v2482
        %2484 = vdwg.mxu0
        %v2487 = vrot.slane %v2481, 3
        %v2488 = vrot.slane %v2483, 3
        %v2491 = vadd.f32 %v2347, %v2487
        %v2492 = vadd.f32 %v2348, %v2488
        %v2495 = vcombine.low %v2491, %v2492
        %v2497 = vunpack.c.l.s4 1966171168
        %v2498 = vunpack.c.0.s8 %v2497
        %v2499 = vlaneseq
        %v2500 = vshrl.u32 %v2499, 7
        %v2501 = vsub.s32 %v2498, %v2500
        %v2502 = vrot.slane %v2495, %v2501
        %v2504 = vunpack.c.l.s4 1966171168
        %v2505 = vunpack.c.0.s8 %v2504
        %v2506 = vlaneseq
        %v2507 = vshrl.u32 %v2506, 7
        %v2508 = vsub.s32 %v2505, %v2507
        %v2509 = vrot.slane %v2502, %v2508
        %vm2511 = vcmp.lt.s32.totalorder %v1755, 192
        %vm2512 = vmand %vm1756, %vm2511
        %2513 = vst.msk [vmem:[#allocation3] ss:$4 sm:$0x3] %vm2512, %v2509
        %v2514 = vcombine.high %v2509, %v2509
        %s2516 = scalar_lea.vmem [#allocation3], 1
        %2517 = vst.msk [vmem:[%s2516] ss:$4 sm:$0x3] %vm2512, %v2514
        %v2518 = vcombine.high %v2491, %v2492
        %v2520 = vunpack.c.l.s4 1966171168
        %v2521 = vunpack.c.0.s8 %v2520
        %v2522 = vlaneseq
        %v2523 = vshrl.u32 %v2522, 7
        %v2524 = vsub.s32 %v2521, %v2523
        %v2525 = vrot.slane %v2518, %v2524
        %v2527 = vunpack.c.l.s4 1966171168
        %v2528 = vunpack.c.0.s8 %v2527
        %v2529 = vlaneseq
        %v2530 = vshrl.u32 %v2529, 7
        %v2531 = vsub.s32 %v2528, %v2530
        %v2532 = vrot.slane %v2525, %v2531
        %s2534 = scalar_lea.vmem [#allocation3], 2
        %2535 = vst.msk [vmem:[%s2534] ss:$4 sm:$0x3] %vm2512, %v2532
        %v2536 = vld [vmem:[#allocation3] sm:$0x77]
        %v2537 = vld [vmem:[%s4] sm:$0x3]
        %v2539 = vlaneseq
        %v2540 = vshrl.u32 %v2539, 7
        %v2541 = vsub.s32 0, %v2540
        %v2542 = vrot.slane %v2537, %v2541
        %v2543 = vlaneseq
        %v2544 = vshrl.u32 %v2543, 7
        %v2545 = vsub.s32 1, %v2544
        %v2546 = vrot.slane %v2537, %v2545
        %v2547 = vcombine.low %v2542, %v2546
        %v2549 = vadd.f32 %v2536, %v2547
        %v2550 = vmax.f32 %v2549, 0.0
        %v2551 = vld [vmem:[%s5] sm:$0xff]
        %v2552 = vld [vmem:[%s5 + $0x8] sm:$0xff]
        %v2553 = vld [vmem:[%s5 + $0x10] sm:$0xff]
        %v2554 = vld [vmem:[%s5 + $0x18] sm:$0xff]
        %v2555 = vld [vmem:[%s5 + $0x20] sm:$0xff]
        %v2556 = vld [vmem:[%s5 + $0x28] sm:$0xff]
        %v2557 = vld [vmem:[%s5 + $0x30] sm:$0xff]
        %v2558 = vld [vmem:[%s5 + $0x38] sm:$0xff]
        %v2559 = vld [vmem:[%s5 + $0x40] sm:$0xff]
        %v2560 = vld [vmem:[%s5 + $0x48] sm:$0xff]
        %v2561 = vld [vmem:[%s5 + $0x50] sm:$0xff]
        %v2562 = vld [vmem:[%s5 + $0x58] sm:$0xff]
        %v2563 = vld [vmem:[%s5 + $0x60] sm:$0xff]
        %v2564 = vld [vmem:[%s5 + $0x68] sm:$0xff]
        %v2565 = vld [vmem:[%s5 + $0x70] sm:$0xff]
        %v2566 = vld [vmem:[%s5 + $0x78] sm:$0xff]
        %v2567 = vld [vmem:[%s5 + $0x80] sm:$0xff]
        %v2568 = vld [vmem:[%s5 + $0x88] sm:$0xff]
        %v2569 = vld [vmem:[%s5 + $0x90] sm:$0xff]
        %v2570 = vld [vmem:[%s5 + $0x98] sm:$0xff]
        %v2571 = vld [vmem:[%s5 + $0xa0] sm:$0xff]
        %v2572 = vld [vmem:[%s5 + $0xa8] sm:$0xff]
        %v2573 = vld [vmem:[%s5 + $0xb0] sm:$0xff]
        %v2574 = vld [vmem:[%s5 + $0xb8] sm:$0xff]
        %v2576 = vcombine.high %v2550, %v2550
        %vm2577 = vcmask 523264
        %v2578 = vsel %vm2577, %v2576, 0
        %2580 = vmatprep.subr.mxu0 0.0
        %2581 = vmatpush1.msra.mxu0 %v2551
        %2582 = vmatprep.subr.mxu0 0.0
        %2583 = vmatpush1.msra.mxu0 %v2552
        %2584 = vmatprep.subr.mxu0 0.0
        %2585 = vmatpush1.msra.mxu0 %v2553
        %2586 = vmatprep.subr.mxu0 0.0
        %2587 = vmatpush1.msra.mxu0 %v2554
        %2588 = vmatprep.subr.mxu0 0.0
        %2589 = vmatpush1.msra.mxu0 %v2555
        %2590 = vmatprep.subr.mxu0 0.0
        %2591 = vmatpush1.msra.mxu0 %v2556
        %2592 = vmatprep.subr.mxu0 0.0
        %2593 = vmatpush1.msra.mxu0 %v2557
        %2594 = vmatprep.subr.mxu0 0.0
        %2595 = vmatpush1.msra.mxu0 %v2558
        %2596 = vmatprep.subr.mxu0 0.0
        %2597 = vmatpush1.msra.mxu0 %v2559
        %2598 = vmatprep.subr.mxu0 0.0
        %2599 = vmatpush1.msra.mxu0 %v2560
        %2600 = vmatprep.subr.mxu0 0.0
        %2601 = vmatpush1.msra.mxu0 %v2561
        %2602 = vmatprep.subr.mxu0 0.0
        %2603 = vmatpush1.msra.mxu0 %v2562
        %2604 = vmatprep.subr.mxu0 0.0
        %2605 = vmatpush1.msra.mxu0 %v2563
        %2606 = vmatprep.subr.mxu0 0.0
        %2607 = vmatpush1.msra.mxu0 %v2564
        %2608 = vmatprep.subr.mxu0 0.0
        %2609 = vmatpush1.msra.mxu0 %v2565
        %2610 = vmatprep.subr.mxu0 0.0
        %2611 = vmatpush1.msra.mxu0 %v2566
        %2612 = vmatprep.subr.mxu0 0.0
        %2613 = vmatpush1.msra.mxu0 %v2567
        %2614 = vmatprep.subr.mxu0 0.0
        %2615 = vmatpush1.msra.mxu0 %v2568
        %2616 = vmatprep.subr.mxu0 0.0
        %2617 = vmatpush1.msra.mxu0 %v2569
        %2618 = vmatprep.subr.mxu0 0.0
        %2619 = vmatpush1.msra.mxu0 %v2570
        %2620 = vmatprep.subr.mxu0 0.0
        %2621 = vmatpush1.msra.mxu0 %v2571
        %2622 = vmatprep.subr.mxu0 0.0
        %2623 = vmatpush1.msra.mxu0 %v2572
        %2624 = vmatprep.subr.mxu0 0.0
        %2625 = vmatpush1.msra.mxu0 %v2573
        %2626 = vmatprep.subr.mxu0 0.0
        %2627 = vmatpush1.msra.mxu0 %v2574
        %2628 = vmatprep.subr.mxu0 0.0
        %2629 = vmatpush1.msra.mxu0 0.0
        %2630 = vmatprep.subr.mxu0 0.0
        %2631 = vmatpush1.msra.mxu0 0.0
        %2632 = vmatprep.subr.mxu0 0.0
        %2633 = vmatpush1.msra.mxu0 0.0
        %2634 = vmatprep.subr.mxu0 0.0
        %2635 = vmatpush1.msra.mxu0 0.0
        %2636 = vmatprep.subr.mxu0 0.0
        %2637 = vmatpush1.msra.mxu0 0.0
        %2638 = vmatprep.subr.mxu0 0.0
        %2639 = vmatpush1.msra.mxu0 0.0
        %2640 = vmatprep.subr.mxu0 0.0
        %2641 = vmatpush1.msra.mxu0 0.0
        %2642 = vmatprep.subr.mxu0 0.0
        %2643 = vmatpush1.msra.mxu0 0.0
        %2644 = vmatprep.mubr.f32.mxu0 %v2578
        %2645 = vmatmul.mubr.f32.gmra.mrb[0].mxu0 %v2550
        %v2646 = vpop.f32.mrb[0].mxu0
        %v2647 = vadd.f32 0.0, %v2646
        %v2648 = vpop.f32.mrb[0].mxu0
        %2649 = vdwg.mxu0
        %s2650 = scalar_lea.vmem %s5, 192
        %v2651 = vld [vmem:[%s2650] sm:$0xff]
        %v2652 = vld [vmem:[%s2650 + $0x8] sm:$0xff]
        %v2653 = vld [vmem:[%s2650 + $0x10] sm:$0xff]
        %v2654 = vld [vmem:[%s2650 + $0x18] sm:$0xff]
        %v2655 = vld [vmem:[%s2650 + $0x20] sm:$0xff]
        %v2656 = vld [vmem:[%s2650 + $0x28] sm:$0xff]
        %v2657 = vld [vmem:[%s2650 + $0x30] sm:$0xff]
        %v2658 = vld [vmem:[%s2650 + $0x38] sm:$0xff]
        %v2659 = vld [vmem:[%s2650 + $0x40] sm:$0xff]
        %v2660 = vld [vmem:[%s2650 + $0x48] sm:$0xff]
        %v2661 = vld [vmem:[%s2650 + $0x50] sm:$0xff]
        %v2662 = vld [vmem:[%s2650 + $0x58] sm:$0xff]
        %v2663 = vld [vmem:[%s2650 + $0x60] sm:$0xff]
        %v2664 = vld [vmem:[%s2650 + $0x68] sm:$0xff]
        %v2665 = vld [vmem:[%s2650 + $0x70] sm:$0xff]
        %v2666 = vld [vmem:[%s2650 + $0x78] sm:$0xff]
        %v2667 = vld [vmem:[%s2650 + $0x80] sm:$0xff]
        %v2668 = vld [vmem:[%s2650 + $0x88] sm:$0xff]
        %v2669 = vld [vmem:[%s2650 + $0x90] sm:$0xff]
        %v2670 = vld [vmem:[%s2650 + $0x98] sm:$0xff]
        %v2671 = vld [vmem:[%s2650 + $0xa0] sm:$0xff]
        %v2672 = vld [vmem:[%s2650 + $0xa8] sm:$0xff]
        %v2673 = vld [vmem:[%s2650 + $0xb0] sm:$0xff]
        %v2674 = vld [vmem:[%s2650 + $0xb8] sm:$0xff]
        %2675 = vmatprep.subr.mxu0 0.0
        %2676 = vmatpush1.msra.mxu0 %v2651
        %2677 = vmatprep.subr.mxu0 0.0
        %2678 = vmatpush1.msra.mxu0 %v2652
        %2679 = vmatprep.subr.mxu0 0.0
        %2680 = vmatpush1.msra.mxu0 %v2653
        %2681 = vmatprep.subr.mxu0 0.0
        %2682 = vmatpush1.msra.mxu0 %v2654
        %2683 = vmatprep.subr.mxu0 0.0
        %2684 = vmatpush1.msra.mxu0 %v2655
        %2685 = vmatprep.subr.mxu0 0.0
        %2686 = vmatpush1.msra.mxu0 %v2656
        %2687 = vmatprep.subr.mxu0 0.0
        %2688 = vmatpush1.msra.mxu0 %v2657
        %2689 = vmatprep.subr.mxu0 0.0
        %2690 = vmatpush1.msra.mxu0 %v2658
        %2691 = vmatprep.subr.mxu0 0.0
        %2692 = vmatpush1.msra.mxu0 %v2659
        %2693 = vmatprep.subr.mxu0 0.0
        %2694 = vmatpush1.msra.mxu0 %v2660
        %2695 = vmatprep.subr.mxu0 0.0
        %2696 = vmatpush1.msra.mxu0 %v2661
        %2697 = vmatprep.subr.mxu0 0.0
        %2698 = vmatpush1.msra.mxu0 %v2662
        %2699 = vmatprep.subr.mxu0 0.0
        %2700 = vmatpush1.msra.mxu0 %v2663
        %2701 = vmatprep.subr.mxu0 0.0
        %2702 = vmatpush1.msra.mxu0 %v2664
        %2703 = vmatprep.subr.mxu0 0.0
        %2704 = vmatpush1.msra.mxu0 %v2665
        %2705 = vmatprep.subr.mxu0 0.0
        %2706 = vmatpush1.msra.mxu0 %v2666
        %2707 = vmatprep.subr.mxu0 0.0
        %2708 = vmatpush1.msra.mxu0 %v2667
        %2709 = vmatprep.subr.mxu0 0.0
        %2710 = vmatpush1.msra.mxu0 %v2668
        %2711 = vmatprep.subr.mxu0 0.0
        %2712 = vmatpush1.msra.mxu0 %v2669
        %2713 = vmatprep.subr.mxu0 0.0
        %2714 = vmatpush1.msra.mxu0 %v2670
        %2715 = vmatprep.subr.mxu0 0.0
        %2716 = vmatpush1.msra.mxu0 %v2671
        %2717 = vmatprep.subr.mxu0 0.0
        %2718 = vmatpush1.msra.mxu0 %v2672
        %2719 = vmatprep.subr.mxu0 0.0
        %2720 = vmatpush1.msra.mxu0 %v2673
        %2721 = vmatprep.subr.mxu0 0.0
        %2722 = vmatpush1.msra.mxu0 %v2674
        %2723 = vmatprep.subr.mxu0 0.0
        %2724 = vmatpush1.msra.mxu0 0.0
        %2725 = vmatprep.subr.mxu0 0.0
        %2726 = vmatpush1.msra.mxu0 0.0
        %2727 = vmatprep.subr.mxu0 0.0
        %2728 = vmatpush1.msra.mxu0 0.0
        %2729 = vmatprep.subr.mxu0 0.0
        %2730 = vmatpush1.msra.mxu0 0.0
        %2731 = vmatprep.subr.mxu0 0.0
        %2732 = vmatpush1.msra.mxu0 0.0
        %2733 = vmatprep.subr.mxu0 0.0
        %2734 = vmatpush1.msra.mxu0 0.0
        %2735 = vmatprep.subr.mxu0 0.0
        %2736 = vmatpush1.msra.mxu0 0.0
        %2737 = vmatprep.subr.mxu0 0.0
        %2738 = vmatpush1.msra.mxu0 0.0
        %2739 = vmatprep.mubr.f32.mxu0 %v2578
        %2740 = vmatmul.mubr.f32.gmra.mrb[0].mxu0 %v2550
        %v2741 = vpop.f32.mrb[0].mxu0
        %v2742 = vadd.f32 0.0, %v2741
        %v2743 = vpop.f32.mrb[0].mxu0
        %2744 = vdwg.mxu0
        %v2746 = vrot.slane %v2742, 1
        %v2748 = vadd.f32 %v2647, %v2746
        %s2749 = scalar_lea.vmem %s5, 384
        %v2750 = vld [vmem:[%s2749] sm:$0xff]
        %v2751 = vld [vmem:[%s2749 + $0x8] sm:$0xff]
        %v2752 = vld [vmem:[%s2749 + $0x10] sm:$0xff]
        %v2753 = vld [vmem:[%s2749 + $0x18] sm:$0xff]
        %v2754 = vld [vmem:[%s2749 + $0x20] sm:$0xff]
        %v2755 = vld [vmem:[%s2749 + $0x28] sm:$0xff]
        %v2756 = vld [vmem:[%s2749 + $0x30] sm:$0xff]
        %v2757 = vld [vmem:[%s2749 + $0x38] sm:$0xff]
        %v2758 = vld [vmem:[%s2749 + $0x40] sm:$0xff]
        %v2759 = vld [vmem:[%s2749 + $0x48] sm:$0xff]
        %v2760 = vld [vmem:[%s2749 + $0x50] sm:$0xff]
        %v2761 = vld [vmem:[%s2749 + $0x58] sm:$0xff]
        %v2762 = vld [vmem:[%s2749 + $0x60] sm:$0xff]
        %v2763 = vld [vmem:[%s2749 + $0x68] sm:$0xff]
        %v2764 = vld [vmem:[%s2749 + $0x70] sm:$0xff]
        %v2765 = vld [vmem:[%s2749 + $0x78] sm:$0xff]
        %v2766 = vld [vmem:[%s2749 + $0x80] sm:$0xff]
        %v2767 = vld [vmem:[%s2749 + $0x88] sm:$0xff]
        %v2768 = vld [vmem:[%s2749 + $0x90] sm:$0xff]
        %v2769 = vld [vmem:[%s2749 + $0x98] sm:$0xff]
        %v2770 = vld [vmem:[%s2749 + $0xa0] sm:$0xff]
        %v2771 = vld [vmem:[%s2749 + $0xa8] sm:$0xff]
        %v2772 = vld [vmem:[%s2749 + $0xb0] sm:$0xff]
        %v2773 = vld [vmem:[%s2749 + $0xb8] sm:$0xff]
        %2774 = vmatprep.subr.mxu0 0.0
        %2775 = vmatpush1.msra.mxu0 %v2750
        %2776 = vmatprep.subr.mxu0 0.0
        %2777 = vmatpush1.msra.mxu0 %v2751
        %2778 = vmatprep.subr.mxu0 0.0
        %2779 = vmatpush1.msra.mxu0 %v2752
        %2780 = vmatprep.subr.mxu0 0.0
        %2781 = vmatpush1.msra.mxu0 %v2753
        %2782 = vmatprep.subr.mxu0 0.0
        %2783 = vmatpush1.msra.mxu0 %v2754
        %2784 = vmatprep.subr.mxu0 0.0
        %2785 = vmatpush1.msra.mxu0 %v2755
        %2786 = vmatprep.subr.mxu0 0.0
        %2787 = vmatpush1.msra.mxu0 %v2756
        %2788 = vmatprep.subr.mxu0 0.0
        %2789 = vmatpush1.msra.mxu0 %v2757
        %2790 = vmatprep.subr.mxu0 0.0
        %2791 = vmatpush1.msra.mxu0 %v2758
        %2792 = vmatprep.subr.mxu0 0.0
        %2793 = vmatpush1.msra.mxu0 %v2759
        %2794 = vmatprep.subr.mxu0 0.0
        %2795 = vmatpush1.msra.mxu0 %v2760
        %2796 = vmatprep.subr.mxu0 0.0
        %2797 = vmatpush1.msra.mxu0 %v2761
        %2798 = vmatprep.subr.mxu0 0.0
        %2799 = vmatpush1.msra.mxu0 %v2762
        %2800 = vmatprep.subr.mxu0 0.0
        %2801 = vmatpush1.msra.mxu0 %v2763
        %2802 = vmatprep.subr.mxu0 0.0
        %2803 = vmatpush1.msra.mxu0 %v2764
        %2804 = vmatprep.subr.mxu0 0.0
        %2805 = vmatpush1.msra.mxu0 %v2765
        %2806 = vmatprep.subr.mxu0 0.0
        %2807 = vmatpush1.msra.mxu0 %v2766
        %2808 = vmatprep.subr.mxu0 0.0
        %2809 = vmatpush1.msra.mxu0 %v2767
        %2810 = vmatprep.subr.mxu0 0.0
        %2811 = vmatpush1.msra.mxu0 %v2768
        %2812 = vmatprep.subr.mxu0 0.0
        %2813 = vmatpush1.msra.mxu0 %v2769
        %2814 = vmatprep.subr.mxu0 0.0
        %2815 = vmatpush1.msra.mxu0 %v2770
        %2816 = vmatprep.subr.mxu0 0.0
        %2817 = vmatpush1.msra.mxu0 %v2771
        %2818 = vmatprep.subr.mxu0 0.0
        %2819 = vmatpush1.msra.mxu0 %v2772
        %2820 = vmatprep.subr.mxu0 0.0
        %2821 = vmatpush1.msra.mxu0 %v2773
        %2822 = vmatprep.subr.mxu0 0.0
        %2823 = vmatpush1.msra.mxu0 0.0
        %2824 = vmatprep.subr.mxu0 0.0
        %2825 = vmatpush1.msra.mxu0 0.0
        %2826 = vmatprep.subr.mxu0 0.0
        %2827 = vmatpush1.msra.mxu0 0.0
        %2828 = vmatprep.subr.mxu0 0.0
        %2829 = vmatpush1.msra.mxu0 0.0
        %2830 = vmatprep.subr.mxu0 0.0
        %2831 = vmatpush1.msra.mxu0 0.0
        %2832 = vmatprep.subr.mxu0 0.0
        %2833 = vmatpush1.msra.mxu0 0.0
        %2834 = vmatprep.subr.mxu0 0.0
        %2835 = vmatpush1.msra.mxu0 0.0
        %2836 = vmatprep.subr.mxu0 0.0
        %2837 = vmatpush1.msra.mxu0 0.0
        %2838 = vmatprep.mubr.f32.mxu0 %v2578
        %2839 = vmatmul.mubr.f32.gmra.mrb[0].mxu0 %v2550
        %v2840 = vpop.f32.mrb[0].mxu0
        %v2841 = vadd.f32 0.0, %v2840
        %v2842 = vpop.f32.mrb[0].mxu0
        %2843 = vdwg.mxu0
        %v2845 = vrot.slane %v2841, 2
        %v2847 = vadd.f32 %v2748, %v2845
        %vm2848 = vcmask 516096
        %2849 = vst.msk [vmem:[#allocation4] sm:$0x1] %vm2848, %v2847
        %v2850 = vld [vmem:[#allocation4] sm:$0x1]
        %v2851 = vld [vmem:[%s6] sm:$0x1]
        %v2852 = vadd.f32 %v2850, %v2851
        %v2853 = vmax.f32 %v2852, 0.0
        %v2854 = vld [vmem:[%s7] sm:$0xff]
        %v2855 = vld [vmem:[%s7 + $0x8] sm:$0xff]
        %v2856 = vld [vmem:[%s7 + $0x10] sm:$0xff]
        %v2857 = vld [vmem:[%s7 + $0x18] sm:$0xff]
        %v2858 = vld [vmem:[%s7 + $0x20] sm:$0xff]
        %v2859 = vld [vmem:[%s7 + $0x28] sm:$0xff]
        %v2860 = vld [vmem:[%s7 + $0x30] sm:$0xff]
        %v2861 = vld [vmem:[%s7 + $0x38] sm:$0xff]
        %v2862 = vld [vmem:[%s7 + $0x40] sm:$0xff]
        %v2863 = vld [vmem:[%s7 + $0x48] sm:$0xff]
        %v2864 = vld [vmem:[%s7 + $0x50] sm:$0xff]
        %v2865 = vld [vmem:[%s7 + $0x58] sm:$0xff]
        %v2866 = vld [vmem:[%s7 + $0x60] sm:$0xff]
        %v2867 = vld [vmem:[%s7 + $0x68] sm:$0xff]
        %v2868 = vld [vmem:[%s7 + $0x70] sm:$0xff]
        %v2869 = vld [vmem:[%s7 + $0x78] sm:$0xff]
        %v2870 = vld [vmem:[%s7 + $0x80] sm:$0xff]
        %v2871 = vld [vmem:[%s7 + $0x88] sm:$0xff]
        %v2872 = vld [vmem:[%s7 + $0x90] sm:$0xff]
        %v2873 = vld [vmem:[%s7 + $0x98] sm:$0xff]
        %v2874 = vld [vmem:[%s7 + $0xa0] sm:$0xff]
        %v2875 = vld [vmem:[%s7 + $0xa8] sm:$0xff]
        %v2876 = vld [vmem:[%s7 + $0xb0] sm:$0xff]
        %v2877 = vld [vmem:[%s7 + $0xb8] sm:$0xff]
        %v2878 = vld [vmem:[%s7 + $0xc0] sm:$0xff]
        %v2879 = vld [vmem:[%s7 + $0xc8] sm:$0xff]
        %v2880 = vld [vmem:[%s7 + $0xd0] sm:$0xff]
        %v2881 = vld [vmem:[%s7 + $0xd8] sm:$0xff]
        %v2882 = vld [vmem:[%s7 + $0xe0] sm:$0xff]
        %v2883 = vld [vmem:[%s7 + $0xe8] sm:$0xff]
        %v2884 = vld [vmem:[%s7 + $0xf0] sm:$0xff]
        %v2885 = vld [vmem:[%s7 + $0xf8] sm:$0xff]
        %v2886 = vld [vmem:[%s8] sm:$0xf]
        %v2888 = vlaneseq
        %v2889 = vshrl.u32 %v2888, 7
        %v2890 = vsub.s32 0, %v2889
        %v2891 = vrot.slane %v2886, %v2890
        %v2892 = vlaneseq
        %v2893 = vshrl.u32 %v2892, 7
        %v2894 = vsub.s32 1, %v2893
        %v2895 = vrot.slane %v2886, %v2894
        %v2896 = vlaneseq
        %v2897 = vshrl.u32 %v2896, 7
        %v2898 = vsub.s32 2, %v2897
        %v2899 = vrot.slane %v2886, %v2898
        %v2900 = vlaneseq
        %v2901 = vshrl.u32 %v2900, 7
        %v2902 = vsub.s32 3, %v2901
        %v2903 = vrot.slane %v2886, %v2902
        %v2909 = vsel %vm2577, %v2853, 0
        %2911 = vmatprep.subr.mxu0 %v2855
        %2912 = vmatpush1.msra.mxu0 %v2854
        %2913 = vmatprep.subr.mxu0 %v2859
        %2914 = vmatpush1.msra.mxu0 %v2858
        %2915 = vmatprep.subr.mxu0 %v2863
        %2916 = vmatpush1.msra.mxu0 %v2862
        %2917 = vmatprep.subr.mxu0 %v2867
        %2918 = vmatpush1.msra.mxu0 %v2866
        %2919 = vmatprep.subr.mxu0 %v2871
        %2920 = vmatpush1.msra.mxu0 %v2870
        %2921 = vmatprep.subr.mxu0 %v2875
        %2922 = vmatpush1.msra.mxu0 %v2874
        %2923 = vmatprep.subr.mxu0 %v2879
        %2924 = vmatpush1.msra.mxu0 %v2878
        %2925 = vmatprep.subr.mxu0 %v2883
        %2926 = vmatpush1.msra.mxu0 %v2882
        %2927 = vmatprep.subr.mxu0 0.0
        %2928 = vmatpush1.msra.mxu0 0.0
        %2929 = vmatprep.subr.mxu0 0.0
        %2930 = vmatpush1.msra.mxu0 0.0
        %2931 = vmatprep.subr.mxu0 0.0
        %2932 = vmatpush1.msra.mxu0 0.0
        %2933 = vmatprep.subr.mxu0 0.0
        %2934 = vmatpush1.msra.mxu0 0.0
        %2935 = vmatprep.subr.mxu0 0.0
        %2936 = vmatpush1.msra.mxu0 0.0
        %2937 = vmatprep.subr.mxu0 0.0
        %2938 = vmatpush1.msra.mxu0 0.0
        %2939 = vmatprep.subr.mxu0 0.0
        %2940 = vmatpush1.msra.mxu0 0.0
        %2941 = vmatprep.subr.mxu0 0.0
        %2942 = vmatpush1.msra.mxu0 0.0
        %2943 = vmatprep.subr.mxu0 0.0
        %2944 = vmatpush1.msra.mxu0 0.0
        %2945 = vmatprep.subr.mxu0 0.0
        %2946 = vmatpush1.msra.mxu0 0.0
        %2947 = vmatprep.subr.mxu0 0.0
        %2948 = vmatpush1.msra.mxu0 0.0
        %2949 = vmatprep.subr.mxu0 0.0
        %2950 = vmatpush1.msra.mxu0 0.0
        %2951 = vmatprep.subr.mxu0 0.0
        %2952 = vmatpush1.msra.mxu0 0.0
        %2953 = vmatprep.subr.mxu0 0.0
        %2954 = vmatpush1.msra.mxu0 0.0
        %2955 = vmatprep.subr.mxu0 0.0
        %2956 = vmatpush1.msra.mxu0 0.0
        %2957 = vmatprep.subr.mxu0 0.0
        %2958 = vmatpush1.msra.mxu0 0.0
        %2959 = vmatprep.subr.mxu0 0.0
        %2960 = vmatpush1.msra.mxu0 0.0
        %2961 = vmatprep.subr.mxu0 0.0
        %2962 = vmatpush1.msra.mxu0 0.0
        %2963 = vmatprep.subr.mxu0 0.0
        %2964 = vmatpush1.msra.mxu0 0.0
        %2965 = vmatprep.subr.mxu0 0.0
        %2966 = vmatpush1.msra.mxu0 0.0
        %2967 = vmatprep.subr.mxu0 0.0
        %2968 = vmatpush1.msra.mxu0 0.0
        %2969 = vmatprep.subr.mxu0 0.0
        %2970 = vmatpush1.msra.mxu0 0.0
        %2971 = vmatprep.subr.mxu0 0.0
        %2972 = vmatpush1.msra.mxu0 0.0
        %2973 = vmatprep.subr.mxu0 0.0
        %2974 = vmatpush1.msra.mxu0 0.0
        %2975 = vmatprep.mubr.f32.mxu0 0.0
        %2976 = vmatmul.mubr.f32.gmra.mrb[0].mxu0 %v2909
        %v2977 = vpop.f32.mrb[0].mxu0
        %v2978 = vadd.f32 %v2891, %v2977
        %v2979 = vpop.f32.mrb[0].mxu0
        %v2980 = vadd.f32 %v2895, %v2979
        %2981 = vdwg.mxu0
        %2982 = vmatprep.subr.mxu0 %v2857
        %2983 = vmatpush1.msra.mxu0 %v2856
        %2984 = vmatprep.subr.mxu0 %v2861
        %2985 = vmatpush1.msra.mxu0 %v2860
        %2986 = vmatprep.subr.mxu0 %v2865
        %2987 = vmatpush1.msra.mxu0 %v2864
        %2988 = vmatprep.subr.mxu0 %v2869
        %2989 = vmatpush1.msra.mxu0 %v2868
        %2990 = vmatprep.subr.mxu0 %v2873
        %2991 = vmatpush1.msra.mxu0 %v2872
        %2992 = vmatprep.subr.mxu0 %v2877
        %2993 = vmatpush1.msra.mxu0 %v2876
        %2994 = vmatprep.subr.mxu0 %v2881
        %2995 = vmatpush1.msra.mxu0 %v2880
        %2996 = vmatprep.subr.mxu0 %v2885
        %2997 = vmatpush1.msra.mxu0 %v2884
        %2998 = vmatprep.subr.mxu0 0.0
        %2999 = vmatpush1.msra.mxu0 0.0
        %3000 = vmatprep.subr.mxu0 0.0
        %3001 = vmatpush1.msra.mxu0 0.0
        %3002 = vmatprep.subr.mxu0 0.0
        %3003 = vmatpush1.msra.mxu0 0.0
        %3004 = vmatprep.subr.mxu0 0.0
        %3005 = vmatpush1.msra.mxu0 0.0
        %3006 = vmatprep.subr.mxu0 0.0
        %3007 = vmatpush1.msra.mxu0 0.0
        %3008 = vmatprep.subr.mxu0 0.0
        %3009 = vmatpush1.msra.mxu0 0.0
        %3010 = vmatprep.subr.mxu0 0.0
        %3011 = vmatpush1.msra.mxu0 0.0
        %3012 = vmatprep.subr.mxu0 0.0
        %3013 = vmatpush1.msra.mxu0 0.0
        %3014 = vmatprep.subr.mxu0 0.0
        %3015 = vmatpush1.msra.mxu0 0.0
        %3016 = vmatprep.subr.mxu0 0.0
        %3017 = vmatpush1.msra.mxu0 0.0
        %3018 = vmatprep.subr.mxu0 0.0
        %3019 = vmatpush1.msra.mxu0 0.0
        %3020 = vmatprep.subr.mxu0 0.0
        %3021 = vmatpush1.msra.mxu0 0.0
        %3022 = vmatprep.subr.mxu0 0.0
        %3023 = vmatpush1.msra.mxu0 0.0
        %3024 = vmatprep.subr.mxu0 0.0
        %3025 = vmatpush1.msra.mxu0 0.0
        %3026 = vmatprep.subr.mxu0 0.0
        %3027 = vmatpush1.msra.mxu0 0.0
        %3028 = vmatprep.subr.mxu0 0.0
        %3029 = vmatpush1.msra.mxu0 0.0
        %3030 = vmatprep.subr.mxu0 0.0
        %3031 = vmatpush1.msra.mxu0 0.0
        %3032 = vmatprep.subr.mxu0 0.0
        %3033 = vmatpush1.msra.mxu0 0.0
        %3034 = vmatprep.subr.mxu0 0.0
        %3035 = vmatpush1.msra.mxu0 0.0
        %3036 = vmatprep.subr.mxu0 0.0
        %3037 = vmatpush1.msra.mxu0 0.0
        %3038 = vmatprep.subr.mxu0 0.0
        %3039 = vmatpush1.msra.mxu0 0.0
        %3040 = vmatprep.subr.mxu0 0.0
        %3041 = vmatpush1.msra.mxu0 0.0
        %3042 = vmatprep.subr.mxu0 0.0
        %3043 = vmatpush1.msra.mxu0 0.0
        %3044 = vmatprep.subr.mxu0 0.0
        %3045 = vmatpush1.msra.mxu0 0.0
        %3046 = vmatprep.mubr.f32.mxu0 0.0
        %3047 = vmatmul.mubr.f32.gmra.mrb[0].mxu0 %v2909
        %v3048 = vpop.f32.mrb[0].mxu0
        %v3049 = vadd.f32 %v2899, %v3048
        %v3050 = vpop.f32.mrb[0].mxu0
        %v3051 = vadd.f32 %v2903, %v3050
        %3052 = vdwg.mxu0
        %v3053 = vmax.f32 %v2978, 0.0
        %v3054 = vmax.f32 %v2980, 0.0
        %v3055 = vmax.f32 %v3049, 0.0
        %v3056 = vmax.f32 %v3051, 0.0
        %v3057 = vld [vmem:[%s9] sm:$0xff]
        %v3058 = vld [vmem:[%s9 + $0x8] sm:$0xff]
        %v3059 = vld [vmem:[%s9 + $0x10] sm:$0xff]
        %v3060 = vld [vmem:[%s9 + $0x18] sm:$0xff]
        %v3061 = vld [vmem:[%s9 + $0x20] sm:$0xff]
        %v3062 = vld [vmem:[%s9 + $0x28] sm:$0xff]
        %v3063 = vld [vmem:[%s9 + $0x30] sm:$0xff]
        %v3064 = vld [vmem:[%s9 + $0x38] sm:$0xff]
        %v3065 = vld [vmem:[%s9 + $0x40] sm:$0xff]
        %v3066 = vld [vmem:[%s9 + $0x48] sm:$0xff]
        %v3067 = vld [vmem:[%s9 + $0x50] sm:$0xff]
        %v3068 = vld [vmem:[%s9 + $0x58] sm:$0xff]
        %v3069 = vld [vmem:[%s9 + $0x60] sm:$0xff]
        %v3070 = vld [vmem:[%s9 + $0x68] sm:$0xff]
        %v3071 = vld [vmem:[%s9 + $0x70] sm:$0xff]
        %v3072 = vld [vmem:[%s9 + $0x78] sm:$0xff]
        %v3073 = vld [vmem:[%s9 + $0x80] sm:$0xff]
        %v3074 = vld [vmem:[%s9 + $0x88] sm:$0xff]
        %v3075 = vld [vmem:[%s9 + $0x90] sm:$0xff]
        %v3076 = vld [vmem:[%s9 + $0x98] sm:$0xff]
        %v3077 = vld [vmem:[%s9 + $0xa0] sm:$0xff]
        %v3078 = vld [vmem:[%s9 + $0xa8] sm:$0xff]
        %v3079 = vld [vmem:[%s9 + $0xb0] sm:$0xff]
        %v3080 = vld [vmem:[%s9 + $0xb8] sm:$0xff]
        %v3081 = vld [vmem:[%s9 + $0xc0] sm:$0xff]
        %v3082 = vld [vmem:[%s9 + $0xc8] sm:$0xff]
        %v3083 = vld [vmem:[%s9 + $0xd0] sm:$0xff]
        %v3084 = vld [vmem:[%s9 + $0xd8] sm:$0xff]
        %v3085 = vld [vmem:[%s9 + $0xe0] sm:$0xff]
        %v3086 = vld [vmem:[%s9 + $0xe8] sm:$0xff]
        %v3087 = vld [vmem:[%s9 + $0xf0] sm:$0xff]
        %v3088 = vld [vmem:[%s9 + $0xf8] sm:$0xff]
        %v3089 = vld [vmem:[%s9 + $0x100] sm:$0xff]
        %v3090 = vld [vmem:[%s9 + $0x108] sm:$0xff]
        %v3091 = vld [vmem:[%s9 + $0x110] sm:$0xff]
        %v3092 = vld [vmem:[%s9 + $0x118] sm:$0xff]
        %v3093 = vld [vmem:[%s9 + $0x120] sm:$0xff]
        %v3094 = vld [vmem:[%s9 + $0x128] sm:$0xff]
        %v3095 = vld [vmem:[%s9 + $0x130] sm:$0xff]
        %v3096 = vld [vmem:[%s9 + $0x138] sm:$0xff]
        %v3097 = vld [vmem:[%s9 + $0x140] sm:$0xff]
        %v3098 = vld [vmem:[%s9 + $0x148] sm:$0xff]
        %v3099 = vld [vmem:[%s9 + $0x150] sm:$0xff]
        %v3100 = vld [vmem:[%s9 + $0x158] sm:$0xff]
        %v3101 = vld [vmem:[%s9 + $0x160] sm:$0xff]
        %v3102 = vld [vmem:[%s9 + $0x168] sm:$0xff]
        %v3103 = vld [vmem:[%s9 + $0x170] sm:$0xff]
        %v3104 = vld [vmem:[%s9 + $0x178] sm:$0xff]
        %v3105 = vld [vmem:[%s9 + $0x180] sm:$0xff]
        %v3106 = vld [vmem:[%s9 + $0x188] sm:$0xff]
        %v3107 = vld [vmem:[%s9 + $0x190] sm:$0xff]
        %v3108 = vld [vmem:[%s9 + $0x198] sm:$0xff]
        %v3109 = vld [vmem:[%s9 + $0x1a0] sm:$0xff]
        %v3110 = vld [vmem:[%s9 + $0x1a8] sm:$0xff]
        %v3111 = vld [vmem:[%s9 + $0x1b0] sm:$0xff]
        %v3112 = vld [vmem:[%s9 + $0x1b8] sm:$0xff]
        %v3113 = vld [vmem:[%s9 + $0x1c0] sm:$0xff]
        %v3114 = vld [vmem:[%s9 + $0x1c8] sm:$0xff]
        %v3115 = vld [vmem:[%s9 + $0x1d0] sm:$0xff]
        %v3116 = vld [vmem:[%s9 + $0x1d8] sm:$0xff]
        %v3117 = vld [vmem:[%s9 + $0x1e0] sm:$0xff]
        %v3118 = vld [vmem:[%s9 + $0x1e8] sm:$0xff]
        %v3119 = vld [vmem:[%s9 + $0x1f0] sm:$0xff]
        %v3120 = vld [vmem:[%s9 + $0x1f8] sm:$0xff]
        %v3121 = vld [vmem:[%s10] sm:$0x1]
        %3122 = vmatprep.subr.mxu0 0.0
        %3123 = vmatpush1.msra.mxu0 %v3057
        %3124 = vmatprep.subr.mxu0 0.0
        %3125 = vmatpush1.msra.mxu0 %v3058
        %3126 = vmatprep.subr.mxu0 0.0
        %3127 = vmatpush1.msra.mxu0 %v3059
        %3128 = vmatprep.subr.mxu0 0.0
        %3129 = vmatpush1.msra.mxu0 %v3060
        %3130 = vmatprep.subr.mxu0 0.0
        %3131 = vmatpush1.msra.mxu0 %v3061
        %3132 = vmatprep.subr.mxu0 0.0
        %3133 = vmatpush1.msra.mxu0 %v3062
        %3134 = vmatprep.subr.mxu0 0.0
        %3135 = vmatpush1.msra.mxu0 %v3063
        %3136 = vmatprep.subr.mxu0 0.0
        %3137 = vmatpush1.msra.mxu0 %v3064
        %3138 = vmatprep.subr.mxu0 0.0
        %3139 = vmatpush1.msra.mxu0 %v3065
        %3140 = vmatprep.subr.mxu0 0.0
        %3141 = vmatpush1.msra.mxu0 %v3066
        %3142 = vmatprep.subr.mxu0 0.0
        %3143 = vmatpush1.msra.mxu0 %v3067
        %3144 = vmatprep.subr.mxu0 0.0
        %3145 = vmatpush1.msra.mxu0 %v3068
        %3146 = vmatprep.subr.mxu0 0.0
        %3147 = vmatpush1.msra.mxu0 %v3069
        %3148 = vmatprep.subr.mxu0 0.0
        %3149 = vmatpush1.msra.mxu0 %v3070
        %3150 = vmatprep.subr.mxu0 0.0
        %3151 = vmatpush1.msra.mxu0 %v3071
        %3152 = vmatprep.subr.mxu0 0.0
        %3153 = vmatpush1.msra.mxu0 %v3072
        %3154 = vmatprep.subr.mxu0 0.0
        %3155 = vmatpush1.msra.mxu0 %v3073
        %3156 = vmatprep.subr.mxu0 0.0
        %3157 = vmatpush1.msra.mxu0 %v3074
        %3158 = vmatprep.subr.mxu0 0.0
        %3159 = vmatpush1.msra.mxu0 %v3075
        %3160 = vmatprep.subr.mxu0 0.0
        %3161 = vmatpush1.msra.mxu0 %v3076
        %3162 = vmatprep.subr.mxu0 0.0
        %3163 = vmatpush1.msra.mxu0 %v3077
        %3164 = vmatprep.subr.mxu0 0.0
        %3165 = vmatpush1.msra.mxu0 %v3078
        %3166 = vmatprep.subr.mxu0 0.0
        %3167 = vmatpush1.msra.mxu0 %v3079
        %3168 = vmatprep.subr.mxu0 0.0
        %3169 = vmatpush1.msra.mxu0 %v3080
        %3170 = vmatprep.subr.mxu0 0.0
        %3171 = vmatpush1.msra.mxu0 %v3081
        %3172 = vmatprep.subr.mxu0 0.0
        %3173 = vmatpush1.msra.mxu0 %v3082
        %3174 = vmatprep.subr.mxu0 0.0
        %3175 = vmatpush1.msra.mxu0 %v3083
        %3176 = vmatprep.subr.mxu0 0.0
        %3177 = vmatpush1.msra.mxu0 %v3084
        %3178 = vmatprep.subr.mxu0 0.0
        %3179 = vmatpush1.msra.mxu0 %v3085
        %3180 = vmatprep.subr.mxu0 0.0
        %3181 = vmatpush1.msra.mxu0 %v3086
        %3182 = vmatprep.subr.mxu0 0.0
        %3183 = vmatpush1.msra.mxu0 %v3087
        %3184 = vmatprep.subr.mxu0 0.0
        %3185 = vmatpush1.msra.mxu0 %v3088
        %3186 = vmatprep.mubr.f32.mxu0 %v3054
        %3187 = vmatmul.mubr.f32.gmra.mrb[0].mxu0 %v3053
        %v3188 = vpop.f32.mrb[0].mxu0
        %v3189 = vadd.f32 %v3121, %v3188
        %v3190 = vpop.f32.mrb[0].mxu0
        %3191 = vdwg.mxu0
        %3192 = vmatprep.subr.mxu0 0.0
        %3193 = vmatpush1.msra.mxu0 %v3089
        %3194 = vmatprep.subr.mxu0 0.0
        %3195 = vmatpush1.msra.mxu0 %v3090
        %3196 = vmatprep.subr.mxu0 0.0
        %3197 = vmatpush1.msra.mxu0 %v3091
        %3198 = vmatprep.subr.mxu0 0.0
        %3199 = vmatpush1.msra.mxu0 %v3092
        %3200 = vmatprep.subr.mxu0 0.0
        %3201 = vmatpush1.msra.mxu0 %v3093
        %3202 = vmatprep.subr.mxu0 0.0
        %3203 = vmatpush1.msra.mxu0 %v3094
        %3204 = vmatprep.subr.mxu0 0.0
        %3205 = vmatpush1.msra.mxu0 %v3095
        %3206 = vmatprep.subr.mxu0 0.0
        %3207 = vmatpush1.msra.mxu0 %v3096
        %3208 = vmatprep.subr.mxu0 0.0
        %3209 = vmatpush1.msra.mxu0 %v3097
        %3210 = vmatprep.subr.mxu0 0.0
        %3211 = vmatpush1.msra.mxu0 %v3098
        %3212 = vmatprep.subr.mxu0 0.0
        %3213 = vmatpush1.msra.mxu0 %v3099
        %3214 = vmatprep.subr.mxu0 0.0
        %3215 = vmatpush1.msra.mxu0 %v3100
        %3216 = vmatprep.subr.mxu0 0.0
        %3217 = vmatpush1.msra.mxu0 %v3101
        %3218 = vmatprep.subr.mxu0 0.0
        %3219 = vmatpush1.msra.mxu0 %v3102
        %3220 = vmatprep.subr.mxu0 0.0
        %3221 = vmatpush1.msra.mxu0 %v3103
        %3222 = vmatprep.subr.mxu0 0.0
        %3223 = vmatpush1.msra.mxu0 %v3104
        %3224 = vmatprep.subr.mxu0 0.0
        %3225 = vmatpush1.msra.mxu0 %v3105
        %3226 = vmatprep.subr.mxu0 0.0
        %3227 = vmatpush1.msra.mxu0 %v3106
        %3228 = vmatprep.subr.mxu0 0.0
        %3229 = vmatpush1.msra.mxu0 %v3107
        %3230 = vmatprep.subr.mxu0 0.0
        %3231 = vmatpush1.msra.mxu0 %v3108
        %3232 = vmatprep.subr.mxu0 0.0
        %3233 = vmatpush1.msra.mxu0 %v3109
        %3234 = vmatprep.subr.mxu0 0.0
        %3235 = vmatpush1.msra.mxu0 %v3110
        %3236 = vmatprep.subr.mxu0 0.0
        %3237 = vmatpush1.msra.mxu0 %v3111
        %3238 = vmatprep.subr.mxu0 0.0
        %3239 = vmatpush1.msra.mxu0 %v3112
        %3240 = vmatprep.subr.mxu0 0.0
        %3241 = vmatpush1.msra.mxu0 %v3113
        %3242 = vmatprep.subr.mxu0 0.0
        %3243 = vmatpush1.msra.mxu0 %v3114
        %3244 = vmatprep.subr.mxu0 0.0
        %3245 = vmatpush1.msra.mxu0 %v3115
        %3246 = vmatprep.subr.mxu0 0.0
        %3247 = vmatpush1.msra.mxu0 %v3116
        %3248 = vmatprep.subr.mxu0 0.0
        %3249 = vmatpush1.msra.mxu0 %v3117
        %3250 = vmatprep.subr.mxu0 0.0
        %3251 = vmatpush1.msra.mxu0 %v3118
        %3252 = vmatprep.subr.mxu0 0.0
        %3253 = vmatpush1.msra.mxu0 %v3119
        %3254 = vmatprep.subr.mxu0 0.0
        %3255 = vmatpush1.msra.mxu0 %v3120
        %3256 = vmatprep.mubr.f32.mxu0 %v3056
        %3257 = vmatmul.mubr.f32.gmra.mrb[0].mxu0 %v3055
        %v3258 = vpop.f32.mrb[0].mxu0
        %v3259 = vadd.f32 %v3189, %v3258
        %v3260 = vpop.f32.mrb[0].mxu0
        %3261 = vdwg.mxu0
        %vm3262 = vcmask 40960
        %3263 = vst.msk [vmem:[%s378] sm:$0x1] %vm3262, %v3259
        %s3264 = sand.u32 %s269, 1
        %s3265 = scalar_lea.sflag [#allocation6], %s3264
        %s3266 = sand.u32 %s269, 1
        %s3267 = scalar_lea.vmem [#allocation5], %s3266
        // Predicated region
        $region65: #{fwd.1} parent=63 // pred_check
          %p3268 = pneg %p279
        $region66: #{fwd.1} parent=63 // pred_check_branch
          %3270 = sbr.rel (%p3268) target = $region68
        $region67: #{fwd.1} parent=63 // pred_region
          %s3272 = ssub.s32 16, 16
          %3273 = vsyncadd %s3265, %s3272
          %s3274 = smul.addr %s25, 16
          %s3275 = scalar_lea.hbm %s11, %s3274
          %s3277 = sshll.u32 %s3267, 4
          %s3278 = int_to_ptr.vmem [resolvable:$true] %s3277
          %3280 = dma.vmem_to_hbm [thread:$0]  %s3278, 16, %s3275, %s3265
        $region68: #{fwd.1} parent=63 // pred_fallthru
          _
      $region64: #{fwd.1} parent=5 // pred_fallthru
        _
      %p3281 = scmp.le.s32.totalorder 2, %s20
      // Predicated region
      $region69: #{fwd.1} parent=5 // pred_check
        %p3282 = pneg %p3281
      $region70: #{fwd.1} parent=5 // pred_check_branch
        %3284 = sbr.rel (%p3282) target = $region72
      $region71: #{fwd.1} parent=5 // pred_region
        %s3285 = ssub.s32 %s20, 2
        // Predicated region
        $region73: #{fwd.1} parent=71 // pred_check
          %p3286 = pneg %p285
        $region74: #{fwd.1} parent=71 // pred_check_branch
          %3288 = sbr.rel (%p3286) target = $region76
        $region75: #{fwd.1} parent=71 // pred_region
          %s3289 = sand.u32 %s270, 1
          %s3290 = scalar_lea.sflag [#allocation6], %s3289
          %s3291 = sand.u32 %s270, 1
          %s3292 = scalar_lea.vmem [#allocation5], %s3291
          %3293 = dma.done %s3290, 16
        $region76: #{fwd.1} parent=71 // pred_fallthru
          _
      $region72: #{fwd.1} parent=5 // pred_fallthru
        _
    $region6: #{fwd.1} parent=1 // loop_footer
      %s24 = sadd.s32 1, %s20
    $region7: #{fwd.1} parent=1 // loop_footer_branch
      %19 = sbr.rel target = $region3
    $region8: #{fwd.1} parent=1 // loop_exit
      _
    %3294 = vsyncpa [#allocation6], 1
    %s3295 = scalar_lea.sflag [#allocation6], 1
    %3296 = vsyncpa %s3295, 1

</llo_original>
